<compile_context>
chip_gen: v5e
topology: v5e:2x2
jax: 0.10.0
libtpu: 0.0.40
codegen_flags: <defaults>
</compile_context>

<pallas_src>
import functools
import math

import jax
import jax.numpy as jnp
from jax.experimental import pallas as pl
from jax.experimental.pallas import tpu as pltpu

# logical (PyTorch) dims
D_IN, D_H, D_Z = 784, 400, 100
# padded, 128-lane-aligned internal dims (input/output stay at logical 784)
D_H_P, D_Z_P = 512, 128


def _round_up(n, m):
    return (n + m - 1) // m * m


def _vae_kernel(x_ref, eps_ref,
                w1_ref, b1_ref,
                wenc_ref, benc_ref,
                w3_ref, b3_ref,
                w4_ref, b4_ref,
                recon_ref, zml_ref):
    # encode: h1 = relu(x @ W1 + b1); x already bf16, f32 accumulation on MXU
    h1 = jnp.dot(x_ref[...], w1_ref[...],
                 preferred_element_type=jnp.float32) + b1_ref[...]
    h1 = jnp.maximum(h1, 0.0)

    # fused head: [mu | logvar] = h1 @ [W21 | W22] + [b21 | b22]  (one dot)
    ml = jnp.dot(h1.astype(jnp.bfloat16), wenc_ref[...],
                 preferred_element_type=jnp.float32) + benc_ref[...]
    mu = ml[:, :D_Z_P]
    logvar = ml[:, D_Z_P:]

    # reparametrize: z = eps * exp(0.5*logvar) + mu   (f32, exp on EUP)
    # padded lanes: eps=0, logvar=0, mu=0  ->  z padded lanes stay exactly 0
    z = eps_ref[...] * jnp.exp(logvar * 0.5) + mu

    # decode: sigmoid(relu(z @ W3 + b3) @ W4 + b4)
    h3 = jnp.dot(z.astype(jnp.bfloat16), w3_ref[...],
                 preferred_element_type=jnp.float32) + b3_ref[...]
    h3 = jnp.maximum(h3, 0.0)
    logits = jnp.dot(h3.astype(jnp.bfloat16), w4_ref[...],
                     preferred_element_type=jnp.float32) + b4_ref[...]
    recon_ref[...] = jax.nn.sigmoid(logits)

    # single fused small-output stream: [ z | mu | logvar ], 128 lanes each
    zml_ref[:, 0:D_Z_P] = z
    zml_ref[:, D_Z_P:3 * D_Z_P] = ml


def prepare_params(p):
    """Pad hidden/latent dims to 128-multiples, fuse fc21/fc22, bf16 weights."""
    def padw(w, rows, cols):
        return jnp.pad(w, ((0, rows - w.shape[0]), (0, cols - w.shape[1])))

    w1 = padw(p["w1"], D_IN, D_H_P).astype(jnp.bfloat16)           # (784, 512)
    b1 = padw(p["b1"], 1, D_H_P)                                   # (1, 512)
    wenc = jnp.concatenate(
        [padw(p["w21"], D_H_P, D_Z_P), padw(p["w22"], D_H_P, D_Z_P)], axis=1
    ).astype(jnp.bfloat16)                                         # (512, 256)
    benc = jnp.concatenate(
        [padw(p["b21"], 1, D_Z_P), padw(p["b22"], 1, D_Z_P)], axis=1)  # (1,256)
    w3 = padw(p["w3"], D_Z_P, D_H_P).astype(jnp.bfloat16)          # (128, 512)
    b3 = padw(p["b3"], 1, D_H_P)                                   # (1, 512)
    w4 = padw(p["w4"], D_H_P, D_IN).astype(jnp.bfloat16)           # (512, 784)
    b4 = p["b4"]                                                   # (1, 784)
    return (w1, b1, wenc, benc, w3, b3, w4, b4)


@functools.partial(jax.jit, static_argnames=("tile_b",))
def vae_forward(x, eps, kernel_params, *, tile_b=1024):
    """x: (B, 784) f32, eps: (B, 100) f32 N(0,1), kernel_params: prepare_params(...)."""
    B = x.shape[0]
    tile_b = min(tile_b, 2048)               # VMEM ceiling even on v7x (64 MiB/TC)
    n_tiles = -(-B // tile_b)
    if B >= 1024:
        n_tiles = max(n_tiles, 2)            # keep both v7x TensorCores busy
    # near-even split; multiple of 16 (bf16 sublane packing for the x blocks)
    tb = _round_up(-(-B // n_tiles), 16)
    n_tiles = -(-B // tb)
    Bp = n_tiles * tb

    # x streams as bf16 at logical width (cast fused into the batch pad);
    # eps is tiny, keep f32 and pad its latent dim to 128 so z stays exact.
    xp = jnp.pad(x, ((0, Bp - B), (0, 0))).astype(jnp.bfloat16)
    epsp = jnp.pad(eps, ((0, Bp - B), (0, D_Z_P - D_Z)))

    w1, b1, wenc, benc, w3, b3, w4, b4 = kernel_params

    def row_spec(shape):    # batch-tiled operands
        return pl.BlockSpec(shape, lambda i: (i, 0))

    def fixed_spec(shape):  # VMEM-resident weights/biases (same block every step)
        return pl.BlockSpec(shape, lambda i: (0, 0))

    in_specs = [
        row_spec((tb, D_IN)),              # x (bf16, full-dim 784 block)
        row_spec((tb, D_Z_P)),             # eps
        fixed_spec((D_IN, D_H_P)),         # w1
        fixed_spec((1, D_H_P)),            # b1
        fixed_spec((D_H_P, 2 * D_Z_P)),    # wenc = [w21 | w22]
        fixed_spec((1, 2 * D_Z_P)),        # benc = [b21 | b22]
        fixed_spec((D_Z_P, D_H_P)),        # w3
        fixed_spec((1, D_H_P)),            # b3
        fixed_spec((D_H_P, D_IN)),         # w4
        fixed_spec((1, D_IN)),             # b4
    ]
    out_specs = (
        row_spec((tb, D_IN)),              # recon (lane-dense 784)
        row_spec((tb, 3 * D_Z_P)),         # [z | mu | logvar]
    )
    out_shapes = (
        jax.ShapeDtypeStruct((Bp, D_IN), jnp.float32),
        jax.ShapeDtypeStruct((Bp, 3 * D_Z_P), jnp.float32),
    )

    flops = 2 * Bp * (D_IN * D_H_P + D_H_P * 2 * D_Z_P
                      + D_Z_P * D_H_P + D_H_P * D_IN)
    transcendentals = Bp * (D_Z_P + D_IN)          # exp(std) + sigmoid
    out_elems = sum(math.prod(o.shape) for o in out_shapes)
    bytes_accessed = (2 * xp.size + 4 * epsp.size
                      + 2 * (w1.size + wenc.size + w3.size + w4.size)
                      + 4 * (b1.size + benc.size + b3.size + b4.size)
                      + 4 * out_elems)

    recon, zml = pl.pallas_call(
        _vae_kernel,
        out_shape=out_shapes,
        grid=(n_tiles,),
        in_specs=in_specs,
        out_specs=out_specs,
        compiler_params=pltpu.CompilerParams(
            dimension_semantics=("parallel",),     # shard batch tiles across TCs
            vmem_limit_bytes=48 << 20,             # headroom for tb up to 2048
        ),
        cost_estimate=pl.CostEstimate(
            flops=flops,
            transcendentals=transcendentals,
            bytes_accessed=bytes_accessed),
    )(xp, epsp, w1, b1, wenc, benc, w3, b3, w4, b4)

    z = zml[:B, 0:D_Z]
    mu = zml[:B, D_Z_P:D_Z_P + D_Z]
    logvar = zml[:B, 2 * D_Z_P:2 * D_Z_P + D_Z]
    return z, recon[:B], mu, logvar


def init_params(key):
    """Deterministic init mimicking nn.Linear (weights stored as (in, out), f32)."""
    def linear(k, fan_in, fan_out):
        kw, kb = jax.random.split(k)
        bound = 1.0 / jnp.sqrt(fan_in)
        # PyTorch stores (out, in); generate (out, in) then transpose to (in, out).
        w = jax.random.uniform(kw, (fan_out, fan_in), jnp.float32, -bound, bound).T
        b = jax.random.uniform(kb, (1, fan_out), jnp.float32, -bound, bound)
        return w, b

    k1, k21, k22, k3, k4 = jax.random.split(key, 5)
    w1, b1 = linear(k1, D_IN, D_H)
    w21, b21 = linear(k21, D_H, D_Z)
    w22, b22 = linear(k22, D_H, D_Z)
    w3, b3 = linear(k3, D_Z, D_H)
    w4, b4 = linear(k4, D_H, D_IN)
    return dict(w1=w1, b1=b1, w21=w21, b21=b21, w22=w22, b22=b22,
                w3=w3, b3=b3, w4=w4, b4=b4)


def vae_forward_ref(x, eps, p):
    """Pure-JAX f32 reference for correctness check."""
    h1 = jnp.maximum(x @ p["w1"] + p["b1"], 0.0)
    mu = h1 @ p["w21"] + p["b21"]
    logvar = h1 @ p["w22"] + p["b22"]
    z = eps * jnp.exp(0.5 * logvar) + mu
    h3 = jnp.maximum(z @ p["w3"] + p["b3"], 0.0)
    recon = jax.nn.sigmoid(h3 @ p["w4"] + p["b4"])
    return z, recon, mu, logvar


if __name__ == "__main__":
    key = jax.random.PRNGKey(0)
    kx, keps, kparams = jax.random.split(key, 3)

    B = 2
    x = jax.random.uniform(kx, (B, D_IN), jnp.float32)    # MNIST-like pixels in [0,1)
    eps = jax.random.normal(keps, (B, D_Z), jnp.float32)  # reparametrization noise
    params = init_params(kparams)
    kernel_params = prepare_params(params)                # one-time host-side prep

    z, recon, mu, logvar = vae_forward(x, eps, kernel_params)
    jax.block_until_ready((z, recon, mu, logvar))

    # sanity check vs pure-JAX f32 reference (kernel matmuls use bf16 inputs,
    # f32 accumulation -> loose tolerance)
    z_r, recon_r, mu_r, logvar_r = vae_forward_ref(x, eps, params)
    assert z.shape == (B, D_Z) and recon.shape == (B, D_IN)
    assert mu.shape == (B, D_Z) and logvar.shape == (B, D_Z)
    assert jnp.allclose(mu, mu_r, atol=3e-2, rtol=3e-2), "mu mismatch"
    assert jnp.allclose(logvar, logvar_r, atol=3e-2, rtol=3e-2), "logvar mismatch"
    assert jnp.allclose(z, z_r, atol=3e-2, rtol=3e-2), "z mismatch"
    assert jnp.allclose(recon, recon_r, atol=2e-2, rtol=2e-2), "recon mismatch"

    print("KERNEL_OK")
</pallas_src>

<mosaic_0001>
module attributes {stable_mosaic.version = 11 : i64} {
  func.func @_vae_kernel(%arg0: i32, %arg1: memref<16x784xbf16, #tpu.memory_space<vmem>>, %arg2: memref<16x128xf32, #tpu.memory_space<vmem>>, %arg3: memref<784x512xbf16, #tpu.memory_space<vmem>>, %arg4: memref<1x512xf32, #tpu.memory_space<vmem>>, %arg5: memref<512x256xbf16, #tpu.memory_space<vmem>>, %arg6: memref<1x256xf32, #tpu.memory_space<vmem>>, %arg7: memref<128x512xbf16, #tpu.memory_space<vmem>>, %arg8: memref<1x512xf32, #tpu.memory_space<vmem>>, %arg9: memref<512x784xbf16, #tpu.memory_space<vmem>>, %arg10: memref<1x784xf32, #tpu.memory_space<vmem>>, %arg11: memref<16x784xf32, #tpu.memory_space<vmem>>, %arg12: memref<16x384xf32, #tpu.memory_space<vmem>>) attributes {dimension_semantics = [#tpu.dimension_semantics<parallel>], iteration_bounds = array<i64: 1>, scalar_prefetch = 0 : i64, scratch_operands = 0 : i64, tpu.core_type = #tpu.core_type<tc>, window_params = [{transform_indices = @transform_0, window_bounds = array<i64: 16, 784>}, {transform_indices = @transform_1, window_bounds = array<i64: 16, 128>}, {pipeline_mode = #tpu.pipeline_mode<synchronous>, transform_indices = @transform_2, window_bounds = array<i64: 784, 512>}, {pipeline_mode = #tpu.pipeline_mode<synchronous>, transform_indices = @transform_3, window_bounds = array<i64: 1, 512>}, {pipeline_mode = #tpu.pipeline_mode<synchronous>, transform_indices = @transform_4, window_bounds = array<i64: 512, 256>}, {pipeline_mode = #tpu.pipeline_mode<synchronous>, transform_indices = @transform_5, window_bounds = array<i64: 1, 256>}, {pipeline_mode = #tpu.pipeline_mode<synchronous>, transform_indices = @transform_6, window_bounds = array<i64: 128, 512>}, {pipeline_mode = #tpu.pipeline_mode<synchronous>, transform_indices = @transform_7, window_bounds = array<i64: 1, 512>}, {pipeline_mode = #tpu.pipeline_mode<synchronous>, transform_indices = @transform_8, window_bounds = array<i64: 512, 784>}, {pipeline_mode = #tpu.pipeline_mode<synchronous>, transform_indices = @transform_9, window_bounds = array<i64: 1, 784>}, {transform_indices = @transform_10, window_bounds = array<i64: 16, 784>}, {transform_indices = @transform_11, window_bounds = array<i64: 16, 384>}]} {
    %c0 = arith.constant 0 : index
    %c0_0 = arith.constant 0 : index
    %0 = vector.load %arg1[%c0, %c0_0] : memref<16x784xbf16, #tpu.memory_space<vmem>>, vector<16x784xbf16>
    %c0_1 = arith.constant 0 : index
    %c0_2 = arith.constant 0 : index
    %1 = vector.load %arg3[%c0_1, %c0_2] : memref<784x512xbf16, #tpu.memory_space<vmem>>, vector<784x512xbf16>
    %cst = arith.constant dense<0.000000e+00> : vector<16x512xf32>
    %2 = tpu.matmul %0, %1, %cst {dimension_numbers = #tpu.dot_dimension_numbers<[1], [0], [0], [1], [0, 0, 1, 1], [], []>} : vector<16x784xbf16>, vector<784x512xbf16>, vector<16x512xf32> -> vector<16x512xf32>
    %c0_3 = arith.constant 0 : index
    %c0_4 = arith.constant 0 : index
    %3 = vector.load %arg4[%c0_3, %c0_4] : memref<1x512xf32, #tpu.memory_space<vmem>>, vector<1x512xf32>
    %4 = vector.broadcast %3 : vector<1x512xf32> to vector<16x512xf32>
    %5 = arith.addf %2, %4 : vector<16x512xf32>
    %cst_5 = arith.constant 0.000000e+00 : f32
    %6 = vector.broadcast %cst_5 : f32 to vector<16x512xf32>
    %7 = arith.maximumf %5, %6 : vector<16x512xf32>
    %8 = arith.truncf %7 : vector<16x512xf32> to vector<16x512xbf16>
    %c0_6 = arith.constant 0 : index
    %c0_7 = arith.constant 0 : index
    %9 = vector.load %arg5[%c0_6, %c0_7] : memref<512x256xbf16, #tpu.memory_space<vmem>>, vector<512x256xbf16>
    %cst_8 = arith.constant dense<0.000000e+00> : vector<16x256xf32>
    %10 = tpu.matmul %8, %9, %cst_8 {dimension_numbers = #tpu.dot_dimension_numbers<[1], [0], [0], [1], [0, 0, 1, 1], [], []>} : vector<16x512xbf16>, vector<512x256xbf16>, vector<16x256xf32> -> vector<16x256xf32>
    %c0_9 = arith.constant 0 : index
    %c0_10 = arith.constant 0 : index
    %11 = vector.load %arg6[%c0_9, %c0_10] : memref<1x256xf32, #tpu.memory_space<vmem>>, vector<1x256xf32>
    %12 = vector.broadcast %11 : vector<1x256xf32> to vector<16x256xf32>
    %13 = arith.addf %10, %12 : vector<16x256xf32>
    %14 = vector.extract_strided_slice %13 {offsets = [0, 0], sizes = [16, 128], strides = [1, 1]} : vector<16x256xf32> to vector<16x128xf32>
    %15 = vector.extract_strided_slice %13 {offsets = [0, 128], sizes = [16, 128], strides = [1, 1]} : vector<16x256xf32> to vector<16x128xf32>
    %c0_11 = arith.constant 0 : index
    %c0_12 = arith.constant 0 : index
    %16 = vector.load %arg2[%c0_11, %c0_12] : memref<16x128xf32, #tpu.memory_space<vmem>>, vector<16x128xf32>
    %cst_13 = arith.constant 5.000000e-01 : f32
    %17 = vector.broadcast %cst_13 : f32 to vector<16x128xf32>
    %18 = arith.mulf %15, %17 : vector<16x128xf32>
    %19 = math.exp %18 : vector<16x128xf32>
    %20 = arith.mulf %16, %19 : vector<16x128xf32>
    %21 = arith.addf %20, %14 : vector<16x128xf32>
    %22 = arith.truncf %21 : vector<16x128xf32> to vector<16x128xbf16>
    %c0_14 = arith.constant 0 : index
    %c0_15 = arith.constant 0 : index
    %23 = vector.load %arg7[%c0_14, %c0_15] : memref<128x512xbf16, #tpu.memory_space<vmem>>, vector<128x512xbf16>
    %cst_16 = arith.constant dense<0.000000e+00> : vector<16x512xf32>
    %24 = tpu.matmul %22, %23, %cst_16 {dimension_numbers = #tpu.dot_dimension_numbers<[1], [0], [0], [1], [0, 0, 1, 1], [], []>} : vector<16x128xbf16>, vector<128x512xbf16>, vector<16x512xf32> -> vector<16x512xf32>
    %c0_17 = arith.constant 0 : index
    %c0_18 = arith.constant 0 : index
    %25 = vector.load %arg8[%c0_17, %c0_18] : memref<1x512xf32, #tpu.memory_space<vmem>>, vector<1x512xf32>
    %26 = vector.broadcast %25 : vector<1x512xf32> to vector<16x512xf32>
    %27 = arith.addf %24, %26 : vector<16x512xf32>
    %cst_19 = arith.constant 0.000000e+00 : f32
    %28 = vector.broadcast %cst_19 : f32 to vector<16x512xf32>
    %29 = arith.maximumf %27, %28 : vector<16x512xf32>
    %30 = arith.truncf %29 : vector<16x512xf32> to vector<16x512xbf16>
    %c0_20 = arith.constant 0 : index
    %c0_21 = arith.constant 0 : index
    %31 = vector.load %arg9[%c0_20, %c0_21] : memref<512x784xbf16, #tpu.memory_space<vmem>>, vector<512x784xbf16>
    %cst_22 = arith.constant dense<0.000000e+00> : vector<16x784xf32>
    %32 = tpu.matmul %30, %31, %cst_22 {dimension_numbers = #tpu.dot_dimension_numbers<[1], [0], [0], [1], [0, 0, 1, 1], [], []>} : vector<16x512xbf16>, vector<512x784xbf16>, vector<16x784xf32> -> vector<16x784xf32>
    %c0_23 = arith.constant 0 : index
    %c0_24 = arith.constant 0 : index
    %33 = vector.load %arg10[%c0_23, %c0_24] : memref<1x784xf32, #tpu.memory_space<vmem>>, vector<1x784xf32>
    %34 = vector.broadcast %33 : vector<1x784xf32> to vector<16x784xf32>
    %35 = arith.addf %32, %34 : vector<16x784xf32>
    %36 = arith.negf %35 : vector<16x784xf32>
    %37 = math.exp %36 : vector<16x784xf32>
    %cst_25 = arith.constant 1.000000e+00 : f32
    %38 = vector.broadcast %cst_25 : f32 to vector<16x784xf32>
    %39 = arith.addf %38, %37 : vector<16x784xf32>
    %40 = arith.divf %38, %39 : vector<16x784xf32>
    %c0_26 = arith.constant 0 : index
    %c0_27 = arith.constant 0 : index
    %41 = vector.load %arg11[%c0_26, %c0_27] : memref<16x784xf32, #tpu.memory_space<vmem>>, vector<16x784xf32>
    tpu.vector_store %arg11[%c0_26, %c0_27], %40 {strides = array<i32>} : memref<16x784xf32, #tpu.memory_space<vmem>>, vector<16x784xf32>,
    %c0_28 = arith.constant 0 : index
    %c0_29 = arith.constant 0 : index
    %42 = vector.load %arg12[%c0_28, %c0_29] : memref<16x384xf32, #tpu.memory_space<vmem>>, vector<16x128xf32>
    tpu.vector_store %arg12[%c0_28, %c0_29], %21 {strides = array<i32>} : memref<16x384xf32, #tpu.memory_space<vmem>>, vector<16x128xf32>,
    %c0_30 = arith.constant 0 : index
    %c128 = arith.constant 128 : index
    %43 = vector.load %arg12[%c0_30, %c128] : memref<16x384xf32, #tpu.memory_space<vmem>>, vector<16x256xf32>
    tpu.vector_store %arg12[%c0_30, %c128], %13 {strides = array<i32>} : memref<16x384xf32, #tpu.memory_space<vmem>>, vector<16x256xf32>,
    return
  }
  func.func @transform_0(%arg0: i32) -> (i32, i32) {
    %c0_i32 = arith.constant 0 : i32
    %c0_i32_0 = arith.constant 0 : i32
    return %arg0, %c0_i32 : i32, i32
  }
  func.func @transform_1(%arg0: i32) -> (i32, i32) {
    %c0_i32 = arith.constant 0 : i32
    %c0_i32_0 = arith.constant 0 : i32
    return %arg0, %c0_i32 : i32, i32
  }
  func.func @transform_2(%arg0: i32) -> (i32, i32) {
    %c0_i32 = arith.constant 0 : i32
    %c0_i32_0 = arith.constant 0 : i32
    %c0_i32_1 = arith.constant 0 : i32
    return %c0_i32, %c0_i32_0 : i32, i32
  }
  func.func @transform_3(%arg0: i32) -> (i32, i32) {
    %c0_i32 = arith.constant 0 : i32
    %c0_i32_0 = arith.constant 0 : i32
    %c0_i32_1 = arith.constant 0 : i32
    return %c0_i32, %c0_i32_0 : i32, i32
  }
  func.func @transform_4(%arg0: i32) -> (i32, i32) {
    %c0_i32 = arith.constant 0 : i32
    %c0_i32_0 = arith.constant 0 : i32
    %c0_i32_1 = arith.constant 0 : i32
    return %c0_i32, %c0_i32_0 : i32, i32
  }
  func.func @transform_5(%arg0: i32) -> (i32, i32) {
    %c0_i32 = arith.constant 0 : i32
    %c0_i32_0 = arith.constant 0 : i32
    %c0_i32_1 = arith.constant 0 : i32
    return %c0_i32, %c0_i32_0 : i32, i32
  }
  func.func @transform_6(%arg0: i32) -> (i32, i32) {
    %c0_i32 = arith.constant 0 : i32
    %c0_i32_0 = arith.constant 0 : i32
    %c0_i32_1 = arith.constant 0 : i32
    return %c0_i32, %c0_i32_0 : i32, i32
  }
  func.func @transform_7(%arg0: i32) -> (i32, i32) {
    %c0_i32 = arith.constant 0 : i32
    %c0_i32_0 = arith.constant 0 : i32
    %c0_i32_1 = arith.constant 0 : i32
    return %c0_i32, %c0_i32_0 : i32, i32
  }
  func.func @transform_8(%arg0: i32) -> (i32, i32) {
    %c0_i32 = arith.constant 0 : i32
    %c0_i32_0 = arith.constant 0 : i32
    %c0_i32_1 = arith.constant 0 : i32
    return %c0_i32, %c0_i32_0 : i32, i32
  }
  func.func @transform_9(%arg0: i32) -> (i32, i32) {
    %c0_i32 = arith.constant 0 : i32
    %c0_i32_0 = arith.constant 0 : i32
    %c0_i32_1 = arith.constant 0 : i32
    return %c0_i32, %c0_i32_0 : i32, i32
  }
  func.func @transform_10(%arg0: i32) -> (i32, i32) {
    %c0_i32 = arith.constant 0 : i32
    %c0_i32_0 = arith.constant 0 : i32
    return %arg0, %c0_i32 : i32, i32
  }
  func.func @transform_11(%arg0: i32) -> (i32, i32) {
    %c0_i32 = arith.constant 0 : i32
    %c0_i32_0 = arith.constant 0 : i32
    return %arg0, %c0_i32 : i32, i32
  }
}

</mosaic_0001>

<llo_original>
// kernel: vae_forward.1
$region0: #{vae_forward.1}
  #allocation0 [shape = 'u32[]', space=smem, size = 0x4, offset = 0x4, fixed_abs, tag = 'smem constant byte address 0x4 - core index']
  #allocation1 [shape = 'u32[72,128]{1,0:T(1,128)}', space=vmem, size = 0x9000, scoped, tag = 'internal scratch']
  %s0 = inlined_call_operand.vmem [shape: bf16[16,784], index: 0, kind: input, shape index: {}]
  %s1 = inlined_call_operand.vmem [shape: f32[16,128], index: 1, kind: input, shape index: {}]
  %s2 = inlined_call_operand.vmem [shape: bf16[784,512], index: 2, kind: input, shape index: {}]
  %s3 = inlined_call_operand.vmem [shape: f32[1,512], index: 3, kind: input, shape index: {}]
  %s4 = inlined_call_operand.vmem [shape: bf16[512,256], index: 4, kind: input, shape index: {}]
  %s5 = inlined_call_operand.vmem [shape: f32[1,256], index: 5, kind: input, shape index: {}]
  %s6 = inlined_call_operand.vmem [shape: bf16[128,512], index: 6, kind: input, shape index: {}]
  %s7 = inlined_call_operand.vmem [shape: f32[1,512], index: 7, kind: input, shape index: {}]
  %s8 = inlined_call_operand.vmem [shape: bf16[512,784], index: 8, kind: input, shape index: {}]
  %s9 = inlined_call_operand.vmem [shape: f32[1,784], index: 9, kind: input, shape index: {}]
  %s10 = inlined_call_operand.vmem [shape: f32[16,784], index: 10, kind: output, shape index: {0}]
  %s11 = inlined_call_operand.vmem [shape: f32[16,384], index: 11, kind: output, shape index: {1}]
  %12 = xla_tuple %s10, %s11
  %s13 = sld [smem:[#allocation0]]
  $region58: #{vae_forward.1} parent=0
    _
  %s15 = ssub.s32 1, %s13
  %s16 = scalar_select 0, %s15, %s13
  // Predicated region
  $region2: #{vae_forward.1} parent=0 // pred_check
    _
  $region3: #{vae_forward.1} parent=0 // pred_check_branch
    %18 = sbr.rel (0) target = $region5
  $region4: #{vae_forward.1} parent=0 // pred_region
    _
  $region5: #{vae_forward.1} parent=0 // pred_fallthru
    _
  // Predicated region
  $region6: #{vae_forward.1} parent=0 // pred_check
    _
  $region7: #{vae_forward.1} parent=0 // pred_check_branch
    %20 = sbr.rel (0) target = $region9
  $region8: #{vae_forward.1} parent=0 // pred_region
    _
  $region9: #{vae_forward.1} parent=0 // pred_fallthru
    _
  // Predicated region
  $region10: #{vae_forward.1} parent=0 // pred_check
    _
  $region11: #{vae_forward.1} parent=0 // pred_check_branch
    %22 = sbr.rel (0) target = $region13
  $region12: #{vae_forward.1} parent=0 // pred_region
    _
  $region13: #{vae_forward.1} parent=0 // pred_fallthru
    _
  // Predicated region
  $region14: #{vae_forward.1} parent=0 // pred_check
    _
  $region15: #{vae_forward.1} parent=0 // pred_check_branch
    %24 = sbr.rel (0) target = $region17
  $region16: #{vae_forward.1} parent=0 // pred_region
    _
  $region17: #{vae_forward.1} parent=0 // pred_fallthru
    _
  // Predicated region
  $region18: #{vae_forward.1} parent=0 // pred_check
    _
  $region19: #{vae_forward.1} parent=0 // pred_check_branch
    %26 = sbr.rel (0) target = $region21
  $region20: #{vae_forward.1} parent=0 // pred_region
    _
  $region21: #{vae_forward.1} parent=0 // pred_fallthru
    _
  // Predicated region
  $region22: #{vae_forward.1} parent=0 // pred_check
    _
  $region23: #{vae_forward.1} parent=0 // pred_check_branch
    %28 = sbr.rel (0) target = $region25
  $region24: #{vae_forward.1} parent=0 // pred_region
    _
  $region25: #{vae_forward.1} parent=0 // pred_fallthru
    _
  // Predicated region
  $region26: #{vae_forward.1} parent=0 // pred_check
    _
  $region27: #{vae_forward.1} parent=0 // pred_check_branch
    %30 = sbr.rel (0) target = $region29
  $region28: #{vae_forward.1} parent=0 // pred_region
    _
  $region29: #{vae_forward.1} parent=0 // pred_fallthru
    _
  // Predicated region
  $region30: #{vae_forward.1} parent=0 // pred_check
    _
  $region31: #{vae_forward.1} parent=0 // pred_check_branch
    %32 = sbr.rel (0) target = $region33
  $region32: #{vae_forward.1} parent=0 // pred_region
    _
  $region33: #{vae_forward.1} parent=0 // pred_fallthru
    _
  // Predicated region
  $region34: #{vae_forward.1} parent=0 // pred_check
    _
  $region35: #{vae_forward.1} parent=0 // pred_check_branch
    %34 = sbr.rel (0) target = $region37
  $region36: #{vae_forward.1} parent=0 // pred_region
    _
  $region37: #{vae_forward.1} parent=0 // pred_fallthru
    _
  // Predicated region
  $region38: #{vae_forward.1} parent=0 // pred_check
    _
  $region39: #{vae_forward.1} parent=0 // pred_check_branch
    %36 = sbr.rel (0) target = $region41
  $region40: #{vae_forward.1} parent=0 // pred_region
    _
  $region41: #{vae_forward.1} parent=0 // pred_fallthru
    _
  %v38 = vld [vmem:[%s0] sm:$0xff]
  %v39 = vld [vmem:[%s0 + $0x8] sm:$0xff]
  %v40 = vld [vmem:[%s0 + $0x10] sm:$0xff]
  %v41 = vld [vmem:[%s0 + $0x18] sm:$0xf]
  %v42 = vld [vmem:[%s0 + $0x1c] sm:$0xff]
  %v43 = vld [vmem:[%s0 + $0x24] sm:$0xff]
  %v44 = vld [vmem:[%s0 + $0x2c] sm:$0xff]
  %v45 = vld [vmem:[%s0 + $0x34] sm:$0xf]
  %v46 = vld [vmem:[%s2] sm:$0xff]
  %v47 = vld [vmem:[%s2 + $0x8] sm:$0xff]
  %v48 = vld [vmem:[%s2 + $0x10] sm:$0xff]
  %v49 = vld [vmem:[%s2 + $0x18] sm:$0xff]
  %v50 = vld [vmem:[%s2 + $0x20] sm:$0xff]
  %v51 = vld [vmem:[%s2 + $0x28] sm:$0xff]
  %v52 = vld [vmem:[%s2 + $0x30] sm:$0xff]
  %v53 = vld [vmem:[%s2 + $0x38] sm:$0xff]
  %v54 = vld [vmem:[%s2 + $0x40] sm:$0xff]
  %v55 = vld [vmem:[%s2 + $0x48] sm:$0xff]
  %v56 = vld [vmem:[%s2 + $0x50] sm:$0xff]
  %v57 = vld [vmem:[%s2 + $0x58] sm:$0xff]
  %v58 = vld [vmem:[%s2 + $0x60] sm:$0xff]
  %v59 = vld [vmem:[%s2 + $0x68] sm:$0xff]
  %v60 = vld [vmem:[%s2 + $0x70] sm:$0xff]
  %v61 = vld [vmem:[%s2 + $0x78] sm:$0xff]
  %v62 = vld [vmem:[%s2 + $0x80] sm:$0xff]
  %v63 = vld [vmem:[%s2 + $0x88] sm:$0xff]
  %v64 = vld [vmem:[%s2 + $0x90] sm:$0xff]
  %v65 = vld [vmem:[%s2 + $0x98] sm:$0xff]
  %v66 = vld [vmem:[%s2 + $0xa0] sm:$0xff]
  %v67 = vld [vmem:[%s2 + $0xa8] sm:$0xff]
  %v68 = vld [vmem:[%s2 + $0xb0] sm:$0xff]
  %v69 = vld [vmem:[%s2 + $0xb8] sm:$0xff]
  %v70 = vld [vmem:[%s2 + $0xc0] sm:$0xff]
  %v71 = vld [vmem:[%s2 + $0xc8] sm:$0xff]
  %v72 = vld [vmem:[%s2 + $0xd0] sm:$0xff]
  %v73 = vld [vmem:[%s2 + $0xd8] sm:$0xff]
  %v74 = vld [vmem:[%s2 + $0xe0] sm:$0xff]
  %v75 = vld [vmem:[%s2 + $0xe8] sm:$0xff]
  %v76 = vld [vmem:[%s2 + $0xf0] sm:$0xff]
  %v77 = vld [vmem:[%s2 + $0xf8] sm:$0xff]
  %v78 = vld [vmem:[%s2 + $0x100] sm:$0xff]
  %v79 = vld [vmem:[%s2 + $0x108] sm:$0xff]
  %v80 = vld [vmem:[%s2 + $0x110] sm:$0xff]
  %v81 = vld [vmem:[%s2 + $0x118] sm:$0xff]
  %v82 = vld [vmem:[%s2 + $0x120] sm:$0xff]
  %v83 = vld [vmem:[%s2 + $0x128] sm:$0xff]
  %v84 = vld [vmem:[%s2 + $0x130] sm:$0xff]
  %v85 = vld [vmem:[%s2 + $0x138] sm:$0xff]
  %v86 = vld [vmem:[%s2 + $0x140] sm:$0xff]
  %v87 = vld [vmem:[%s2 + $0x148] sm:$0xff]
  %v88 = vld [vmem:[%s2 + $0x150] sm:$0xff]
  %v89 = vld [vmem:[%s2 + $0x158] sm:$0xff]
  %v90 = vld [vmem:[%s2 + $0x160] sm:$0xff]
  %v91 = vld [vmem:[%s2 + $0x168] sm:$0xff]
  %v92 = vld [vmem:[%s2 + $0x170] sm:$0xff]
  %v93 = vld [vmem:[%s2 + $0x178] sm:$0xff]
  %v94 = vld [vmem:[%s2 + $0x180] sm:$0xff]
  %v95 = vld [vmem:[%s2 + $0x188] sm:$0xff]
  %v96 = vld [vmem:[%s2 + $0x190] sm:$0xff]
  %v97 = vld [vmem:[%s2 + $0x198] sm:$0xff]
  %v98 = vld [vmem:[%s2 + $0x1a0] sm:$0xff]
  %v99 = vld [vmem:[%s2 + $0x1a8] sm:$0xff]
  %v100 = vld [vmem:[%s2 + $0x1b0] sm:$0xff]
  %v101 = vld [vmem:[%s2 + $0x1b8] sm:$0xff]
  %v102 = vld [vmem:[%s2 + $0x1c0] sm:$0xff]
  %v103 = vld [vmem:[%s2 + $0x1c8] sm:$0xff]
  %v104 = vld [vmem:[%s2 + $0x1d0] sm:$0xff]
  %v105 = vld [vmem:[%s2 + $0x1d8] sm:$0xff]
  %v106 = vld [vmem:[%s2 + $0x1e0] sm:$0xff]
  %v107 = vld [vmem:[%s2 + $0x1e8] sm:$0xff]
  %v108 = vld [vmem:[%s2 + $0x1f0] sm:$0xff]
  %v109 = vld [vmem:[%s2 + $0x1f8] sm:$0xff]
  %v110 = vld [vmem:[%s2 + $0x200] sm:$0xff]
  %v111 = vld [vmem:[%s2 + $0x208] sm:$0xff]
  %v112 = vld [vmem:[%s2 + $0x210] sm:$0xff]
  %v113 = vld [vmem:[%s2 + $0x218] sm:$0xff]
  %v114 = vld [vmem:[%s2 + $0x220] sm:$0xff]
  %v115 = vld [vmem:[%s2 + $0x228] sm:$0xff]
  %v116 = vld [vmem:[%s2 + $0x230] sm:$0xff]
  %v117 = vld [vmem:[%s2 + $0x238] sm:$0xff]
  %v118 = vld [vmem:[%s2 + $0x240] sm:$0xff]
  %v119 = vld [vmem:[%s2 + $0x248] sm:$0xff]
  %v120 = vld [vmem:[%s2 + $0x250] sm:$0xff]
  %v121 = vld [vmem:[%s2 + $0x258] sm:$0xff]
  %v122 = vld [vmem:[%s2 + $0x260] sm:$0xff]
  %v123 = vld [vmem:[%s2 + $0x268] sm:$0xff]
  %v124 = vld [vmem:[%s2 + $0x270] sm:$0xff]
  %v125 = vld [vmem:[%s2 + $0x278] sm:$0xff]
  %v126 = vld [vmem:[%s2 + $0x280] sm:$0xff]
  %v127 = vld [vmem:[%s2 + $0x288] sm:$0xff]
  %v128 = vld [vmem:[%s2 + $0x290] sm:$0xff]
  %v129 = vld [vmem:[%s2 + $0x298] sm:$0xff]
  %v130 = vld [vmem:[%s2 + $0x2a0] sm:$0xff]
  %v131 = vld [vmem:[%s2 + $0x2a8] sm:$0xff]
  %v132 = vld [vmem:[%s2 + $0x2b0] sm:$0xff]
  %v133 = vld [vmem:[%s2 + $0x2b8] sm:$0xff]
  %v134 = vld [vmem:[%s2 + $0x2c0] sm:$0xff]
  %v135 = vld [vmem:[%s2 + $0x2c8] sm:$0xff]
  %v136 = vld [vmem:[%s2 + $0x2d0] sm:$0xff]
  %v137 = vld [vmem:[%s2 + $0x2d8] sm:$0xff]
  %v138 = vld [vmem:[%s2 + $0x2e0] sm:$0xff]
  %v139 = vld [vmem:[%s2 + $0x2e8] sm:$0xff]
  %v140 = vld [vmem:[%s2 + $0x2f0] sm:$0xff]
  %v141 = vld [vmem:[%s2 + $0x2f8] sm:$0xff]
  %v142 = vld [vmem:[%s2 + $0x300] sm:$0xff]
  %v143 = vld [vmem:[%s2 + $0x308] sm:$0xff]
  %v144 = vld [vmem:[%s2 + $0x310] sm:$0xff]
  %v145 = vld [vmem:[%s2 + $0x318] sm:$0xff]
  %v146 = vld [vmem:[%s2 + $0x320] sm:$0xff]
  %v147 = vld [vmem:[%s2 + $0x328] sm:$0xff]
  %v148 = vld [vmem:[%s2 + $0x330] sm:$0xff]
  %v149 = vld [vmem:[%s2 + $0x338] sm:$0xff]
  %v150 = vld [vmem:[%s2 + $0x340] sm:$0xff]
  %v151 = vld [vmem:[%s2 + $0x348] sm:$0xff]
  %v152 = vld [vmem:[%s2 + $0x350] sm:$0xff]
  %v153 = vld [vmem:[%s2 + $0x358] sm:$0xff]
  %v154 = vld [vmem:[%s2 + $0x360] sm:$0xff]
  %v155 = vld [vmem:[%s2 + $0x368] sm:$0xff]
  %v156 = vld [vmem:[%s2 + $0x370] sm:$0xff]
  %v157 = vld [vmem:[%s2 + $0x378] sm:$0xff]
  %v158 = vld [vmem:[%s2 + $0x380] sm:$0xff]
  %v159 = vld [vmem:[%s2 + $0x388] sm:$0xff]
  %v160 = vld [vmem:[%s2 + $0x390] sm:$0xff]
  %v161 = vld [vmem:[%s2 + $0x398] sm:$0xff]
  %v162 = vld [vmem:[%s2 + $0x3a0] sm:$0xff]
  %v163 = vld [vmem:[%s2 + $0x3a8] sm:$0xff]
  %v164 = vld [vmem:[%s2 + $0x3b0] sm:$0xff]
  %v165 = vld [vmem:[%s2 + $0x3b8] sm:$0xff]
  %v166 = vld [vmem:[%s2 + $0x3c0] sm:$0xff]
  %v167 = vld [vmem:[%s2 + $0x3c8] sm:$0xff]
  %v168 = vld [vmem:[%s2 + $0x3d0] sm:$0xff]
  %v169 = vld [vmem:[%s2 + $0x3d8] sm:$0xff]
  %v170 = vld [vmem:[%s2 + $0x3e0] sm:$0xff]
  %v171 = vld [vmem:[%s2 + $0x3e8] sm:$0xff]
  %v172 = vld [vmem:[%s2 + $0x3f0] sm:$0xff]
  %v173 = vld [vmem:[%s2 + $0x3f8] sm:$0xff]
  %v174 = vld [vmem:[%s2 + $0x400] sm:$0xff]
  %v175 = vld [vmem:[%s2 + $0x408] sm:$0xff]
  %v176 = vld [vmem:[%s2 + $0x410] sm:$0xff]
  %v177 = vld [vmem:[%s2 + $0x418] sm:$0xff]
  %v178 = vld [vmem:[%s2 + $0x420] sm:$0xff]
  %v179 = vld [vmem:[%s2 + $0x428] sm:$0xff]
  %v180 = vld [vmem:[%s2 + $0x430] sm:$0xff]
  %v181 = vld [vmem:[%s2 + $0x438] sm:$0xff]
  %v182 = vld [vmem:[%s2 + $0x440] sm:$0xff]
  %v183 = vld [vmem:[%s2 + $0x448] sm:$0xff]
  %v184 = vld [vmem:[%s2 + $0x450] sm:$0xff]
  %v185 = vld [vmem:[%s2 + $0x458] sm:$0xff]
  %v186 = vld [vmem:[%s2 + $0x460] sm:$0xff]
  %v187 = vld [vmem:[%s2 + $0x468] sm:$0xff]
  %v188 = vld [vmem:[%s2 + $0x470] sm:$0xff]
  %v189 = vld [vmem:[%s2 + $0x478] sm:$0xff]
  %v190 = vld [vmem:[%s2 + $0x480] sm:$0xff]
  %v191 = vld [vmem:[%s2 + $0x488] sm:$0xff]
  %v192 = vld [vmem:[%s2 + $0x490] sm:$0xff]
  %v193 = vld [vmem:[%s2 + $0x498] sm:$0xff]
  %v194 = vld [vmem:[%s2 + $0x4a0] sm:$0xff]
  %v195 = vld [vmem:[%s2 + $0x4a8] sm:$0xff]
  %v196 = vld [vmem:[%s2 + $0x4b0] sm:$0xff]
  %v197 = vld [vmem:[%s2 + $0x4b8] sm:$0xff]
  %v198 = vld [vmem:[%s2 + $0x4c0] sm:$0xff]
  %v199 = vld [vmem:[%s2 + $0x4c8] sm:$0xff]
  %v200 = vld [vmem:[%s2 + $0x4d0] sm:$0xff]
  %v201 = vld [vmem:[%s2 + $0x4d8] sm:$0xff]
  %v202 = vld [vmem:[%s2 + $0x4e0] sm:$0xff]
  %v203 = vld [vmem:[%s2 + $0x4e8] sm:$0xff]
  %v204 = vld [vmem:[%s2 + $0x4f0] sm:$0xff]
  %v205 = vld [vmem:[%s2 + $0x4f8] sm:$0xff]
  %v206 = vld [vmem:[%s2 + $0x500] sm:$0xff]
  %v207 = vld [vmem:[%s2 + $0x508] sm:$0xff]
  %v208 = vld [vmem:[%s2 + $0x510] sm:$0xff]
  %v209 = vld [vmem:[%s2 + $0x518] sm:$0xff]
  %v210 = vld [vmem:[%s2 + $0x520] sm:$0xff]
  %v211 = vld [vmem:[%s2 + $0x528] sm:$0xff]
  %v212 = vld [vmem:[%s2 + $0x530] sm:$0xff]
  %v213 = vld [vmem:[%s2 + $0x538] sm:$0xff]
  %v214 = vld [vmem:[%s2 + $0x540] sm:$0xff]
  %v215 = vld [vmem:[%s2 + $0x548] sm:$0xff]
  %v216 = vld [vmem:[%s2 + $0x550] sm:$0xff]
  %v217 = vld [vmem:[%s2 + $0x558] sm:$0xff]
  %v218 = vld [vmem:[%s2 + $0x560] sm:$0xff]
  %v219 = vld [vmem:[%s2 + $0x568] sm:$0xff]
  %v220 = vld [vmem:[%s2 + $0x570] sm:$0xff]
  %v221 = vld [vmem:[%s2 + $0x578] sm:$0xff]
  %v222 = vld [vmem:[%s2 + $0x580] sm:$0xff]
  %v223 = vld [vmem:[%s2 + $0x588] sm:$0xff]
  %v224 = vld [vmem:[%s2 + $0x590] sm:$0xff]
  %v225 = vld [vmem:[%s2 + $0x598] sm:$0xff]
  %v226 = vld [vmem:[%s2 + $0x5a0] sm:$0xff]
  %v227 = vld [vmem:[%s2 + $0x5a8] sm:$0xff]
  %v228 = vld [vmem:[%s2 + $0x5b0] sm:$0xff]
  %v229 = vld [vmem:[%s2 + $0x5b8] sm:$0xff]
  %v230 = vld [vmem:[%s2 + $0x5c0] sm:$0xff]
  %v231 = vld [vmem:[%s2 + $0x5c8] sm:$0xff]
  %v232 = vld [vmem:[%s2 + $0x5d0] sm:$0xff]
  %v233 = vld [vmem:[%s2 + $0x5d8] sm:$0xff]
  %v234 = vld [vmem:[%s2 + $0x5e0] sm:$0xff]
  %v235 = vld [vmem:[%s2 + $0x5e8] sm:$0xff]
  %v236 = vld [vmem:[%s2 + $0x5f0] sm:$0xff]
  %v237 = vld [vmem:[%s2 + $0x5f8] sm:$0xff]
  %v238 = vld [vmem:[%s2 + $0x600] sm:$0xff]
  %v239 = vld [vmem:[%s2 + $0x608] sm:$0xff]
  %v240 = vld [vmem:[%s2 + $0x610] sm:$0xff]
  %v241 = vld [vmem:[%s2 + $0x618] sm:$0xff]
  %v242 = vld [vmem:[%s3] sm:$0xf]
  %v244 = vperm.slane %v242, 0
  %v245 = vperm.slane %v242, 1
  %v246 = vperm.slane %v242, 2
  %v247 = vperm.slane %v242, 3
  %v260 = vunpack.c.l.b16 %v38
  %v261 = vunpack.c.h.b16 %v38
  %v262 = vunpack.c.l.b16 %v39
  %v263 = vunpack.c.h.b16 %v39
  %v264 = vunpack.c.l.b16 %v40
  %v265 = vunpack.c.h.b16 %v40
  %v266 = vunpack.c.l.b16 %v41
  %v267 = vunpack.c.l.b16 %v42
  %v268 = vunpack.c.h.b16 %v42
  %v269 = vunpack.c.l.b16 %v43
  %v270 = vunpack.c.h.b16 %v43
  %v271 = vunpack.c.l.b16 %v44
  %v272 = vunpack.c.h.b16 %v44
  %v273 = vunpack.c.l.b16 %v45
  %v274 = vpack.c.b16 %v267, %v260
  %v275 = vpack.c.b16 %v268, %v261
  %v276 = vpack.c.b16 %v269, %v262
  %v277 = vpack.c.b16 %v270, %v263
  %v278 = vpack.c.b16 %v271, %v264
  %v279 = vpack.c.b16 %v272, %v265
  %v280 = vpack.c.b16 %v273, %v266
  %v483 = vunpack.c.l.b16 %v46
  %v484 = vunpack.c.h.b16 %v46
  %v485 = vunpack.c.l.b16 %v47
  %v486 = vunpack.c.h.b16 %v47
  %v487 = vunpack.c.l.b16 %v48
  %v488 = vunpack.c.h.b16 %v48
  %v489 = vunpack.c.l.b16 %v49
  %v490 = vunpack.c.h.b16 %v49
  %v491 = vunpack.c.l.b16 %v50
  %v492 = vunpack.c.h.b16 %v50
  %v493 = vunpack.c.l.b16 %v51
  %v494 = vunpack.c.h.b16 %v51
  %v495 = vunpack.c.l.b16 %v52
  %v496 = vunpack.c.h.b16 %v52
  %v497 = vunpack.c.l.b16 %v53
  %v498 = vunpack.c.h.b16 %v53
  %v499 = vunpack.c.l.b16 %v54
  %v500 = vunpack.c.h.b16 %v54
  %v501 = vunpack.c.l.b16 %v55
  %v502 = vunpack.c.h.b16 %v55
  %v503 = vunpack.c.l.b16 %v56
  %v504 = vunpack.c.h.b16 %v56
  %v505 = vunpack.c.l.b16 %v57
  %v506 = vunpack.c.h.b16 %v57
  %v507 = vunpack.c.l.b16 %v58
  %v508 = vunpack.c.h.b16 %v58
  %v509 = vunpack.c.l.b16 %v59
  %v510 = vunpack.c.h.b16 %v59
  %v511 = vunpack.c.l.b16 %v60
  %v512 = vunpack.c.h.b16 %v60
  %v513 = vunpack.c.l.b16 %v61
  %v514 = vunpack.c.h.b16 %v61
  %v515 = vunpack.c.l.b16 %v62
  %v516 = vunpack.c.h.b16 %v62
  %v517 = vunpack.c.l.b16 %v63
  %v518 = vunpack.c.h.b16 %v63
  %v519 = vunpack.c.l.b16 %v64
  %v520 = vunpack.c.h.b16 %v64
  %v521 = vunpack.c.l.b16 %v65
  %v522 = vunpack.c.h.b16 %v65
  %v523 = vunpack.c.l.b16 %v66
  %v524 = vunpack.c.h.b16 %v66
  %v525 = vunpack.c.l.b16 %v67
  %v526 = vunpack.c.h.b16 %v67
  %v527 = vunpack.c.l.b16 %v68
  %v528 = vunpack.c.h.b16 %v68
  %v529 = vunpack.c.l.b16 %v69
  %v530 = vunpack.c.h.b16 %v69
  %v531 = vunpack.c.l.b16 %v70
  %v532 = vunpack.c.h.b16 %v70
  %v533 = vunpack.c.l.b16 %v71
  %v534 = vunpack.c.h.b16 %v71
  %v535 = vunpack.c.l.b16 %v72
  %v536 = vunpack.c.h.b16 %v72
  %v537 = vunpack.c.l.b16 %v73
  %v538 = vunpack.c.h.b16 %v73
  %v539 = vunpack.c.l.b16 %v74
  %v540 = vunpack.c.h.b16 %v74
  %v541 = vunpack.c.l.b16 %v75
  %v542 = vunpack.c.h.b16 %v75
  %v543 = vunpack.c.l.b16 %v76
  %v544 = vunpack.c.h.b16 %v76
  %v545 = vunpack.c.l.b16 %v77
  %v546 = vunpack.c.h.b16 %v77
  %v547 = vunpack.c.l.b16 %v78
  %v548 = vunpack.c.h.b16 %v78
  %v549 = vunpack.c.l.b16 %v79
  %v550 = vunpack.c.h.b16 %v79
  %v551 = vunpack.c.l.b16 %v80
  %v552 = vunpack.c.h.b16 %v80
  %v553 = vunpack.c.l.b16 %v81
  %v554 = vunpack.c.h.b16 %v81
  %v555 = vunpack.c.l.b16 %v82
  %v556 = vunpack.c.h.b16 %v82
  %v557 = vunpack.c.l.b16 %v83
  %v558 = vunpack.c.h.b16 %v83
  %v559 = vunpack.c.l.b16 %v84
  %v560 = vunpack.c.h.b16 %v84
  %v561 = vunpack.c.l.b16 %v85
  %v562 = vunpack.c.h.b16 %v85
  %v563 = vunpack.c.l.b16 %v86
  %v564 = vunpack.c.h.b16 %v86
  %v565 = vunpack.c.l.b16 %v87
  %v566 = vunpack.c.h.b16 %v87
  %v567 = vunpack.c.l.b16 %v88
  %v568 = vunpack.c.h.b16 %v88
  %v569 = vunpack.c.l.b16 %v89
  %v570 = vunpack.c.h.b16 %v89
  %v571 = vunpack.c.l.b16 %v90
  %v572 = vunpack.c.h.b16 %v90
  %v573 = vunpack.c.l.b16 %v91
  %v574 = vunpack.c.h.b16 %v91
  %v575 = vunpack.c.l.b16 %v92
  %v576 = vunpack.c.h.b16 %v92
  %v577 = vunpack.c.l.b16 %v93
  %v578 = vunpack.c.h.b16 %v93
  %v579 = vunpack.c.l.b16 %v94
  %v580 = vunpack.c.h.b16 %v94
  %v581 = vunpack.c.l.b16 %v95
  %v582 = vunpack.c.h.b16 %v95
  %v583 = vunpack.c.l.b16 %v96
  %v584 = vunpack.c.h.b16 %v96
  %v585 = vunpack.c.l.b16 %v97
  %v586 = vunpack.c.h.b16 %v97
  %v587 = vunpack.c.l.b16 %v98
  %v588 = vunpack.c.h.b16 %v98
  %v589 = vunpack.c.l.b16 %v99
  %v590 = vunpack.c.h.b16 %v99
  %v591 = vunpack.c.l.b16 %v100
  %v592 = vunpack.c.h.b16 %v100
  %v593 = vunpack.c.l.b16 %v101
  %v594 = vunpack.c.h.b16 %v101
  %v595 = vunpack.c.l.b16 %v102
  %v596 = vunpack.c.h.b16 %v102
  %v597 = vunpack.c.l.b16 %v103
  %v598 = vunpack.c.h.b16 %v103
  %v599 = vunpack.c.l.b16 %v104
  %v600 = vunpack.c.h.b16 %v104
  %v601 = vunpack.c.l.b16 %v105
  %v602 = vunpack.c.h.b16 %v105
  %v603 = vunpack.c.l.b16 %v106
  %v604 = vunpack.c.h.b16 %v106
  %v605 = vunpack.c.l.b16 %v107
  %v606 = vunpack.c.h.b16 %v107
  %v607 = vunpack.c.l.b16 %v108
  %v608 = vunpack.c.h.b16 %v108
  %v609 = vunpack.c.l.b16 %v109
  %v610 = vunpack.c.h.b16 %v109
  %v611 = vunpack.c.l.b16 %v110
  %v612 = vunpack.c.h.b16 %v110
  %v613 = vunpack.c.l.b16 %v111
  %v614 = vunpack.c.h.b16 %v111
  %v615 = vunpack.c.l.b16 %v112
  %v616 = vunpack.c.h.b16 %v112
  %v617 = vunpack.c.l.b16 %v113
  %v618 = vunpack.c.h.b16 %v113
  %v619 = vunpack.c.l.b16 %v114
  %v620 = vunpack.c.h.b16 %v114
  %v621 = vunpack.c.l.b16 %v115
  %v622 = vunpack.c.h.b16 %v115
  %v623 = vunpack.c.l.b16 %v116
  %v624 = vunpack.c.h.b16 %v116
  %v625 = vunpack.c.l.b16 %v117
  %v626 = vunpack.c.h.b16 %v117
  %v627 = vunpack.c.l.b16 %v118
  %v628 = vunpack.c.h.b16 %v118
  %v629 = vunpack.c.l.b16 %v119
  %v630 = vunpack.c.h.b16 %v119
  %v631 = vunpack.c.l.b16 %v120
  %v632 = vunpack.c.h.b16 %v120
  %v633 = vunpack.c.l.b16 %v121
  %v634 = vunpack.c.h.b16 %v121
  %v635 = vunpack.c.l.b16 %v122
  %v636 = vunpack.c.h.b16 %v122
  %v637 = vunpack.c.l.b16 %v123
  %v638 = vunpack.c.h.b16 %v123
  %v639 = vunpack.c.l.b16 %v124
  %v640 = vunpack.c.h.b16 %v124
  %v641 = vunpack.c.l.b16 %v125
  %v642 = vunpack.c.h.b16 %v125
  %v643 = vunpack.c.l.b16 %v126
  %v644 = vunpack.c.h.b16 %v126
  %v645 = vunpack.c.l.b16 %v127
  %v646 = vunpack.c.h.b16 %v127
  %v647 = vunpack.c.l.b16 %v128
  %v648 = vunpack.c.h.b16 %v128
  %v649 = vunpack.c.l.b16 %v129
  %v650 = vunpack.c.h.b16 %v129
  %v651 = vunpack.c.l.b16 %v130
  %v652 = vunpack.c.h.b16 %v130
  %v653 = vunpack.c.l.b16 %v131
  %v654 = vunpack.c.h.b16 %v131
  %v655 = vunpack.c.l.b16 %v132
  %v656 = vunpack.c.h.b16 %v132
  %v657 = vunpack.c.l.b16 %v133
  %v658 = vunpack.c.h.b16 %v133
  %v659 = vunpack.c.l.b16 %v134
  %v660 = vunpack.c.h.b16 %v134
  %v661 = vunpack.c.l.b16 %v135
  %v662 = vunpack.c.h.b16 %v135
  %v663 = vunpack.c.l.b16 %v136
  %v664 = vunpack.c.h.b16 %v136
  %v665 = vunpack.c.l.b16 %v137
  %v666 = vunpack.c.h.b16 %v137
  %v667 = vunpack.c.l.b16 %v138
  %v668 = vunpack.c.h.b16 %v138
  %v669 = vunpack.c.l.b16 %v139
  %v670 = vunpack.c.h.b16 %v139
  %v671 = vunpack.c.l.b16 %v140
  %v672 = vunpack.c.h.b16 %v140
  %v673 = vunpack.c.l.b16 %v141
  %v674 = vunpack.c.h.b16 %v141
  %v675 = vunpack.c.l.b16 %v142
  %v676 = vunpack.c.h.b16 %v142
  %v677 = vunpack.c.l.b16 %v143
  %v678 = vunpack.c.h.b16 %v143
  %v679 = vunpack.c.l.b16 %v144
  %v680 = vunpack.c.h.b16 %v144
  %v681 = vunpack.c.l.b16 %v145
  %v682 = vunpack.c.h.b16 %v145
  %v683 = vunpack.c.l.b16 %v146
  %v684 = vunpack.c.h.b16 %v146
  %v685 = vunpack.c.l.b16 %v147
  %v686 = vunpack.c.h.b16 %v147
  %v687 = vunpack.c.l.b16 %v148
  %v688 = vunpack.c.h.b16 %v148
  %v689 = vunpack.c.l.b16 %v149
  %v690 = vunpack.c.h.b16 %v149
  %v691 = vunpack.c.l.b16 %v150
  %v692 = vunpack.c.h.b16 %v150
  %v693 = vunpack.c.l.b16 %v151
  %v694 = vunpack.c.h.b16 %v151
  %v695 = vunpack.c.l.b16 %v152
  %v696 = vunpack.c.h.b16 %v152
  %v697 = vunpack.c.l.b16 %v153
  %v698 = vunpack.c.h.b16 %v153
  %v699 = vunpack.c.l.b16 %v154
  %v700 = vunpack.c.h.b16 %v154
  %v701 = vunpack.c.l.b16 %v155
  %v702 = vunpack.c.h.b16 %v155
  %v703 = vunpack.c.l.b16 %v156
  %v704 = vunpack.c.h.b16 %v156
  %v705 = vunpack.c.l.b16 %v157
  %v706 = vunpack.c.h.b16 %v157
  %v707 = vunpack.c.l.b16 %v158
  %v708 = vunpack.c.h.b16 %v158
  %v709 = vunpack.c.l.b16 %v159
  %v710 = vunpack.c.h.b16 %v159
  %v711 = vunpack.c.l.b16 %v160
  %v712 = vunpack.c.h.b16 %v160
  %v713 = vunpack.c.l.b16 %v161
  %v714 = vunpack.c.h.b16 %v161
  %v715 = vunpack.c.l.b16 %v162
  %v716 = vunpack.c.h.b16 %v162
  %v717 = vunpack.c.l.b16 %v163
  %v718 = vunpack.c.h.b16 %v163
  %v719 = vunpack.c.l.b16 %v164
  %v720 = vunpack.c.h.b16 %v164
  %v721 = vunpack.c.l.b16 %v165
  %v722 = vunpack.c.h.b16 %v165
  %v723 = vunpack.c.l.b16 %v166
  %v724 = vunpack.c.h.b16 %v166
  %v725 = vunpack.c.l.b16 %v167
  %v726 = vunpack.c.h.b16 %v167
  %v727 = vunpack.c.l.b16 %v168
  %v728 = vunpack.c.h.b16 %v168
  %v729 = vunpack.c.l.b16 %v169
  %v730 = vunpack.c.h.b16 %v169
  %v731 = vunpack.c.l.b16 %v170
  %v732 = vunpack.c.h.b16 %v170
  %v733 = vunpack.c.l.b16 %v171
  %v734 = vunpack.c.h.b16 %v171
  %v735 = vunpack.c.l.b16 %v172
  %v736 = vunpack.c.h.b16 %v172
  %v737 = vunpack.c.l.b16 %v173
  %v738 = vunpack.c.h.b16 %v173
  %v739 = vunpack.c.l.b16 %v174
  %v740 = vunpack.c.h.b16 %v174
  %v741 = vunpack.c.l.b16 %v175
  %v742 = vunpack.c.h.b16 %v175
  %v743 = vunpack.c.l.b16 %v176
  %v744 = vunpack.c.h.b16 %v176
  %v745 = vunpack.c.l.b16 %v177
  %v746 = vunpack.c.h.b16 %v177
  %v747 = vunpack.c.l.b16 %v178
  %v748 = vunpack.c.h.b16 %v178
  %v749 = vunpack.c.l.b16 %v179
  %v750 = vunpack.c.h.b16 %v179
  %v751 = vunpack.c.l.b16 %v180
  %v752 = vunpack.c.h.b16 %v180
  %v753 = vunpack.c.l.b16 %v181
  %v754 = vunpack.c.h.b16 %v181
  %v755 = vunpack.c.l.b16 %v182
  %v756 = vunpack.c.h.b16 %v182
  %v757 = vunpack.c.l.b16 %v183
  %v758 = vunpack.c.h.b16 %v183
  %v759 = vunpack.c.l.b16 %v184
  %v760 = vunpack.c.h.b16 %v184
  %v761 = vunpack.c.l.b16 %v185
  %v762 = vunpack.c.h.b16 %v185
  %v763 = vunpack.c.l.b16 %v186
  %v764 = vunpack.c.h.b16 %v186
  %v765 = vunpack.c.l.b16 %v187
  %v766 = vunpack.c.h.b16 %v187
  %v767 = vunpack.c.l.b16 %v188
  %v768 = vunpack.c.h.b16 %v188
  %v769 = vunpack.c.l.b16 %v189
  %v770 = vunpack.c.h.b16 %v189
  %v771 = vunpack.c.l.b16 %v190
  %v772 = vunpack.c.h.b16 %v190
  %v773 = vunpack.c.l.b16 %v191
  %v774 = vunpack.c.h.b16 %v191
  %v775 = vunpack.c.l.b16 %v192
  %v776 = vunpack.c.h.b16 %v192
  %v777 = vunpack.c.l.b16 %v193
  %v778 = vunpack.c.h.b16 %v193
  %v779 = vunpack.c.l.b16 %v194
  %v780 = vunpack.c.h.b16 %v194
  %v781 = vunpack.c.l.b16 %v195
  %v782 = vunpack.c.h.b16 %v195
  %v783 = vunpack.c.l.b16 %v196
  %v784 = vunpack.c.h.b16 %v196
  %v785 = vunpack.c.l.b16 %v197
  %v786 = vunpack.c.h.b16 %v197
  %v787 = vunpack.c.l.b16 %v198
  %v788 = vunpack.c.h.b16 %v198
  %v789 = vunpack.c.l.b16 %v199
  %v790 = vunpack.c.h.b16 %v199
  %v791 = vunpack.c.l.b16 %v200
  %v792 = vunpack.c.h.b16 %v200
  %v793 = vunpack.c.l.b16 %v201
  %v794 = vunpack.c.h.b16 %v201
  %v795 = vunpack.c.l.b16 %v202
  %v796 = vunpack.c.h.b16 %v202
  %v797 = vunpack.c.l.b16 %v203
  %v798 = vunpack.c.h.b16 %v203
  %v799 = vunpack.c.l.b16 %v204
  %v800 = vunpack.c.h.b16 %v204
  %v801 = vunpack.c.l.b16 %v205
  %v802 = vunpack.c.h.b16 %v205
  %v803 = vunpack.c.l.b16 %v206
  %v804 = vunpack.c.h.b16 %v206
  %v805 = vunpack.c.l.b16 %v207
  %v806 = vunpack.c.h.b16 %v207
  %v807 = vunpack.c.l.b16 %v208
  %v808 = vunpack.c.h.b16 %v208
  %v809 = vunpack.c.l.b16 %v209
  %v810 = vunpack.c.h.b16 %v209
  %v811 = vunpack.c.l.b16 %v210
  %v812 = vunpack.c.h.b16 %v210
  %v813 = vunpack.c.l.b16 %v211
  %v814 = vunpack.c.h.b16 %v211
  %v815 = vunpack.c.l.b16 %v212
  %v816 = vunpack.c.h.b16 %v212
  %v817 = vunpack.c.l.b16 %v213
  %v818 = vunpack.c.h.b16 %v213
  %v819 = vunpack.c.l.b16 %v214
  %v820 = vunpack.c.h.b16 %v214
  %v821 = vunpack.c.l.b16 %v215
  %v822 = vunpack.c.h.b16 %v215
  %v823 = vunpack.c.l.b16 %v216
  %v824 = vunpack.c.h.b16 %v216
  %v825 = vunpack.c.l.b16 %v217
  %v826 = vunpack.c.h.b16 %v217
  %v827 = vunpack.c.l.b16 %v218
  %v828 = vunpack.c.h.b16 %v218
  %v829 = vunpack.c.l.b16 %v219
  %v830 = vunpack.c.h.b16 %v219
  %v831 = vunpack.c.l.b16 %v220
  %v832 = vunpack.c.h.b16 %v220
  %v833 = vunpack.c.l.b16 %v221
  %v834 = vunpack.c.h.b16 %v221
  %v835 = vunpack.c.l.b16 %v222
  %v836 = vunpack.c.h.b16 %v222
  %v837 = vunpack.c.l.b16 %v223
  %v838 = vunpack.c.h.b16 %v223
  %v839 = vunpack.c.l.b16 %v224
  %v840 = vunpack.c.h.b16 %v224
  %v841 = vunpack.c.l.b16 %v225
  %v842 = vunpack.c.h.b16 %v225
  %v843 = vunpack.c.l.b16 %v226
  %v844 = vunpack.c.h.b16 %v226
  %v845 = vunpack.c.l.b16 %v227
  %v846 = vunpack.c.h.b16 %v227
  %v847 = vunpack.c.l.b16 %v228
  %v848 = vunpack.c.h.b16 %v228
  %v849 = vunpack.c.l.b16 %v229
  %v850 = vunpack.c.h.b16 %v229
  %v851 = vunpack.c.l.b16 %v230
  %v852 = vunpack.c.h.b16 %v230
  %v853 = vunpack.c.l.b16 %v231
  %v854 = vunpack.c.h.b16 %v231
  %v855 = vunpack.c.l.b16 %v232
  %v856 = vunpack.c.h.b16 %v232
  %v857 = vunpack.c.l.b16 %v233
  %v858 = vunpack.c.h.b16 %v233
  %v859 = vunpack.c.l.b16 %v234
  %v860 = vunpack.c.h.b16 %v234
  %v861 = vunpack.c.l.b16 %v235
  %v862 = vunpack.c.h.b16 %v235
  %v863 = vunpack.c.l.b16 %v236
  %v864 = vunpack.c.h.b16 %v236
  %v865 = vunpack.c.l.b16 %v237
  %v866 = vunpack.c.h.b16 %v237
  %v867 = vunpack.c.l.b16 %v238
  %v868 = vunpack.c.h.b16 %v238
  %v869 = vunpack.c.l.b16 %v239
  %v870 = vunpack.c.h.b16 %v239
  %v871 = vunpack.c.l.b16 %v240
  %v872 = vunpack.c.h.b16 %v240
  %v873 = vunpack.c.l.b16 %v241
  %v874 = vunpack.c.h.b16 %v241
  %v875 = vpack.c.b16 %v487, %v483
  %v876 = vpack.c.b16 %v488, %v484
  %v877 = vpack.c.b16 %v489, %v485
  %v878 = vpack.c.b16 %v490, %v486
  %v879 = vpack.c.b16 %v495, %v491
  %v880 = vpack.c.b16 %v496, %v492
  %v881 = vpack.c.b16 %v497, %v493
  %v882 = vpack.c.b16 %v498, %v494
  %v883 = vpack.c.b16 %v503, %v499
  %v884 = vpack.c.b16 %v504, %v500
  %v885 = vpack.c.b16 %v505, %v501
  %v886 = vpack.c.b16 %v506, %v502
  %v887 = vpack.c.b16 %v511, %v507
  %v888 = vpack.c.b16 %v512, %v508
  %v889 = vpack.c.b16 %v513, %v509
  %v890 = vpack.c.b16 %v514, %v510
  %v891 = vpack.c.b16 %v519, %v515
  %v892 = vpack.c.b16 %v520, %v516
  %v893 = vpack.c.b16 %v521, %v517
  %v894 = vpack.c.b16 %v522, %v518
  %v895 = vpack.c.b16 %v527, %v523
  %v896 = vpack.c.b16 %v528, %v524
  %v897 = vpack.c.b16 %v529, %v525
  %v898 = vpack.c.b16 %v530, %v526
  %v899 = vpack.c.b16 %v535, %v531
  %v900 = vpack.c.b16 %v536, %v532
  %v901 = vpack.c.b16 %v537, %v533
  %v902 = vpack.c.b16 %v538, %v534
  %v903 = vpack.c.b16 %v543, %v539
  %v904 = vpack.c.b16 %v544, %v540
  %v905 = vpack.c.b16 %v545, %v541
  %v906 = vpack.c.b16 %v546, %v542
  %v907 = vpack.c.b16 %v551, %v547
  %v908 = vpack.c.b16 %v552, %v548
  %v909 = vpack.c.b16 %v553, %v549
  %v910 = vpack.c.b16 %v554, %v550
  %v911 = vpack.c.b16 %v559, %v555
  %v912 = vpack.c.b16 %v560, %v556
  %v913 = vpack.c.b16 %v561, %v557
  %v914 = vpack.c.b16 %v562, %v558
  %v915 = vpack.c.b16 %v567, %v563
  %v916 = vpack.c.b16 %v568, %v564
  %v917 = vpack.c.b16 %v569, %v565
  %v918 = vpack.c.b16 %v570, %v566
  %v919 = vpack.c.b16 %v575, %v571
  %v920 = vpack.c.b16 %v576, %v572
  %v921 = vpack.c.b16 %v577, %v573
  %v922 = vpack.c.b16 %v578, %v574
  %v923 = vpack.c.b16 %v583, %v579
  %v924 = vpack.c.b16 %v584, %v580
  %v925 = vpack.c.b16 %v585, %v581
  %v926 = vpack.c.b16 %v586, %v582
  %v927 = vpack.c.b16 %v591, %v587
  %v928 = vpack.c.b16 %v592, %v588
  %v929 = vpack.c.b16 %v593, %v589
  %v930 = vpack.c.b16 %v594, %v590
  %v931 = vpack.c.b16 %v599, %v595
  %v932 = vpack.c.b16 %v600, %v596
  %v933 = vpack.c.b16 %v601, %v597
  %v934 = vpack.c.b16 %v602, %v598
  %v935 = vpack.c.b16 %v607, %v603
  %v936 = vpack.c.b16 %v608, %v604
  %v937 = vpack.c.b16 %v609, %v605
  %v938 = vpack.c.b16 %v610, %v606
  %v939 = vpack.c.b16 %v615, %v611
  %v940 = vpack.c.b16 %v616, %v612
  %v941 = vpack.c.b16 %v617, %v613
  %v942 = vpack.c.b16 %v618, %v614
  %v943 = vpack.c.b16 %v623, %v619
  %v944 = vpack.c.b16 %v624, %v620
  %v945 = vpack.c.b16 %v625, %v621
  %v946 = vpack.c.b16 %v626, %v622
  %v947 = vpack.c.b16 %v631, %v627
  %v948 = vpack.c.b16 %v632, %v628
  %v949 = vpack.c.b16 %v633, %v629
  %v950 = vpack.c.b16 %v634, %v630
  %v951 = vpack.c.b16 %v639, %v635
  %v952 = vpack.c.b16 %v640, %v636
  %v953 = vpack.c.b16 %v641, %v637
  %v954 = vpack.c.b16 %v642, %v638
  %v955 = vpack.c.b16 %v647, %v643
  %v956 = vpack.c.b16 %v648, %v644
  %v957 = vpack.c.b16 %v649, %v645
  %v958 = vpack.c.b16 %v650, %v646
  %v959 = vpack.c.b16 %v655, %v651
  %v960 = vpack.c.b16 %v656, %v652
  %v961 = vpack.c.b16 %v657, %v653
  %v962 = vpack.c.b16 %v658, %v654
  %v963 = vpack.c.b16 %v663, %v659
  %v964 = vpack.c.b16 %v664, %v660
  %v965 = vpack.c.b16 %v665, %v661
  %v966 = vpack.c.b16 %v666, %v662
  %v967 = vpack.c.b16 %v671, %v667
  %v968 = vpack.c.b16 %v672, %v668
  %v969 = vpack.c.b16 %v673, %v669
  %v970 = vpack.c.b16 %v674, %v670
  %v971 = vpack.c.b16 %v679, %v675
  %v972 = vpack.c.b16 %v680, %v676
  %v973 = vpack.c.b16 %v681, %v677
  %v974 = vpack.c.b16 %v682, %v678
  %v975 = vpack.c.b16 %v687, %v683
  %v976 = vpack.c.b16 %v688, %v684
  %v977 = vpack.c.b16 %v689, %v685
  %v978 = vpack.c.b16 %v690, %v686
  %v979 = vpack.c.b16 %v695, %v691
  %v980 = vpack.c.b16 %v696, %v692
  %v981 = vpack.c.b16 %v697, %v693
  %v982 = vpack.c.b16 %v698, %v694
  %v983 = vpack.c.b16 %v703, %v699
  %v984 = vpack.c.b16 %v704, %v700
  %v985 = vpack.c.b16 %v705, %v701
  %v986 = vpack.c.b16 %v706, %v702
  %v987 = vpack.c.b16 %v711, %v707
  %v988 = vpack.c.b16 %v712, %v708
  %v989 = vpack.c.b16 %v713, %v709
  %v990 = vpack.c.b16 %v714, %v710
  %v991 = vpack.c.b16 %v719, %v715
  %v992 = vpack.c.b16 %v720, %v716
  %v993 = vpack.c.b16 %v721, %v717
  %v994 = vpack.c.b16 %v722, %v718
  %v995 = vpack.c.b16 %v727, %v723
  %v996 = vpack.c.b16 %v728, %v724
  %v997 = vpack.c.b16 %v729, %v725
  %v998 = vpack.c.b16 %v730, %v726
  %v999 = vpack.c.b16 %v735, %v731
  %v1000 = vpack.c.b16 %v736, %v732
  %v1001 = vpack.c.b16 %v737, %v733
  %v1002 = vpack.c.b16 %v738, %v734
  %v1003 = vpack.c.b16 %v743, %v739
  %v1004 = vpack.c.b16 %v744, %v740
  %v1005 = vpack.c.b16 %v745, %v741
  %v1006 = vpack.c.b16 %v746, %v742
  %v1007 = vpack.c.b16 %v751, %v747
  %v1008 = vpack.c.b16 %v752, %v748
  %v1009 = vpack.c.b16 %v753, %v749
  %v1010 = vpack.c.b16 %v754, %v750
  %v1011 = vpack.c.b16 %v759, %v755
  %v1012 = vpack.c.b16 %v760, %v756
  %v1013 = vpack.c.b16 %v761, %v757
  %v1014 = vpack.c.b16 %v762, %v758
  %v1015 = vpack.c.b16 %v767, %v763
  %v1016 = vpack.c.b16 %v768, %v764
  %v1017 = vpack.c.b16 %v769, %v765
  %v1018 = vpack.c.b16 %v770, %v766
  %v1019 = vpack.c.b16 %v775, %v771
  %v1020 = vpack.c.b16 %v776, %v772
  %v1021 = vpack.c.b16 %v777, %v773
  %v1022 = vpack.c.b16 %v778, %v774
  %v1023 = vpack.c.b16 %v783, %v779
  %v1024 = vpack.c.b16 %v784, %v780
  %v1025 = vpack.c.b16 %v785, %v781
  %v1026 = vpack.c.b16 %v786, %v782
  %v1027 = vpack.c.b16 %v791, %v787
  %v1028 = vpack.c.b16 %v792, %v788
  %v1029 = vpack.c.b16 %v793, %v789
  %v1030 = vpack.c.b16 %v794, %v790
  %v1031 = vpack.c.b16 %v799, %v795
  %v1032 = vpack.c.b16 %v800, %v796
  %v1033 = vpack.c.b16 %v801, %v797
  %v1034 = vpack.c.b16 %v802, %v798
  %v1035 = vpack.c.b16 %v807, %v803
  %v1036 = vpack.c.b16 %v808, %v804
  %v1037 = vpack.c.b16 %v809, %v805
  %v1038 = vpack.c.b16 %v810, %v806
  %v1039 = vpack.c.b16 %v815, %v811
  %v1040 = vpack.c.b16 %v816, %v812
  %v1041 = vpack.c.b16 %v817, %v813
  %v1042 = vpack.c.b16 %v818, %v814
  %v1043 = vpack.c.b16 %v823, %v819
  %v1044 = vpack.c.b16 %v824, %v820
  %v1045 = vpack.c.b16 %v825, %v821
  %v1046 = vpack.c.b16 %v826, %v822
  %v1047 = vpack.c.b16 %v831, %v827
  %v1048 = vpack.c.b16 %v832, %v828
  %v1049 = vpack.c.b16 %v833, %v829
  %v1050 = vpack.c.b16 %v834, %v830
  %v1051 = vpack.c.b16 %v839, %v835
  %v1052 = vpack.c.b16 %v840, %v836
  %v1053 = vpack.c.b16 %v841, %v837
  %v1054 = vpack.c.b16 %v842, %v838
  %v1055 = vpack.c.b16 %v847, %v843
  %v1056 = vpack.c.b16 %v848, %v844
  %v1057 = vpack.c.b16 %v849, %v845
  %v1058 = vpack.c.b16 %v850, %v846
  %v1059 = vpack.c.b16 %v855, %v851
  %v1060 = vpack.c.b16 %v856, %v852
  %v1061 = vpack.c.b16 %v857, %v853
  %v1062 = vpack.c.b16 %v858, %v854
  %v1063 = vpack.c.b16 %v863, %v859
  %v1064 = vpack.c.b16 %v864, %v860
  %v1065 = vpack.c.b16 %v865, %v861
  %v1066 = vpack.c.b16 %v866, %v862
  %v1067 = vpack.c.b16 %v871, %v867
  %v1068 = vpack.c.b16 %v872, %v868
  %v1069 = vpack.c.b16 %v873, %v869
  %v1070 = vpack.c.b16 %v874, %v870
  %vm1267 = vcmask 130048
  %v1269 = vsel %vm1267, %v280, 0
  %1271 = vmatpush.bf16.msra.mxu0 %v903
  %1272 = vmatpush.bf16.msra.mxu0 %v899
  %1273 = vmatpush.bf16.msra.mxu0 %v895
  %1274 = vmatpush.bf16.msra.mxu0 %v891
  %1275 = vmatpush.bf16.msra.mxu0 %v887
  %1276 = vmatpush.bf16.msra.mxu0 %v883
  %1277 = vmatpush.bf16.msra.mxu0 %v879
  %1278 = vmatpush.bf16.msra.mxu0 %v875
  %1279 = vmatmul.bf16.gmra.mxu0 %v274
  %v1280 = vpop.f32.mrf.mxu0
  %v1281 = vadd.f32 %v244, %v1280
  %v1282 = vpop.f32.mrf.mxu0
  %v1283 = vadd.f32 %v244, %v1282
  %1284 = vdwg.mxu0
  %1285 = vmatpush.bf16.msra.mxu0 %v935
  %1286 = vmatpush.bf16.msra.mxu0 %v931
  %1287 = vmatpush.bf16.msra.mxu0 %v927
  %1288 = vmatpush.bf16.msra.mxu0 %v923
  %1289 = vmatpush.bf16.msra.mxu0 %v919
  %1290 = vmatpush.bf16.msra.mxu0 %v915
  %1291 = vmatpush.bf16.msra.mxu0 %v911
  %1292 = vmatpush.bf16.msra.mxu0 %v907
  %1293 = vmatmul.bf16.gmra.mxu0 %v275
  %v1294 = vpop.f32.mrf.mxu0
  %v1295 = vadd.f32 %v1281, %v1294
  %v1296 = vpop.f32.mrf.mxu0
  %v1297 = vadd.f32 %v1283, %v1296
  %1298 = vdwg.mxu0
  %1299 = vmatpush.bf16.msra.mxu0 %v967
  %1300 = vmatpush.bf16.msra.mxu0 %v963
  %1301 = vmatpush.bf16.msra.mxu0 %v959
  %1302 = vmatpush.bf16.msra.mxu0 %v955
  %1303 = vmatpush.bf16.msra.mxu0 %v951
  %1304 = vmatpush.bf16.msra.mxu0 %v947
  %1305 = vmatpush.bf16.msra.mxu0 %v943
  %1306 = vmatpush.bf16.msra.mxu0 %v939
  %1307 = vmatmul.bf16.gmra.mxu0 %v276
  %v1308 = vpop.f32.mrf.mxu0
  %v1309 = vadd.f32 %v1295, %v1308
  %v1310 = vpop.f32.mrf.mxu0
  %v1311 = vadd.f32 %v1297, %v1310
  %1312 = vdwg.mxu0
  %1313 = vmatpush.bf16.msra.mxu0 %v999
  %1314 = vmatpush.bf16.msra.mxu0 %v995
  %1315 = vmatpush.bf16.msra.mxu0 %v991
  %1316 = vmatpush.bf16.msra.mxu0 %v987
  %1317 = vmatpush.bf16.msra.mxu0 %v983
  %1318 = vmatpush.bf16.msra.mxu0 %v979
  %1319 = vmatpush.bf16.msra.mxu0 %v975
  %1320 = vmatpush.bf16.msra.mxu0 %v971
  %1321 = vmatmul.bf16.gmra.mxu0 %v277
  %v1322 = vpop.f32.mrf.mxu0
  %v1323 = vadd.f32 %v1309, %v1322
  %v1324 = vpop.f32.mrf.mxu0
  %v1325 = vadd.f32 %v1311, %v1324
  %1326 = vdwg.mxu0
  %1327 = vmatpush.bf16.msra.mxu0 %v1031
  %1328 = vmatpush.bf16.msra.mxu0 %v1027
  %1329 = vmatpush.bf16.msra.mxu0 %v1023
  %1330 = vmatpush.bf16.msra.mxu0 %v1019
  %1331 = vmatpush.bf16.msra.mxu0 %v1015
  %1332 = vmatpush.bf16.msra.mxu0 %v1011
  %1333 = vmatpush.bf16.msra.mxu0 %v1007
  %1334 = vmatpush.bf16.msra.mxu0 %v1003
  %1335 = vmatmul.bf16.gmra.mxu0 %v278
  %v1336 = vpop.f32.mrf.mxu0
  %v1337 = vadd.f32 %v1323, %v1336
  %v1338 = vpop.f32.mrf.mxu0
  %v1339 = vadd.f32 %v1325, %v1338
  %1340 = vdwg.mxu0
  %1341 = vmatpush.bf16.msra.mxu0 %v1063
  %1342 = vmatpush.bf16.msra.mxu0 %v1059
  %1343 = vmatpush.bf16.msra.mxu0 %v1055
  %1344 = vmatpush.bf16.msra.mxu0 %v1051
  %1345 = vmatpush.bf16.msra.mxu0 %v1047
  %1346 = vmatpush.bf16.msra.mxu0 %v1043
  %1347 = vmatpush.bf16.msra.mxu0 %v1039
  %1348 = vmatpush.bf16.msra.mxu0 %v1035
  %1349 = vmatmul.bf16.gmra.mxu0 %v279
  %v1350 = vpop.f32.mrf.mxu0
  %v1351 = vadd.f32 %v1337, %v1350
  %v1352 = vpop.f32.mrf.mxu0
  %v1353 = vadd.f32 %v1339, %v1352
  %1354 = vdwg.mxu0
  %1355 = vmatpush.bf16.msra.mxu0 0
  %1356 = vmatpush.bf16.msra.mxu0 0
  %1357 = vmatpush.bf16.msra.mxu0 0
  %1358 = vmatpush.bf16.msra.mxu0 0
  %1359 = vmatpush.bf16.msra.mxu0 0
  %1360 = vmatpush.bf16.msra.mxu0 0
  %1361 = vmatpush.bf16.msra.mxu0 0
  %1362 = vmatpush.bf16.msra.mxu0 %v1067
  %1363 = vmatmul.bf16.gmra.mxu0 %v1269
  %v1364 = vpop.f32.mrf.mxu0
  %v1365 = vadd.f32 %v1351, %v1364
  %v1366 = vpop.f32.mrf.mxu0
  %v1367 = vadd.f32 %v1353, %v1366
  %1368 = vdwg.mxu0
  %1369 = vmatpush.bf16.msra.mxu0 %v904
  %1370 = vmatpush.bf16.msra.mxu0 %v900
  %1371 = vmatpush.bf16.msra.mxu0 %v896
  %1372 = vmatpush.bf16.msra.mxu0 %v892
  %1373 = vmatpush.bf16.msra.mxu0 %v888
  %1374 = vmatpush.bf16.msra.mxu0 %v884
  %1375 = vmatpush.bf16.msra.mxu0 %v880
  %1376 = vmatpush.bf16.msra.mxu0 %v876
  %1377 = vmatmul.bf16.gmra.mxu0 %v274
  %v1378 = vpop.f32.mrf.mxu0
  %v1379 = vadd.f32 %v245, %v1378
  %v1380 = vpop.f32.mrf.mxu0
  %v1381 = vadd.f32 %v245, %v1380
  %1382 = vdwg.mxu0
  %1383 = vmatpush.bf16.msra.mxu0 %v936
  %1384 = vmatpush.bf16.msra.mxu0 %v932
  %1385 = vmatpush.bf16.msra.mxu0 %v928
  %1386 = vmatpush.bf16.msra.mxu0 %v924
  %1387 = vmatpush.bf16.msra.mxu0 %v920
  %1388 = vmatpush.bf16.msra.mxu0 %v916
  %1389 = vmatpush.bf16.msra.mxu0 %v912
  %1390 = vmatpush.bf16.msra.mxu0 %v908
  %1391 = vmatmul.bf16.gmra.mxu0 %v275
  %v1392 = vpop.f32.mrf.mxu0
  %v1393 = vadd.f32 %v1379, %v1392
  %v1394 = vpop.f32.mrf.mxu0
  %v1395 = vadd.f32 %v1381, %v1394
  %1396 = vdwg.mxu0
  %1397 = vmatpush.bf16.msra.mxu0 %v968
  %1398 = vmatpush.bf16.msra.mxu0 %v964
  %1399 = vmatpush.bf16.msra.mxu0 %v960
  %1400 = vmatpush.bf16.msra.mxu0 %v956
  %1401 = vmatpush.bf16.msra.mxu0 %v952
  %1402 = vmatpush.bf16.msra.mxu0 %v948
  %1403 = vmatpush.bf16.msra.mxu0 %v944
  %1404 = vmatpush.bf16.msra.mxu0 %v940
  %1405 = vmatmul.bf16.gmra.mxu0 %v276
  %v1406 = vpop.f32.mrf.mxu0
  %v1407 = vadd.f32 %v1393, %v1406
  %v1408 = vpop.f32.mrf.mxu0
  %v1409 = vadd.f32 %v1395, %v1408
  %1410 = vdwg.mxu0
  %1411 = vmatpush.bf16.msra.mxu0 %v1000
  %1412 = vmatpush.bf16.msra.mxu0 %v996
  %1413 = vmatpush.bf16.msra.mxu0 %v992
  %1414 = vmatpush.bf16.msra.mxu0 %v988
  %1415 = vmatpush.bf16.msra.mxu0 %v984
  %1416 = vmatpush.bf16.msra.mxu0 %v980
  %1417 = vmatpush.bf16.msra.mxu0 %v976
  %1418 = vmatpush.bf16.msra.mxu0 %v972
  %1419 = vmatmul.bf16.gmra.mxu0 %v277
  %v1420 = vpop.f32.mrf.mxu0
  %v1421 = vadd.f32 %v1407, %v1420
  %v1422 = vpop.f32.mrf.mxu0
  %v1423 = vadd.f32 %v1409, %v1422
  %1424 = vdwg.mxu0
  %1425 = vmatpush.bf16.msra.mxu0 %v1032
  %1426 = vmatpush.bf16.msra.mxu0 %v1028
  %1427 = vmatpush.bf16.msra.mxu0 %v1024
  %1428 = vmatpush.bf16.msra.mxu0 %v1020
  %1429 = vmatpush.bf16.msra.mxu0 %v1016
  %1430 = vmatpush.bf16.msra.mxu0 %v1012
  %1431 = vmatpush.bf16.msra.mxu0 %v1008
  %1432 = vmatpush.bf16.msra.mxu0 %v1004
  %1433 = vmatmul.bf16.gmra.mxu0 %v278
  %v1434 = vpop.f32.mrf.mxu0
  %v1435 = vadd.f32 %v1421, %v1434
  %v1436 = vpop.f32.mrf.mxu0
  %v1437 = vadd.f32 %v1423, %v1436
  %1438 = vdwg.mxu0
  %1439 = vmatpush.bf16.msra.mxu0 %v1064
  %1440 = vmatpush.bf16.msra.mxu0 %v1060
  %1441 = vmatpush.bf16.msra.mxu0 %v1056
  %1442 = vmatpush.bf16.msra.mxu0 %v1052
  %1443 = vmatpush.bf16.msra.mxu0 %v1048
  %1444 = vmatpush.bf16.msra.mxu0 %v1044
  %1445 = vmatpush.bf16.msra.mxu0 %v1040
  %1446 = vmatpush.bf16.msra.mxu0 %v1036
  %1447 = vmatmul.bf16.gmra.mxu0 %v279
  %v1448 = vpop.f32.mrf.mxu0
  %v1449 = vadd.f32 %v1435, %v1448
  %v1450 = vpop.f32.mrf.mxu0
  %v1451 = vadd.f32 %v1437, %v1450
  %1452 = vdwg.mxu0
  %1453 = vmatpush.bf16.msra.mxu0 0
  %1454 = vmatpush.bf16.msra.mxu0 0
  %1455 = vmatpush.bf16.msra.mxu0 0
  %1456 = vmatpush.bf16.msra.mxu0 0
  %1457 = vmatpush.bf16.msra.mxu0 0
  %1458 = vmatpush.bf16.msra.mxu0 0
  %1459 = vmatpush.bf16.msra.mxu0 0
  %1460 = vmatpush.bf16.msra.mxu0 %v1068
  %1461 = vmatmul.bf16.gmra.mxu0 %v1269
  %v1462 = vpop.f32.mrf.mxu0
  %v1463 = vadd.f32 %v1449, %v1462
  %v1464 = vpop.f32.mrf.mxu0
  %v1465 = vadd.f32 %v1451, %v1464
  %1466 = vdwg.mxu0
  %1467 = vmatpush.bf16.msra.mxu0 %v905
  %1468 = vmatpush.bf16.msra.mxu0 %v901
  %1469 = vmatpush.bf16.msra.mxu0 %v897
  %1470 = vmatpush.bf16.msra.mxu0 %v893
  %1471 = vmatpush.bf16.msra.mxu0 %v889
  %1472 = vmatpush.bf16.msra.mxu0 %v885
  %1473 = vmatpush.bf16.msra.mxu0 %v881
  %1474 = vmatpush.bf16.msra.mxu0 %v877
  %1475 = vmatmul.bf16.gmra.mxu0 %v274
  %v1476 = vpop.f32.mrf.mxu0
  %v1477 = vadd.f32 %v246, %v1476
  %v1478 = vpop.f32.mrf.mxu0
  %v1479 = vadd.f32 %v246, %v1478
  %1480 = vdwg.mxu0
  %1481 = vmatpush.bf16.msra.mxu0 %v937
  %1482 = vmatpush.bf16.msra.mxu0 %v933
  %1483 = vmatpush.bf16.msra.mxu0 %v929
  %1484 = vmatpush.bf16.msra.mxu0 %v925
  %1485 = vmatpush.bf16.msra.mxu0 %v921
  %1486 = vmatpush.bf16.msra.mxu0 %v917
  %1487 = vmatpush.bf16.msra.mxu0 %v913
  %1488 = vmatpush.bf16.msra.mxu0 %v909
  %1489 = vmatmul.bf16.gmra.mxu0 %v275
  %v1490 = vpop.f32.mrf.mxu0
  %v1491 = vadd.f32 %v1477, %v1490
  %v1492 = vpop.f32.mrf.mxu0
  %v1493 = vadd.f32 %v1479, %v1492
  %1494 = vdwg.mxu0
  %1495 = vmatpush.bf16.msra.mxu0 %v969
  %1496 = vmatpush.bf16.msra.mxu0 %v965
  %1497 = vmatpush.bf16.msra.mxu0 %v961
  %1498 = vmatpush.bf16.msra.mxu0 %v957
  %1499 = vmatpush.bf16.msra.mxu0 %v953
  %1500 = vmatpush.bf16.msra.mxu0 %v949
  %1501 = vmatpush.bf16.msra.mxu0 %v945
  %1502 = vmatpush.bf16.msra.mxu0 %v941
  %1503 = vmatmul.bf16.gmra.mxu0 %v276
  %v1504 = vpop.f32.mrf.mxu0
  %v1505 = vadd.f32 %v1491, %v1504
  %v1506 = vpop.f32.mrf.mxu0
  %v1507 = vadd.f32 %v1493, %v1506
  %1508 = vdwg.mxu0
  %1509 = vmatpush.bf16.msra.mxu0 %v1001
  %1510 = vmatpush.bf16.msra.mxu0 %v997
  %1511 = vmatpush.bf16.msra.mxu0 %v993
  %1512 = vmatpush.bf16.msra.mxu0 %v989
  %1513 = vmatpush.bf16.msra.mxu0 %v985
  %1514 = vmatpush.bf16.msra.mxu0 %v981
  %1515 = vmatpush.bf16.msra.mxu0 %v977
  %1516 = vmatpush.bf16.msra.mxu0 %v973
  %1517 = vmatmul.bf16.gmra.mxu0 %v277
  %v1518 = vpop.f32.mrf.mxu0
  %v1519 = vadd.f32 %v1505, %v1518
  %v1520 = vpop.f32.mrf.mxu0
  %v1521 = vadd.f32 %v1507, %v1520
  %1522 = vdwg.mxu0
  %1523 = vmatpush.bf16.msra.mxu0 %v1033
  %1524 = vmatpush.bf16.msra.mxu0 %v1029
  %1525 = vmatpush.bf16.msra.mxu0 %v1025
  %1526 = vmatpush.bf16.msra.mxu0 %v1021
  %1527 = vmatpush.bf16.msra.mxu0 %v1017
  %1528 = vmatpush.bf16.msra.mxu0 %v1013
  %1529 = vmatpush.bf16.msra.mxu0 %v1009
  %1530 = vmatpush.bf16.msra.mxu0 %v1005
  %1531 = vmatmul.bf16.gmra.mxu0 %v278
  %v1532 = vpop.f32.mrf.mxu0
  %v1533 = vadd.f32 %v1519, %v1532
  %v1534 = vpop.f32.mrf.mxu0
  %v1535 = vadd.f32 %v1521, %v1534
  %1536 = vdwg.mxu0
  %1537 = vmatpush.bf16.msra.mxu0 %v1065
  %1538 = vmatpush.bf16.msra.mxu0 %v1061
  %1539 = vmatpush.bf16.msra.mxu0 %v1057
  %1540 = vmatpush.bf16.msra.mxu0 %v1053
  %1541 = vmatpush.bf16.msra.mxu0 %v1049
  %1542 = vmatpush.bf16.msra.mxu0 %v1045
  %1543 = vmatpush.bf16.msra.mxu0 %v1041
  %1544 = vmatpush.bf16.msra.mxu0 %v1037
  %1545 = vmatmul.bf16.gmra.mxu0 %v279
  %v1546 = vpop.f32.mrf.mxu0
  %v1547 = vadd.f32 %v1533, %v1546
  %v1548 = vpop.f32.mrf.mxu0
  %v1549 = vadd.f32 %v1535, %v1548
  %1550 = vdwg.mxu0
  %1551 = vmatpush.bf16.msra.mxu0 0
  %1552 = vmatpush.bf16.msra.mxu0 0
  %1553 = vmatpush.bf16.msra.mxu0 0
  %1554 = vmatpush.bf16.msra.mxu0 0
  %1555 = vmatpush.bf16.msra.mxu0 0
  %1556 = vmatpush.bf16.msra.mxu0 0
  %1557 = vmatpush.bf16.msra.mxu0 0
  %1558 = vmatpush.bf16.msra.mxu0 %v1069
  %1559 = vmatmul.bf16.gmra.mxu0 %v1269
  %v1560 = vpop.f32.mrf.mxu0
  %v1561 = vadd.f32 %v1547, %v1560
  %v1562 = vpop.f32.mrf.mxu0
  %v1563 = vadd.f32 %v1549, %v1562
  %1564 = vdwg.mxu0
  %1565 = vmatpush.bf16.msra.mxu0 %v906
  %1566 = vmatpush.bf16.msra.mxu0 %v902
  %1567 = vmatpush.bf16.msra.mxu0 %v898
  %1568 = vmatpush.bf16.msra.mxu0 %v894
  %1569 = vmatpush.bf16.msra.mxu0 %v890
  %1570 = vmatpush.bf16.msra.mxu0 %v886
  %1571 = vmatpush.bf16.msra.mxu0 %v882
  %1572 = vmatpush.bf16.msra.mxu0 %v878
  %1573 = vmatmul.bf16.gmra.mxu0 %v274
  %v1574 = vpop.f32.mrf.mxu0
  %v1575 = vadd.f32 %v247, %v1574
  %v1576 = vpop.f32.mrf.mxu0
  %v1577 = vadd.f32 %v247, %v1576
  %1578 = vdwg.mxu0
  %1579 = vmatpush.bf16.msra.mxu0 %v938
  %1580 = vmatpush.bf16.msra.mxu0 %v934
  %1581 = vmatpush.bf16.msra.mxu0 %v930
  %1582 = vmatpush.bf16.msra.mxu0 %v926
  %1583 = vmatpush.bf16.msra.mxu0 %v922
  %1584 = vmatpush.bf16.msra.mxu0 %v918
  %1585 = vmatpush.bf16.msra.mxu0 %v914
  %1586 = vmatpush.bf16.msra.mxu0 %v910
  %1587 = vmatmul.bf16.gmra.mxu0 %v275
  %v1588 = vpop.f32.mrf.mxu0
  %v1589 = vadd.f32 %v1575, %v1588
  %v1590 = vpop.f32.mrf.mxu0
  %v1591 = vadd.f32 %v1577, %v1590
  %1592 = vdwg.mxu0
  %1593 = vmatpush.bf16.msra.mxu0 %v970
  %1594 = vmatpush.bf16.msra.mxu0 %v966
  %1595 = vmatpush.bf16.msra.mxu0 %v962
  %1596 = vmatpush.bf16.msra.mxu0 %v958
  %1597 = vmatpush.bf16.msra.mxu0 %v954
  %1598 = vmatpush.bf16.msra.mxu0 %v950
  %1599 = vmatpush.bf16.msra.mxu0 %v946
  %1600 = vmatpush.bf16.msra.mxu0 %v942
  %1601 = vmatmul.bf16.gmra.mxu0 %v276
  %v1602 = vpop.f32.mrf.mxu0
  %v1603 = vadd.f32 %v1589, %v1602
  %v1604 = vpop.f32.mrf.mxu0
  %v1605 = vadd.f32 %v1591, %v1604
  %1606 = vdwg.mxu0
  %1607 = vmatpush.bf16.msra.mxu0 %v1002
  %1608 = vmatpush.bf16.msra.mxu0 %v998
  %1609 = vmatpush.bf16.msra.mxu0 %v994
  %1610 = vmatpush.bf16.msra.mxu0 %v990
  %1611 = vmatpush.bf16.msra.mxu0 %v986
  %1612 = vmatpush.bf16.msra.mxu0 %v982
  %1613 = vmatpush.bf16.msra.mxu0 %v978
  %1614 = vmatpush.bf16.msra.mxu0 %v974
  %1615 = vmatmul.bf16.gmra.mxu0 %v277
  %v1616 = vpop.f32.mrf.mxu0
  %v1617 = vadd.f32 %v1603, %v1616
  %v1618 = vpop.f32.mrf.mxu0
  %v1619 = vadd.f32 %v1605, %v1618
  %1620 = vdwg.mxu0
  %1621 = vmatpush.bf16.msra.mxu0 %v1034
  %1622 = vmatpush.bf16.msra.mxu0 %v1030
  %1623 = vmatpush.bf16.msra.mxu0 %v1026
  %1624 = vmatpush.bf16.msra.mxu0 %v1022
  %1625 = vmatpush.bf16.msra.mxu0 %v1018
  %1626 = vmatpush.bf16.msra.mxu0 %v1014
  %1627 = vmatpush.bf16.msra.mxu0 %v1010
  %1628 = vmatpush.bf16.msra.mxu0 %v1006
  %1629 = vmatmul.bf16.gmra.mxu0 %v278
  %v1630 = vpop.f32.mrf.mxu0
  %v1631 = vadd.f32 %v1617, %v1630
  %v1632 = vpop.f32.mrf.mxu0
  %v1633 = vadd.f32 %v1619, %v1632
  %1634 = vdwg.mxu0
  %1635 = vmatpush.bf16.msra.mxu0 %v1066
  %1636 = vmatpush.bf16.msra.mxu0 %v1062
  %1637 = vmatpush.bf16.msra.mxu0 %v1058
  %1638 = vmatpush.bf16.msra.mxu0 %v1054
  %1639 = vmatpush.bf16.msra.mxu0 %v1050
  %1640 = vmatpush.bf16.msra.mxu0 %v1046
  %1641 = vmatpush.bf16.msra.mxu0 %v1042
  %1642 = vmatpush.bf16.msra.mxu0 %v1038
  %1643 = vmatmul.bf16.gmra.mxu0 %v279
  %v1644 = vpop.f32.mrf.mxu0
  %v1645 = vadd.f32 %v1631, %v1644
  %v1646 = vpop.f32.mrf.mxu0
  %v1647 = vadd.f32 %v1633, %v1646
  %1648 = vdwg.mxu0
  %1649 = vmatpush.bf16.msra.mxu0 0
  %1650 = vmatpush.bf16.msra.mxu0 0
  %1651 = vmatpush.bf16.msra.mxu0 0
  %1652 = vmatpush.bf16.msra.mxu0 0
  %1653 = vmatpush.bf16.msra.mxu0 0
  %1654 = vmatpush.bf16.msra.mxu0 0
  %1655 = vmatpush.bf16.msra.mxu0 0
  %1656 = vmatpush.bf16.msra.mxu0 %v1070
  %1657 = vmatmul.bf16.gmra.mxu0 %v1269
  %v1658 = vpop.f32.mrf.mxu0
  %v1659 = vadd.f32 %v1645, %v1658
  %v1660 = vpop.f32.mrf.mxu0
  %v1661 = vadd.f32 %v1647, %v1660
  %1662 = vdwg.mxu0
  %v1663 = vmax.f32 %v1365, 0.0
  %v1664 = vmax.f32 %v1463, 0.0
  %v1665 = vmax.f32 %v1561, 0.0
  %v1666 = vmax.f32 %v1659, 0.0
  %v1667 = vmax.f32 %v1367, 0.0
  %v1668 = vmax.f32 %v1465, 0.0
  %v1669 = vmax.f32 %v1563, 0.0
  %v1670 = vmax.f32 %v1661, 0.0
  %v1671 = vpack.c.bf16 %v1667, %v1663
  %v1672 = vpack.c.bf16 %v1668, %v1664
  %v1673 = vpack.c.bf16 %v1669, %v1665
  %v1674 = vpack.c.bf16 %v1670, %v1666
  %v1675 = vld [vmem:[%s4] sm:$0xff]
  %v1676 = vld [vmem:[%s4 + $0x8] sm:$0xff]
  %v1677 = vld [vmem:[%s4 + $0x10] sm:$0xff]
  %v1678 = vld [vmem:[%s4 + $0x18] sm:$0xff]
  %v1679 = vld [vmem:[%s4 + $0x20] sm:$0xff]
  %v1680 = vld [vmem:[%s4 + $0x28] sm:$0xff]
  %v1681 = vld [vmem:[%s4 + $0x30] sm:$0xff]
  %v1682 = vld [vmem:[%s4 + $0x38] sm:$0xff]
  %v1683 = vld [vmem:[%s4 + $0x40] sm:$0xff]
  %v1684 = vld [vmem:[%s4 + $0x48] sm:$0xff]
  %v1685 = vld [vmem:[%s4 + $0x50] sm:$0xff]
  %v1686 = vld [vmem:[%s4 + $0x58] sm:$0xff]
  %v1687 = vld [vmem:[%s4 + $0x60] sm:$0xff]
  %v1688 = vld [vmem:[%s4 + $0x68] sm:$0xff]
  %v1689 = vld [vmem:[%s4 + $0x70] sm:$0xff]
  %v1690 = vld [vmem:[%s4 + $0x78] sm:$0xff]
  %v1691 = vld [vmem:[%s4 + $0x80] sm:$0xff]
  %v1692 = vld [vmem:[%s4 + $0x88] sm:$0xff]
  %v1693 = vld [vmem:[%s4 + $0x90] sm:$0xff]
  %v1694 = vld [vmem:[%s4 + $0x98] sm:$0xff]
  %v1695 = vld [vmem:[%s4 + $0xa0] sm:$0xff]
  %v1696 = vld [vmem:[%s4 + $0xa8] sm:$0xff]
  %v1697 = vld [vmem:[%s4 + $0xb0] sm:$0xff]
  %v1698 = vld [vmem:[%s4 + $0xb8] sm:$0xff]
  %v1699 = vld [vmem:[%s4 + $0xc0] sm:$0xff]
  %v1700 = vld [vmem:[%s4 + $0xc8] sm:$0xff]
  %v1701 = vld [vmem:[%s4 + $0xd0] sm:$0xff]
  %v1702 = vld [vmem:[%s4 + $0xd8] sm:$0xff]
  %v1703 = vld [vmem:[%s4 + $0xe0] sm:$0xff]
  %v1704 = vld [vmem:[%s4 + $0xe8] sm:$0xff]
  %v1705 = vld [vmem:[%s4 + $0xf0] sm:$0xff]
  %v1706 = vld [vmem:[%s4 + $0xf8] sm:$0xff]
  %v1707 = vld [vmem:[%s4 + $0x100] sm:$0xff]
  %v1708 = vld [vmem:[%s4 + $0x108] sm:$0xff]
  %v1709 = vld [vmem:[%s4 + $0x110] sm:$0xff]
  %v1710 = vld [vmem:[%s4 + $0x118] sm:$0xff]
  %v1711 = vld [vmem:[%s4 + $0x120] sm:$0xff]
  %v1712 = vld [vmem:[%s4 + $0x128] sm:$0xff]
  %v1713 = vld [vmem:[%s4 + $0x130] sm:$0xff]
  %v1714 = vld [vmem:[%s4 + $0x138] sm:$0xff]
  %v1715 = vld [vmem:[%s4 + $0x140] sm:$0xff]
  %v1716 = vld [vmem:[%s4 + $0x148] sm:$0xff]
  %v1717 = vld [vmem:[%s4 + $0x150] sm:$0xff]
  %v1718 = vld [vmem:[%s4 + $0x158] sm:$0xff]
  %v1719 = vld [vmem:[%s4 + $0x160] sm:$0xff]
  %v1720 = vld [vmem:[%s4 + $0x168] sm:$0xff]
  %v1721 = vld [vmem:[%s4 + $0x170] sm:$0xff]
  %v1722 = vld [vmem:[%s4 + $0x178] sm:$0xff]
  %v1723 = vld [vmem:[%s4 + $0x180] sm:$0xff]
  %v1724 = vld [vmem:[%s4 + $0x188] sm:$0xff]
  %v1725 = vld [vmem:[%s4 + $0x190] sm:$0xff]
  %v1726 = vld [vmem:[%s4 + $0x198] sm:$0xff]
  %v1727 = vld [vmem:[%s4 + $0x1a0] sm:$0xff]
  %v1728 = vld [vmem:[%s4 + $0x1a8] sm:$0xff]
  %v1729 = vld [vmem:[%s4 + $0x1b0] sm:$0xff]
  %v1730 = vld [vmem:[%s4 + $0x1b8] sm:$0xff]
  %v1731 = vld [vmem:[%s4 + $0x1c0] sm:$0xff]
  %v1732 = vld [vmem:[%s4 + $0x1c8] sm:$0xff]
  %v1733 = vld [vmem:[%s4 + $0x1d0] sm:$0xff]
  %v1734 = vld [vmem:[%s4 + $0x1d8] sm:$0xff]
  %v1735 = vld [vmem:[%s4 + $0x1e0] sm:$0xff]
  %v1736 = vld [vmem:[%s4 + $0x1e8] sm:$0xff]
  %v1737 = vld [vmem:[%s4 + $0x1f0] sm:$0xff]
  %v1738 = vld [vmem:[%s4 + $0x1f8] sm:$0xff]
  %v1739 = vld [vmem:[%s5] sm:$0x3]
  %v1741 = vperm.slane %v1739, 0
  %v1742 = vperm.slane %v1739, 1
  %v1809 = vunpack.c.l.b16 %v1675
  %v1810 = vunpack.c.h.b16 %v1675
  %v1811 = vunpack.c.l.b16 %v1676
  %v1812 = vunpack.c.h.b16 %v1676
  %v1813 = vunpack.c.l.b16 %v1677
  %v1814 = vunpack.c.h.b16 %v1677
  %v1815 = vunpack.c.l.b16 %v1678
  %v1816 = vunpack.c.h.b16 %v1678
  %v1817 = vunpack.c.l.b16 %v1679
  %v1818 = vunpack.c.h.b16 %v1679
  %v1819 = vunpack.c.l.b16 %v1680
  %v1820 = vunpack.c.h.b16 %v1680
  %v1821 = vunpack.c.l.b16 %v1681
  %v1822 = vunpack.c.h.b16 %v1681
  %v1823 = vunpack.c.l.b16 %v1682
  %v1824 = vunpack.c.h.b16 %v1682
  %v1825 = vunpack.c.l.b16 %v1683
  %v1826 = vunpack.c.h.b16 %v1683
  %v1827 = vunpack.c.l.b16 %v1684
  %v1828 = vunpack.c.h.b16 %v1684
  %v1829 = vunpack.c.l.b16 %v1685
  %v1830 = vunpack.c.h.b16 %v1685
  %v1831 = vunpack.c.l.b16 %v1686
  %v1832 = vunpack.c.h.b16 %v1686
  %v1833 = vunpack.c.l.b16 %v1687
  %v1834 = vunpack.c.h.b16 %v1687
  %v1835 = vunpack.c.l.b16 %v1688
  %v1836 = vunpack.c.h.b16 %v1688
  %v1837 = vunpack.c.l.b16 %v1689
  %v1838 = vunpack.c.h.b16 %v1689
  %v1839 = vunpack.c.l.b16 %v1690
  %v1840 = vunpack.c.h.b16 %v1690
  %v1841 = vunpack.c.l.b16 %v1691
  %v1842 = vunpack.c.h.b16 %v1691
  %v1843 = vunpack.c.l.b16 %v1692
  %v1844 = vunpack.c.h.b16 %v1692
  %v1845 = vunpack.c.l.b16 %v1693
  %v1846 = vunpack.c.h.b16 %v1693
  %v1847 = vunpack.c.l.b16 %v1694
  %v1848 = vunpack.c.h.b16 %v1694
  %v1849 = vunpack.c.l.b16 %v1695
  %v1850 = vunpack.c.h.b16 %v1695
  %v1851 = vunpack.c.l.b16 %v1696
  %v1852 = vunpack.c.h.b16 %v1696
  %v1853 = vunpack.c.l.b16 %v1697
  %v1854 = vunpack.c.h.b16 %v1697
  %v1855 = vunpack.c.l.b16 %v1698
  %v1856 = vunpack.c.h.b16 %v1698
  %v1857 = vunpack.c.l.b16 %v1699
  %v1858 = vunpack.c.h.b16 %v1699
  %v1859 = vunpack.c.l.b16 %v1700
  %v1860 = vunpack.c.h.b16 %v1700
  %v1861 = vunpack.c.l.b16 %v1701
  %v1862 = vunpack.c.h.b16 %v1701
  %v1863 = vunpack.c.l.b16 %v1702
  %v1864 = vunpack.c.h.b16 %v1702
  %v1865 = vunpack.c.l.b16 %v1703
  %v1866 = vunpack.c.h.b16 %v1703
  %v1867 = vunpack.c.l.b16 %v1704
  %v1868 = vunpack.c.h.b16 %v1704
  %v1869 = vunpack.c.l.b16 %v1705
  %v1870 = vunpack.c.h.b16 %v1705
  %v1871 = vunpack.c.l.b16 %v1706
  %v1872 = vunpack.c.h.b16 %v1706
  %v1873 = vunpack.c.l.b16 %v1707
  %v1874 = vunpack.c.h.b16 %v1707
  %v1875 = vunpack.c.l.b16 %v1708
  %v1876 = vunpack.c.h.b16 %v1708
  %v1877 = vunpack.c.l.b16 %v1709
  %v1878 = vunpack.c.h.b16 %v1709
  %v1879 = vunpack.c.l.b16 %v1710
  %v1880 = vunpack.c.h.b16 %v1710
  %v1881 = vunpack.c.l.b16 %v1711
  %v1882 = vunpack.c.h.b16 %v1711
  %v1883 = vunpack.c.l.b16 %v1712
  %v1884 = vunpack.c.h.b16 %v1712
  %v1885 = vunpack.c.l.b16 %v1713
  %v1886 = vunpack.c.h.b16 %v1713
  %v1887 = vunpack.c.l.b16 %v1714
  %v1888 = vunpack.c.h.b16 %v1714
  %v1889 = vunpack.c.l.b16 %v1715
  %v1890 = vunpack.c.h.b16 %v1715
  %v1891 = vunpack.c.l.b16 %v1716
  %v1892 = vunpack.c.h.b16 %v1716
  %v1893 = vunpack.c.l.b16 %v1717
  %v1894 = vunpack.c.h.b16 %v1717
  %v1895 = vunpack.c.l.b16 %v1718
  %v1896 = vunpack.c.h.b16 %v1718
  %v1897 = vunpack.c.l.b16 %v1719
  %v1898 = vunpack.c.h.b16 %v1719
  %v1899 = vunpack.c.l.b16 %v1720
  %v1900 = vunpack.c.h.b16 %v1720
  %v1901 = vunpack.c.l.b16 %v1721
  %v1902 = vunpack.c.h.b16 %v1721
  %v1903 = vunpack.c.l.b16 %v1722
  %v1904 = vunpack.c.h.b16 %v1722
  %v1905 = vunpack.c.l.b16 %v1723
  %v1906 = vunpack.c.h.b16 %v1723
  %v1907 = vunpack.c.l.b16 %v1724
  %v1908 = vunpack.c.h.b16 %v1724
  %v1909 = vunpack.c.l.b16 %v1725
  %v1910 = vunpack.c.h.b16 %v1725
  %v1911 = vunpack.c.l.b16 %v1726
  %v1912 = vunpack.c.h.b16 %v1726
  %v1913 = vunpack.c.l.b16 %v1727
  %v1914 = vunpack.c.h.b16 %v1727
  %v1915 = vunpack.c.l.b16 %v1728
  %v1916 = vunpack.c.h.b16 %v1728
  %v1917 = vunpack.c.l.b16 %v1729
  %v1918 = vunpack.c.h.b16 %v1729
  %v1919 = vunpack.c.l.b16 %v1730
  %v1920 = vunpack.c.h.b16 %v1730
  %v1921 = vunpack.c.l.b16 %v1731
  %v1922 = vunpack.c.h.b16 %v1731
  %v1923 = vunpack.c.l.b16 %v1732
  %v1924 = vunpack.c.h.b16 %v1732
  %v1925 = vunpack.c.l.b16 %v1733
  %v1926 = vunpack.c.h.b16 %v1733
  %v1927 = vunpack.c.l.b16 %v1734
  %v1928 = vunpack.c.h.b16 %v1734
  %v1929 = vunpack.c.l.b16 %v1735
  %v1930 = vunpack.c.h.b16 %v1735
  %v1931 = vunpack.c.l.b16 %v1736
  %v1932 = vunpack.c.h.b16 %v1736
  %v1933 = vunpack.c.l.b16 %v1737
  %v1934 = vunpack.c.h.b16 %v1737
  %v1935 = vunpack.c.l.b16 %v1738
  %v1936 = vunpack.c.h.b16 %v1738
  %v1937 = vpack.c.b16 %v1811, %v1809
  %v1938 = vpack.c.b16 %v1812, %v1810
  %v1939 = vpack.c.b16 %v1815, %v1813
  %v1940 = vpack.c.b16 %v1816, %v1814
  %v1941 = vpack.c.b16 %v1819, %v1817
  %v1942 = vpack.c.b16 %v1820, %v1818
  %v1943 = vpack.c.b16 %v1823, %v1821
  %v1944 = vpack.c.b16 %v1824, %v1822
  %v1945 = vpack.c.b16 %v1827, %v1825
  %v1946 = vpack.c.b16 %v1828, %v1826
  %v1947 = vpack.c.b16 %v1831, %v1829
  %v1948 = vpack.c.b16 %v1832, %v1830
  %v1949 = vpack.c.b16 %v1835, %v1833
  %v1950 = vpack.c.b16 %v1836, %v1834
  %v1951 = vpack.c.b16 %v1839, %v1837
  %v1952 = vpack.c.b16 %v1840, %v1838
  %v1953 = vpack.c.b16 %v1843, %v1841
  %v1954 = vpack.c.b16 %v1844, %v1842
  %v1955 = vpack.c.b16 %v1847, %v1845
  %v1956 = vpack.c.b16 %v1848, %v1846
  %v1957 = vpack.c.b16 %v1851, %v1849
  %v1958 = vpack.c.b16 %v1852, %v1850
  %v1959 = vpack.c.b16 %v1855, %v1853
  %v1960 = vpack.c.b16 %v1856, %v1854
  %v1961 = vpack.c.b16 %v1859, %v1857
  %v1962 = vpack.c.b16 %v1860, %v1858
  %v1963 = vpack.c.b16 %v1863, %v1861
  %v1964 = vpack.c.b16 %v1864, %v1862
  %v1965 = vpack.c.b16 %v1867, %v1865
  %v1966 = vpack.c.b16 %v1868, %v1866
  %v1967 = vpack.c.b16 %v1871, %v1869
  %v1968 = vpack.c.b16 %v1872, %v1870
  %v1969 = vpack.c.b16 %v1875, %v1873
  %v1970 = vpack.c.b16 %v1876, %v1874
  %v1971 = vpack.c.b16 %v1879, %v1877
  %v1972 = vpack.c.b16 %v1880, %v1878
  %v1973 = vpack.c.b16 %v1883, %v1881
  %v1974 = vpack.c.b16 %v1884, %v1882
  %v1975 = vpack.c.b16 %v1887, %v1885
  %v1976 = vpack.c.b16 %v1888, %v1886
  %v1977 = vpack.c.b16 %v1891, %v1889
  %v1978 = vpack.c.b16 %v1892, %v1890
  %v1979 = vpack.c.b16 %v1895, %v1893
  %v1980 = vpack.c.b16 %v1896, %v1894
  %v1981 = vpack.c.b16 %v1899, %v1897
  %v1982 = vpack.c.b16 %v1900, %v1898
  %v1983 = vpack.c.b16 %v1903, %v1901
  %v1984 = vpack.c.b16 %v1904, %v1902
  %v1985 = vpack.c.b16 %v1907, %v1905
  %v1986 = vpack.c.b16 %v1908, %v1906
  %v1987 = vpack.c.b16 %v1911, %v1909
  %v1988 = vpack.c.b16 %v1912, %v1910
  %v1989 = vpack.c.b16 %v1915, %v1913
  %v1990 = vpack.c.b16 %v1916, %v1914
  %v1991 = vpack.c.b16 %v1919, %v1917
  %v1992 = vpack.c.b16 %v1920, %v1918
  %v1993 = vpack.c.b16 %v1923, %v1921
  %v1994 = vpack.c.b16 %v1924, %v1922
  %v1995 = vpack.c.b16 %v1927, %v1925
  %v1996 = vpack.c.b16 %v1928, %v1926
  %v1997 = vpack.c.b16 %v1931, %v1929
  %v1998 = vpack.c.b16 %v1932, %v1930
  %v1999 = vpack.c.b16 %v1935, %v1933
  %v2000 = vpack.c.b16 %v1936, %v1934
  %2065 = vmatpush.bf16.msra.mxu0 %v1951
  %2066 = vmatpush.bf16.msra.mxu0 %v1949
  %2067 = vmatpush.bf16.msra.mxu0 %v1947
  %2068 = vmatpush.bf16.msra.mxu0 %v1945
  %2069 = vmatpush.bf16.msra.mxu0 %v1943
  %2070 = vmatpush.bf16.msra.mxu0 %v1941
  %2071 = vmatpush.bf16.msra.mxu0 %v1939
  %2072 = vmatpush.bf16.msra.mxu0 %v1937
  %2073 = vmatmul.bf16.gmra.mxu0 %v1671
  %v2074 = vpop.f32.mrf.mxu0
  %v2075 = vadd.f32 %v1741, %v2074
  %v2076 = vpop.f32.mrf.mxu0
  %v2077 = vadd.f32 %v1741, %v2076
  %2078 = vdwg.mxu0
  %2079 = vmatpush.bf16.msra.mxu0 %v1967
  %2080 = vmatpush.bf16.msra.mxu0 %v1965
  %2081 = vmatpush.bf16.msra.mxu0 %v1963
  %2082 = vmatpush.bf16.msra.mxu0 %v1961
  %2083 = vmatpush.bf16.msra.mxu0 %v1959
  %2084 = vmatpush.bf16.msra.mxu0 %v1957
  %2085 = vmatpush.bf16.msra.mxu0 %v1955
  %2086 = vmatpush.bf16.msra.mxu0 %v1953
  %2087 = vmatmul.bf16.gmra.mxu0 %v1672
  %v2088 = vpop.f32.mrf.mxu0
  %v2089 = vadd.f32 %v2075, %v2088
  %v2090 = vpop.f32.mrf.mxu0
  %v2091 = vadd.f32 %v2077, %v2090
  %2092 = vdwg.mxu0
  %2093 = vmatpush.bf16.msra.mxu0 %v1983
  %2094 = vmatpush.bf16.msra.mxu0 %v1981
  %2095 = vmatpush.bf16.msra.mxu0 %v1979
  %2096 = vmatpush.bf16.msra.mxu0 %v1977
  %2097 = vmatpush.bf16.msra.mxu0 %v1975
  %2098 = vmatpush.bf16.msra.mxu0 %v1973
  %2099 = vmatpush.bf16.msra.mxu0 %v1971
  %2100 = vmatpush.bf16.msra.mxu0 %v1969
  %2101 = vmatmul.bf16.gmra.mxu0 %v1673
  %v2102 = vpop.f32.mrf.mxu0
  %v2103 = vadd.f32 %v2089, %v2102
  %v2104 = vpop.f32.mrf.mxu0
  %v2105 = vadd.f32 %v2091, %v2104
  %2106 = vdwg.mxu0
  %2107 = vmatpush.bf16.msra.mxu0 %v1999
  %2108 = vmatpush.bf16.msra.mxu0 %v1997
  %2109 = vmatpush.bf16.msra.mxu0 %v1995
  %2110 = vmatpush.bf16.msra.mxu0 %v1993
  %2111 = vmatpush.bf16.msra.mxu0 %v1991
  %2112 = vmatpush.bf16.msra.mxu0 %v1989
  %2113 = vmatpush.bf16.msra.mxu0 %v1987
  %2114 = vmatpush.bf16.msra.mxu0 %v1985
  %2115 = vmatmul.bf16.gmra.mxu0 %v1674
  %v2116 = vpop.f32.mrf.mxu0
  %v2117 = vadd.f32 %v2103, %v2116
  %v2118 = vpop.f32.mrf.mxu0
  %v2119 = vadd.f32 %v2105, %v2118
  %2120 = vdwg.mxu0
  %2121 = vmatpush.bf16.msra.mxu0 %v1952
  %2122 = vmatpush.bf16.msra.mxu0 %v1950
  %2123 = vmatpush.bf16.msra.mxu0 %v1948
  %2124 = vmatpush.bf16.msra.mxu0 %v1946
  %2125 = vmatpush.bf16.msra.mxu0 %v1944
  %2126 = vmatpush.bf16.msra.mxu0 %v1942
  %2127 = vmatpush.bf16.msra.mxu0 %v1940
  %2128 = vmatpush.bf16.msra.mxu0 %v1938
  %2129 = vmatmul.bf16.gmra.mxu0 %v1671
  %v2130 = vpop.f32.mrf.mxu0
  %v2131 = vadd.f32 %v1742, %v2130
  %v2132 = vpop.f32.mrf.mxu0
  %v2133 = vadd.f32 %v1742, %v2132
  %2134 = vdwg.mxu0
  %2135 = vmatpush.bf16.msra.mxu0 %v1968
  %2136 = vmatpush.bf16.msra.mxu0 %v1966
  %2137 = vmatpush.bf16.msra.mxu0 %v1964
  %2138 = vmatpush.bf16.msra.mxu0 %v1962
  %2139 = vmatpush.bf16.msra.mxu0 %v1960
  %2140 = vmatpush.bf16.msra.mxu0 %v1958
  %2141 = vmatpush.bf16.msra.mxu0 %v1956
  %2142 = vmatpush.bf16.msra.mxu0 %v1954
  %2143 = vmatmul.bf16.gmra.mxu0 %v1672
  %v2144 = vpop.f32.mrf.mxu0
  %v2145 = vadd.f32 %v2131, %v2144
  %v2146 = vpop.f32.mrf.mxu0
  %v2147 = vadd.f32 %v2133, %v2146
  %2148 = vdwg.mxu0
  %2149 = vmatpush.bf16.msra.mxu0 %v1984
  %2150 = vmatpush.bf16.msra.mxu0 %v1982
  %2151 = vmatpush.bf16.msra.mxu0 %v1980
  %2152 = vmatpush.bf16.msra.mxu0 %v1978
  %2153 = vmatpush.bf16.msra.mxu0 %v1976
  %2154 = vmatpush.bf16.msra.mxu0 %v1974
  %2155 = vmatpush.bf16.msra.mxu0 %v1972
  %2156 = vmatpush.bf16.msra.mxu0 %v1970
  %2157 = vmatmul.bf16.gmra.mxu0 %v1673
  %v2158 = vpop.f32.mrf.mxu0
  %v2159 = vadd.f32 %v2145, %v2158
  %v2160 = vpop.f32.mrf.mxu0
  %v2161 = vadd.f32 %v2147, %v2160
  %2162 = vdwg.mxu0
  %2163 = vmatpush.bf16.msra.mxu0 %v2000
  %2164 = vmatpush.bf16.msra.mxu0 %v1998
  %2165 = vmatpush.bf16.msra.mxu0 %v1996
  %2166 = vmatpush.bf16.msra.mxu0 %v1994
  %2167 = vmatpush.bf16.msra.mxu0 %v1992
  %2168 = vmatpush.bf16.msra.mxu0 %v1990
  %2169 = vmatpush.bf16.msra.mxu0 %v1988
  %2170 = vmatpush.bf16.msra.mxu0 %v1986
  %2171 = vmatmul.bf16.gmra.mxu0 %v1674
  %v2172 = vpop.f32.mrf.mxu0
  %v2173 = vadd.f32 %v2159, %v2172
  %v2174 = vpop.f32.mrf.mxu0
  %v2175 = vadd.f32 %v2161, %v2174
  %2176 = vdwg.mxu0
  %v2177 = vld [vmem:[%s1] sm:$0xff]
  %v2178 = vld [vmem:[%s1 + $0x8] sm:$0xff]
  %v2179 = vmul.f32 %v2173, 0.5
  %v2180 = vmul.f32 %v2175, 0.5
  %v2181 = vmul.f32 %v2179, 1.442695
  %v2182 = vpow.pop %v2181
  %v2183 = vmul.f32 %v2180, 1.442695
  %v2184 = vpow.pop %v2183
  %v2185 = vmul.f32 %v2177, %v2182
  %v2186 = vmul.f32 %v2178, %v2184
  %v2187 = vadd.f32 %v2185, %v2117
  %v2188 = vadd.f32 %v2186, %v2119
  %v2189 = vpack.c.bf16 %v2188, %v2187
  %v2190 = vld [vmem:[%s6] sm:$0xff]
  %v2191 = vld [vmem:[%s6 + $0x8] sm:$0xff]
  %v2192 = vld [vmem:[%s6 + $0x10] sm:$0xff]
  %v2193 = vld [vmem:[%s6 + $0x18] sm:$0xff]
  %v2194 = vld [vmem:[%s6 + $0x20] sm:$0xff]
  %v2195 = vld [vmem:[%s6 + $0x28] sm:$0xff]
  %v2196 = vld [vmem:[%s6 + $0x30] sm:$0xff]
  %v2197 = vld [vmem:[%s6 + $0x38] sm:$0xff]
  %v2198 = vld [vmem:[%s6 + $0x40] sm:$0xff]
  %v2199 = vld [vmem:[%s6 + $0x48] sm:$0xff]
  %v2200 = vld [vmem:[%s6 + $0x50] sm:$0xff]
  %v2201 = vld [vmem:[%s6 + $0x58] sm:$0xff]
  %v2202 = vld [vmem:[%s6 + $0x60] sm:$0xff]
  %v2203 = vld [vmem:[%s6 + $0x68] sm:$0xff]
  %v2204 = vld [vmem:[%s6 + $0x70] sm:$0xff]
  %v2205 = vld [vmem:[%s6 + $0x78] sm:$0xff]
  %v2206 = vld [vmem:[%s6 + $0x80] sm:$0xff]
  %v2207 = vld [vmem:[%s6 + $0x88] sm:$0xff]
  %v2208 = vld [vmem:[%s6 + $0x90] sm:$0xff]
  %v2209 = vld [vmem:[%s6 + $0x98] sm:$0xff]
  %v2210 = vld [vmem:[%s6 + $0xa0] sm:$0xff]
  %v2211 = vld [vmem:[%s6 + $0xa8] sm:$0xff]
  %v2212 = vld [vmem:[%s6 + $0xb0] sm:$0xff]
  %v2213 = vld [vmem:[%s6 + $0xb8] sm:$0xff]
  %v2214 = vld [vmem:[%s6 + $0xc0] sm:$0xff]
  %v2215 = vld [vmem:[%s6 + $0xc8] sm:$0xff]
  %v2216 = vld [vmem:[%s6 + $0xd0] sm:$0xff]
  %v2217 = vld [vmem:[%s6 + $0xd8] sm:$0xff]
  %v2218 = vld [vmem:[%s6 + $0xe0] sm:$0xff]
  %v2219 = vld [vmem:[%s6 + $0xe8] sm:$0xff]
  %v2220 = vld [vmem:[%s6 + $0xf0] sm:$0xff]
  %v2221 = vld [vmem:[%s6 + $0xf8] sm:$0xff]
  %v2222 = vld [vmem:[%s7] sm:$0xf]
  %v2224 = vperm.slane %v2222, 0
  %v2225 = vperm.slane %v2222, 1
  %v2226 = vperm.slane %v2222, 2
  %v2227 = vperm.slane %v2222, 3
  %v2264 = vunpack.c.l.b16 %v2190
  %v2265 = vunpack.c.h.b16 %v2190
  %v2266 = vunpack.c.l.b16 %v2191
  %v2267 = vunpack.c.h.b16 %v2191
  %v2268 = vunpack.c.l.b16 %v2192
  %v2269 = vunpack.c.h.b16 %v2192
  %v2270 = vunpack.c.l.b16 %v2193
  %v2271 = vunpack.c.h.b16 %v2193
  %v2272 = vunpack.c.l.b16 %v2194
  %v2273 = vunpack.c.h.b16 %v2194
  %v2274 = vunpack.c.l.b16 %v2195
  %v2275 = vunpack.c.h.b16 %v2195
  %v2276 = vunpack.c.l.b16 %v2196
  %v2277 = vunpack.c.h.b16 %v2196
  %v2278 = vunpack.c.l.b16 %v2197
  %v2279 = vunpack.c.h.b16 %v2197
  %v2280 = vunpack.c.l.b16 %v2198
  %v2281 = vunpack.c.h.b16 %v2198
  %v2282 = vunpack.c.l.b16 %v2199
  %v2283 = vunpack.c.h.b16 %v2199
  %v2284 = vunpack.c.l.b16 %v2200
  %v2285 = vunpack.c.h.b16 %v2200
  %v2286 = vunpack.c.l.b16 %v2201
  %v2287 = vunpack.c.h.b16 %v2201
  %v2288 = vunpack.c.l.b16 %v2202
  %v2289 = vunpack.c.h.b16 %v2202
  %v2290 = vunpack.c.l.b16 %v2203
  %v2291 = vunpack.c.h.b16 %v2203
  %v2292 = vunpack.c.l.b16 %v2204
  %v2293 = vunpack.c.h.b16 %v2204
  %v2294 = vunpack.c.l.b16 %v2205
  %v2295 = vunpack.c.h.b16 %v2205
  %v2296 = vunpack.c.l.b16 %v2206
  %v2297 = vunpack.c.h.b16 %v2206
  %v2298 = vunpack.c.l.b16 %v2207
  %v2299 = vunpack.c.h.b16 %v2207
  %v2300 = vunpack.c.l.b16 %v2208
  %v2301 = vunpack.c.h.b16 %v2208
  %v2302 = vunpack.c.l.b16 %v2209
  %v2303 = vunpack.c.h.b16 %v2209
  %v2304 = vunpack.c.l.b16 %v2210
  %v2305 = vunpack.c.h.b16 %v2210
  %v2306 = vunpack.c.l.b16 %v2211
  %v2307 = vunpack.c.h.b16 %v2211
  %v2308 = vunpack.c.l.b16 %v2212
  %v2309 = vunpack.c.h.b16 %v2212
  %v2310 = vunpack.c.l.b16 %v2213
  %v2311 = vunpack.c.h.b16 %v2213
  %v2312 = vunpack.c.l.b16 %v2214
  %v2313 = vunpack.c.h.b16 %v2214
  %v2314 = vunpack.c.l.b16 %v2215
  %v2315 = vunpack.c.h.b16 %v2215
  %v2316 = vunpack.c.l.b16 %v2216
  %v2317 = vunpack.c.h.b16 %v2216
  %v2318 = vunpack.c.l.b16 %v2217
  %v2319 = vunpack.c.h.b16 %v2217
  %v2320 = vunpack.c.l.b16 %v2218
  %v2321 = vunpack.c.h.b16 %v2218
  %v2322 = vunpack.c.l.b16 %v2219
  %v2323 = vunpack.c.h.b16 %v2219
  %v2324 = vunpack.c.l.b16 %v2220
  %v2325 = vunpack.c.h.b16 %v2220
  %v2326 = vunpack.c.l.b16 %v2221
  %v2327 = vunpack.c.h.b16 %v2221
  %v2328 = vpack.c.b16 %v2268, %v2264
  %v2329 = vpack.c.b16 %v2269, %v2265
  %v2330 = vpack.c.b16 %v2270, %v2266
  %v2331 = vpack.c.b16 %v2271, %v2267
  %v2332 = vpack.c.b16 %v2276, %v2272
  %v2333 = vpack.c.b16 %v2277, %v2273
  %v2334 = vpack.c.b16 %v2278, %v2274
  %v2335 = vpack.c.b16 %v2279, %v2275
  %v2336 = vpack.c.b16 %v2284, %v2280
  %v2337 = vpack.c.b16 %v2285, %v2281
  %v2338 = vpack.c.b16 %v2286, %v2282
  %v2339 = vpack.c.b16 %v2287, %v2283
  %v2340 = vpack.c.b16 %v2292, %v2288
  %v2341 = vpack.c.b16 %v2293, %v2289
  %v2342 = vpack.c.b16 %v2294, %v2290
  %v2343 = vpack.c.b16 %v2295, %v2291
  %v2344 = vpack.c.b16 %v2300, %v2296
  %v2345 = vpack.c.b16 %v2301, %v2297
  %v2346 = vpack.c.b16 %v2302, %v2298
  %v2347 = vpack.c.b16 %v2303, %v2299
  %v2348 = vpack.c.b16 %v2308, %v2304
  %v2349 = vpack.c.b16 %v2309, %v2305
  %v2350 = vpack.c.b16 %v2310, %v2306
  %v2351 = vpack.c.b16 %v2311, %v2307
  %v2352 = vpack.c.b16 %v2316, %v2312
  %v2353 = vpack.c.b16 %v2317, %v2313
  %v2354 = vpack.c.b16 %v2318, %v2314
  %v2355 = vpack.c.b16 %v2319, %v2315
  %v2356 = vpack.c.b16 %v2324, %v2320
  %v2357 = vpack.c.b16 %v2325, %v2321
  %v2358 = vpack.c.b16 %v2326, %v2322
  %v2359 = vpack.c.b16 %v2327, %v2323
  %2392 = vmatpush.bf16.msra.mxu0 %v2356
  %2393 = vmatpush.bf16.msra.mxu0 %v2352
  %2394 = vmatpush.bf16.msra.mxu0 %v2348
  %2395 = vmatpush.bf16.msra.mxu0 %v2344
  %2396 = vmatpush.bf16.msra.mxu0 %v2340
  %2397 = vmatpush.bf16.msra.mxu0 %v2336
  %2398 = vmatpush.bf16.msra.mxu0 %v2332
  %2399 = vmatpush.bf16.msra.mxu0 %v2328
  %2400 = vmatmul.bf16.gmra.mxu0 %v2189
  %v2401 = vpop.f32.mrf.mxu0
  %v2402 = vadd.f32 %v2224, %v2401
  %v2403 = vpop.f32.mrf.mxu0
  %v2404 = vadd.f32 %v2224, %v2403
  %2405 = vdwg.mxu0
  %2406 = vmatpush.bf16.msra.mxu0 %v2357
  %2407 = vmatpush.bf16.msra.mxu0 %v2353
  %2408 = vmatpush.bf16.msra.mxu0 %v2349
  %2409 = vmatpush.bf16.msra.mxu0 %v2345
  %2410 = vmatpush.bf16.msra.mxu0 %v2341
  %2411 = vmatpush.bf16.msra.mxu0 %v2337
  %2412 = vmatpush.bf16.msra.mxu0 %v2333
  %2413 = vmatpush.bf16.msra.mxu0 %v2329
  %2414 = vmatmul.bf16.gmra.mxu0 %v2189
  %v2415 = vpop.f32.mrf.mxu0
  %v2416 = vadd.f32 %v2225, %v2415
  %v2417 = vpop.f32.mrf.mxu0
  %v2418 = vadd.f32 %v2225, %v2417
  %2419 = vdwg.mxu0
  %2420 = vmatpush.bf16.msra.mxu0 %v2358
  %2421 = vmatpush.bf16.msra.mxu0 %v2354
  %2422 = vmatpush.bf16.msra.mxu0 %v2350
  %2423 = vmatpush.bf16.msra.mxu0 %v2346
  %2424 = vmatpush.bf16.msra.mxu0 %v2342
  %2425 = vmatpush.bf16.msra.mxu0 %v2338
  %2426 = vmatpush.bf16.msra.mxu0 %v2334
  %2427 = vmatpush.bf16.msra.mxu0 %v2330
  %2428 = vmatmul.bf16.gmra.mxu0 %v2189
  %v2429 = vpop.f32.mrf.mxu0
  %v2430 = vadd.f32 %v2226, %v2429
  %v2431 = vpop.f32.mrf.mxu0
  %v2432 = vadd.f32 %v2226, %v2431
  %2433 = vdwg.mxu0
  %2434 = vmatpush.bf16.msra.mxu0 %v2359
  %2435 = vmatpush.bf16.msra.mxu0 %v2355
  %2436 = vmatpush.bf16.msra.mxu0 %v2351
  %2437 = vmatpush.bf16.msra.mxu0 %v2347
  %2438 = vmatpush.bf16.msra.mxu0 %v2343
  %2439 = vmatpush.bf16.msra.mxu0 %v2339
  %2440 = vmatpush.bf16.msra.mxu0 %v2335
  %2441 = vmatpush.bf16.msra.mxu0 %v2331
  %2442 = vmatmul.bf16.gmra.mxu0 %v2189
  %v2443 = vpop.f32.mrf.mxu0
  %v2444 = vadd.f32 %v2227, %v2443
  %v2445 = vpop.f32.mrf.mxu0
  %v2446 = vadd.f32 %v2227, %v2445
  %2447 = vdwg.mxu0
  %v2448 = vmax.f32 %v2402, 0.0
  %v2449 = vmax.f32 %v2416, 0.0
  %v2450 = vmax.f32 %v2430, 0.0
  %v2451 = vmax.f32 %v2444, 0.0
  %v2452 = vmax.f32 %v2404, 0.0
  %v2453 = vmax.f32 %v2418, 0.0
  %v2454 = vmax.f32 %v2432, 0.0
  %v2455 = vmax.f32 %v2446, 0.0
  %v2456 = vpack.c.bf16 %v2452, %v2448
  %v2457 = vpack.c.bf16 %v2453, %v2449
  %v2458 = vpack.c.bf16 %v2454, %v2450
  %v2459 = vpack.c.bf16 %v2455, %v2451
  %v2460 = vld [vmem:[%s8] sm:$0xff]
  %v2461 = vld [vmem:[%s8 + $0x8] sm:$0xff]
  %v2462 = vld [vmem:[%s8 + $0x10] sm:$0xff]
  %v2463 = vld [vmem:[%s8 + $0x18] sm:$0xf]
  %v2464 = vld [vmem:[%s8 + $0x1c] sm:$0xff]
  %v2465 = vld [vmem:[%s8 + $0x24] sm:$0xff]
  %v2466 = vld [vmem:[%s8 + $0x2c] sm:$0xff]
  %v2467 = vld [vmem:[%s8 + $0x34] sm:$0xf]
  %v2468 = vld [vmem:[%s8 + $0x38] sm:$0xff]
  %v2469 = vld [vmem:[%s8 + $0x40] sm:$0xff]
  %v2470 = vld [vmem:[%s8 + $0x48] sm:$0xff]
  %v2471 = vld [vmem:[%s8 + $0x50] sm:$0xf]
  %v2472 = vld [vmem:[%s8 + $0x54] sm:$0xff]
  %v2473 = vld [vmem:[%s8 + $0x5c] sm:$0xff]
  %v2474 = vld [vmem:[%s8 + $0x64] sm:$0xff]
  %v2475 = vld [vmem:[%s8 + $0x6c] sm:$0xf]
  %v2476 = vld [vmem:[%s8 + $0x70] sm:$0xff]
  %v2477 = vld [vmem:[%s8 + $0x78] sm:$0xff]
  %v2478 = vld [vmem:[%s8 + $0x80] sm:$0xff]
  %v2479 = vld [vmem:[%s8 + $0x88] sm:$0xf]
  %v2480 = vld [vmem:[%s8 + $0x8c] sm:$0xff]
  %v2481 = vld [vmem:[%s8 + $0x94] sm:$0xff]
  %v2482 = vld [vmem:[%s8 + $0x9c] sm:$0xff]
  %v2483 = vld [vmem:[%s8 + $0xa4] sm:$0xf]
  %v2484 = vld [vmem:[%s8 + $0xa8] sm:$0xff]
  %v2485 = vld [vmem:[%s8 + $0xb0] sm:$0xff]
  %v2486 = vld [vmem:[%s8 + $0xb8] sm:$0xff]
  %v2487 = vld [vmem:[%s8 + $0xc0] sm:$0xf]
  %v2488 = vld [vmem:[%s8 + $0xc4] sm:$0xff]
  %v2489 = vld [vmem:[%s8 + $0xcc] sm:$0xff]
  %v2490 = vld [vmem:[%s8 + $0xd4] sm:$0xff]
  %v2491 = vld [vmem:[%s8 + $0xdc] sm:$0xf]
  %v2492 = vld [vmem:[%s8 + $0xe0] sm:$0xff]
  %v2493 = vld [vmem:[%s8 + $0xe8] sm:$0xff]
  %v2494 = vld [vmem:[%s8 + $0xf0] sm:$0xff]
  %v2495 = vld [vmem:[%s8 + $0xf8] sm:$0xf]
  %v2496 = vld [vmem:[%s8 + $0xfc] sm:$0xff]
  %v2497 = vld [vmem:[%s8 + $0x104] sm:$0xff]
  %v2498 = vld [vmem:[%s8 + $0x10c] sm:$0xff]
  %v2499 = vld [vmem:[%s8 + $0x114] sm:$0xf]
  %v2500 = vld [vmem:[%s8 + $0x118] sm:$0xff]
  %v2501 = vld [vmem:[%s8 + $0x120] sm:$0xff]
  %v2502 = vld [vmem:[%s8 + $0x128] sm:$0xff]
  %v2503 = vld [vmem:[%s8 + $0x130] sm:$0xf]
  %v2504 = vld [vmem:[%s8 + $0x134] sm:$0xff]
  %v2505 = vld [vmem:[%s8 + $0x13c] sm:$0xff]
  %v2506 = vld [vmem:[%s8 + $0x144] sm:$0xff]
  %v2507 = vld [vmem:[%s8 + $0x14c] sm:$0xf]
  %v2508 = vld [vmem:[%s8 + $0x150] sm:$0xff]
  %v2509 = vld [vmem:[%s8 + $0x158] sm:$0xff]
  %v2510 = vld [vmem:[%s8 + $0x160] sm:$0xff]
  %v2511 = vld [vmem:[%s8 + $0x168] sm:$0xf]
  %v2512 = vld [vmem:[%s8 + $0x16c] sm:$0xff]
  %v2513 = vld [vmem:[%s8 + $0x174] sm:$0xff]
  %v2514 = vld [vmem:[%s8 + $0x17c] sm:$0xff]
  %v2515 = vld [vmem:[%s8 + $0x184] sm:$0xf]
  %v2516 = vld [vmem:[%s8 + $0x188] sm:$0xff]
  %v2517 = vld [vmem:[%s8 + $0x190] sm:$0xff]
  %v2518 = vld [vmem:[%s8 + $0x198] sm:$0xff]
  %v2519 = vld [vmem:[%s8 + $0x1a0] sm:$0xf]
  %v2520 = vld [vmem:[%s8 + $0x1a4] sm:$0xff]
  %v2521 = vld [vmem:[%s8 + $0x1ac] sm:$0xff]
  %v2522 = vld [vmem:[%s8 + $0x1b4] sm:$0xff]
  %v2523 = vld [vmem:[%s8 + $0x1bc] sm:$0xf]
  %v2524 = vld [vmem:[%s8 + $0x1c0] sm:$0xff]
  %v2525 = vld [vmem:[%s8 + $0x1c8] sm:$0xff]
  %v2526 = vld [vmem:[%s8 + $0x1d0] sm:$0xff]
  %v2527 = vld [vmem:[%s8 + $0x1d8] sm:$0xf]
  %v2528 = vld [vmem:[%s8 + $0x1dc] sm:$0xff]
  %v2529 = vld [vmem:[%s8 + $0x1e4] sm:$0xff]
  %v2530 = vld [vmem:[%s8 + $0x1ec] sm:$0xff]
  %v2531 = vld [vmem:[%s8 + $0x1f4] sm:$0xf]
  %v2532 = vld [vmem:[%s8 + $0x1f8] sm:$0xff]
  %v2533 = vld [vmem:[%s8 + $0x200] sm:$0xff]
  %v2534 = vld [vmem:[%s8 + $0x208] sm:$0xff]
  %v2535 = vld [vmem:[%s8 + $0x210] sm:$0xf]
  %v2536 = vld [vmem:[%s8 + $0x214] sm:$0xff]
  %v2537 = vld [vmem:[%s8 + $0x21c] sm:$0xff]
  %v2538 = vld [vmem:[%s8 + $0x224] sm:$0xff]
  %v2539 = vld [vmem:[%s8 + $0x22c] sm:$0xf]
  %v2540 = vld [vmem:[%s8 + $0x230] sm:$0xff]
  %v2541 = vld [vmem:[%s8 + $0x238] sm:$0xff]
  %v2542 = vld [vmem:[%s8 + $0x240] sm:$0xff]
  %v2543 = vld [vmem:[%s8 + $0x248] sm:$0xf]
  %v2544 = vld [vmem:[%s8 + $0x24c] sm:$0xff]
  %v2545 = vld [vmem:[%s8 + $0x254] sm:$0xff]
  %v2546 = vld [vmem:[%s8 + $0x25c] sm:$0xff]
  %v2547 = vld [vmem:[%s8 + $0x264] sm:$0xf]
  %v2548 = vld [vmem:[%s8 + $0x268] sm:$0xff]
  %v2549 = vld [vmem:[%s8 + $0x270] sm:$0xff]
  %v2550 = vld [vmem:[%s8 + $0x278] sm:$0xff]
  %v2551 = vld [vmem:[%s8 + $0x280] sm:$0xf]
  %v2552 = vld [vmem:[%s8 + $0x284] sm:$0xff]
  %v2553 = vld [vmem:[%s8 + $0x28c] sm:$0xff]
  %v2554 = vld [vmem:[%s8 + $0x294] sm:$0xff]
  %v2555 = vld [vmem:[%s8 + $0x29c] sm:$0xf]
  %v2556 = vld [vmem:[%s8 + $0x2a0] sm:$0xff]
  %v2557 = vld [vmem:[%s8 + $0x2a8] sm:$0xff]
  %v2558 = vld [vmem:[%s8 + $0x2b0] sm:$0xff]
  %v2559 = vld [vmem:[%s8 + $0x2b8] sm:$0xf]
  %v2560 = vld [vmem:[%s8 + $0x2bc] sm:$0xff]
  %v2561 = vld [vmem:[%s8 + $0x2c4] sm:$0xff]
  %v2562 = vld [vmem:[%s8 + $0x2cc] sm:$0xff]
  %v2563 = vld [vmem:[%s8 + $0x2d4] sm:$0xf]
  %v2564 = vld [vmem:[%s8 + $0x2d8] sm:$0xff]
  %v2565 = vld [vmem:[%s8 + $0x2e0] sm:$0xff]
  %v2566 = vld [vmem:[%s8 + $0x2e8] sm:$0xff]
  %v2567 = vld [vmem:[%s8 + $0x2f0] sm:$0xf]
  %v2568 = vld [vmem:[%s8 + $0x2f4] sm:$0xff]
  %v2569 = vld [vmem:[%s8 + $0x2fc] sm:$0xff]
  %v2570 = vld [vmem:[%s8 + $0x304] sm:$0xff]
  %v2571 = vld [vmem:[%s8 + $0x30c] sm:$0xf]
  %v2572 = vld [vmem:[%s8 + $0x310] sm:$0xff]
  %v2573 = vld [vmem:[%s8 + $0x318] sm:$0xff]
  %v2574 = vld [vmem:[%s8 + $0x320] sm:$0xff]
  %v2575 = vld [vmem:[%s8 + $0x328] sm:$0xf]
  %v2576 = vld [vmem:[%s8 + $0x32c] sm:$0xff]
  %v2577 = vld [vmem:[%s8 + $0x334] sm:$0xff]
  %v2578 = vld [vmem:[%s8 + $0x33c] sm:$0xff]
  %v2579 = vld [vmem:[%s8 + $0x344] sm:$0xf]
  %v2580 = vld [vmem:[%s8 + $0x348] sm:$0xff]
  %v2581 = vld [vmem:[%s8 + $0x350] sm:$0xff]
  %v2582 = vld [vmem:[%s8 + $0x358] sm:$0xff]
  %v2583 = vld [vmem:[%s8 + $0x360] sm:$0xf]
  %v2584 = vld [vmem:[%s8 + $0x364] sm:$0xff]
  %v2585 = vld [vmem:[%s8 + $0x36c] sm:$0xff]
  %v2586 = vld [vmem:[%s8 + $0x374] sm:$0xff]
  %v2587 = vld [vmem:[%s8 + $0x37c] sm:$0xf]
  %v2588 = vld [vmem:[%s8 + $0x380] sm:$0xff]
  %v2589 = vld [vmem:[%s8 + $0x388] sm:$0xff]
  %v2590 = vld [vmem:[%s8 + $0x390] sm:$0xff]
  %v2591 = vld [vmem:[%s8 + $0x398] sm:$0xf]
  %v2592 = vld [vmem:[%s8 + $0x39c] sm:$0xff]
  %v2593 = vld [vmem:[%s8 + $0x3a4] sm:$0xff]
  %v2594 = vld [vmem:[%s8 + $0x3ac] sm:$0xff]
  %v2595 = vld [vmem:[%s8 + $0x3b4] sm:$0xf]
  %v2596 = vld [vmem:[%s8 + $0x3b8] sm:$0xff]
  %v2597 = vld [vmem:[%s8 + $0x3c0] sm:$0xff]
  %v2598 = vld [vmem:[%s8 + $0x3c8] sm:$0xff]
  %v2599 = vld [vmem:[%s8 + $0x3d0] sm:$0xf]
  %v2600 = vld [vmem:[%s8 + $0x3d4] sm:$0xff]
  %v2601 = vld [vmem:[%s8 + $0x3dc] sm:$0xff]
  %v2602 = vld [vmem:[%s8 + $0x3e4] sm:$0xff]
  %v2603 = vld [vmem:[%s8 + $0x3ec] sm:$0xf]
  %v2604 = vld [vmem:[%s8 + $0x3f0] sm:$0xff]
  %v2605 = vld [vmem:[%s8 + $0x3f8] sm:$0xff]
  %v2606 = vld [vmem:[%s8 + $0x400] sm:$0xff]
  %v2607 = vld [vmem:[%s8 + $0x408] sm:$0xf]
  %v2608 = vld [vmem:[%s8 + $0x40c] sm:$0xff]
  %v2609 = vld [vmem:[%s8 + $0x414] sm:$0xff]
  %v2610 = vld [vmem:[%s8 + $0x41c] sm:$0xff]
  %v2611 = vld [vmem:[%s8 + $0x424] sm:$0xf]
  %v2612 = vld [vmem:[%s8 + $0x428] sm:$0xff]
  %v2613 = vld [vmem:[%s8 + $0x430] sm:$0xff]
  %v2614 = vld [vmem:[%s8 + $0x438] sm:$0xff]
  %v2615 = vld [vmem:[%s8 + $0x440] sm:$0xf]
  %v2616 = vld [vmem:[%s8 + $0x444] sm:$0xff]
  %v2617 = vld [vmem:[%s8 + $0x44c] sm:$0xff]
  %v2618 = vld [vmem:[%s8 + $0x454] sm:$0xff]
  %v2619 = vld [vmem:[%s8 + $0x45c] sm:$0xf]
  %v2620 = vld [vmem:[%s8 + $0x460] sm:$0xff]
  %v2621 = vld [vmem:[%s8 + $0x468] sm:$0xff]
  %v2622 = vld [vmem:[%s8 + $0x470] sm:$0xff]
  %v2623 = vld [vmem:[%s8 + $0x478] sm:$0xf]
  %v2624 = vld [vmem:[%s8 + $0x47c] sm:$0xff]
  %v2625 = vld [vmem:[%s8 + $0x484] sm:$0xff]
  %v2626 = vld [vmem:[%s8 + $0x48c] sm:$0xff]
  %v2627 = vld [vmem:[%s8 + $0x494] sm:$0xf]
  %v2628 = vld [vmem:[%s8 + $0x498] sm:$0xff]
  %v2629 = vld [vmem:[%s8 + $0x4a0] sm:$0xff]
  %v2630 = vld [vmem:[%s8 + $0x4a8] sm:$0xff]
  %v2631 = vld [vmem:[%s8 + $0x4b0] sm:$0xf]
  %v2632 = vld [vmem:[%s8 + $0x4b4] sm:$0xff]
  %v2633 = vld [vmem:[%s8 + $0x4bc] sm:$0xff]
  %v2634 = vld [vmem:[%s8 + $0x4c4] sm:$0xff]
  %v2635 = vld [vmem:[%s8 + $0x4cc] sm:$0xf]
  %v2636 = vld [vmem:[%s8 + $0x4d0] sm:$0xff]
  %v2637 = vld [vmem:[%s8 + $0x4d8] sm:$0xff]
  %v2638 = vld [vmem:[%s8 + $0x4e0] sm:$0xff]
  %v2639 = vld [vmem:[%s8 + $0x4e8] sm:$0xf]
  %v2640 = vld [vmem:[%s8 + $0x4ec] sm:$0xff]
  %v2641 = vld [vmem:[%s8 + $0x4f4] sm:$0xff]
  %v2642 = vld [vmem:[%s8 + $0x4fc] sm:$0xff]
  %v2643 = vld [vmem:[%s8 + $0x504] sm:$0xf]
  %v2644 = vld [vmem:[%s8 + $0x508] sm:$0xff]
  %v2645 = vld [vmem:[%s8 + $0x510] sm:$0xff]
  %v2646 = vld [vmem:[%s8 + $0x518] sm:$0xff]
  %v2647 = vld [vmem:[%s8 + $0x520] sm:$0xf]
  %v2648 = vld [vmem:[%s8 + $0x524] sm:$0xff]
  %v2649 = vld [vmem:[%s8 + $0x52c] sm:$0xff]
  %v2650 = vld [vmem:[%s8 + $0x534] sm:$0xff]
  %v2651 = vld [vmem:[%s8 + $0x53c] sm:$0xf]
  %v2652 = vld [vmem:[%s8 + $0x540] sm:$0xff]
  %v2653 = vld [vmem:[%s8 + $0x548] sm:$0xff]
  %v2654 = vld [vmem:[%s8 + $0x550] sm:$0xff]
  %v2655 = vld [vmem:[%s8 + $0x558] sm:$0xf]
  %v2656 = vld [vmem:[%s8 + $0x55c] sm:$0xff]
  %v2657 = vld [vmem:[%s8 + $0x564] sm:$0xff]
  %v2658 = vld [vmem:[%s8 + $0x56c] sm:$0xff]
  %v2659 = vld [vmem:[%s8 + $0x574] sm:$0xf]
  %v2660 = vld [vmem:[%s8 + $0x578] sm:$0xff]
  %v2661 = vld [vmem:[%s8 + $0x580] sm:$0xff]
  %v2662 = vld [vmem:[%s8 + $0x588] sm:$0xff]
  %v2663 = vld [vmem:[%s8 + $0x590] sm:$0xf]
  %v2664 = vld [vmem:[%s8 + $0x594] sm:$0xff]
  %v2665 = vld [vmem:[%s8 + $0x59c] sm:$0xff]
  %v2666 = vld [vmem:[%s8 + $0x5a4] sm:$0xff]
  %v2667 = vld [vmem:[%s8 + $0x5ac] sm:$0xf]
  %v2668 = vld [vmem:[%s8 + $0x5b0] sm:$0xff]
  %v2669 = vld [vmem:[%s8 + $0x5b8] sm:$0xff]
  %v2670 = vld [vmem:[%s8 + $0x5c0] sm:$0xff]
  %v2671 = vld [vmem:[%s8 + $0x5c8] sm:$0xf]
  %v2672 = vld [vmem:[%s8 + $0x5cc] sm:$0xff]
  %v2673 = vld [vmem:[%s8 + $0x5d4] sm:$0xff]
  %v2674 = vld [vmem:[%s8 + $0x5dc] sm:$0xff]
  %v2675 = vld [vmem:[%s8 + $0x5e4] sm:$0xf]
  %v2676 = vld [vmem:[%s8 + $0x5e8] sm:$0xff]
  %v2677 = vld [vmem:[%s8 + $0x5f0] sm:$0xff]
  %v2678 = vld [vmem:[%s8 + $0x5f8] sm:$0xff]
  %v2679 = vld [vmem:[%s8 + $0x600] sm:$0xf]
  %v2680 = vld [vmem:[%s8 + $0x604] sm:$0xff]
  %v2681 = vld [vmem:[%s8 + $0x60c] sm:$0xff]
  %v2682 = vld [vmem:[%s8 + $0x614] sm:$0xff]
  %v2683 = vld [vmem:[%s8 + $0x61c] sm:$0xf]
  %v2684 = vld [vmem:[%s8 + $0x620] sm:$0xff]
  %v2685 = vld [vmem:[%s8 + $0x628] sm:$0xff]
  %v2686 = vld [vmem:[%s8 + $0x630] sm:$0xff]
  %v2687 = vld [vmem:[%s8 + $0x638] sm:$0xf]
  %v2688 = vld [vmem:[%s8 + $0x63c] sm:$0xff]
  %v2689 = vld [vmem:[%s8 + $0x644] sm:$0xff]
  %v2690 = vld [vmem:[%s8 + $0x64c] sm:$0xff]
  %v2691 = vld [vmem:[%s8 + $0x654] sm:$0xf]
  %v2692 = vld [vmem:[%s8 + $0x658] sm:$0xff]
  %v2693 = vld [vmem:[%s8 + $0x660] sm:$0xff]
  %v2694 = vld [vmem:[%s8 + $0x668] sm:$0xff]
  %v2695 = vld [vmem:[%s8 + $0x670] sm:$0xf]
  %v2696 = vld [vmem:[%s8 + $0x674] sm:$0xff]
  %v2697 = vld [vmem:[%s8 + $0x67c] sm:$0xff]
  %v2698 = vld [vmem:[%s8 + $0x684] sm:$0xff]
  %v2699 = vld [vmem:[%s8 + $0x68c] sm:$0xf]
  %v2700 = vld [vmem:[%s8 + $0x690] sm:$0xff]
  %v2701 = vld [vmem:[%s8 + $0x698] sm:$0xff]
  %v2702 = vld [vmem:[%s8 + $0x6a0] sm:$0xff]
  %v2703 = vld [vmem:[%s8 + $0x6a8] sm:$0xf]
  %v2704 = vld [vmem:[%s8 + $0x6ac] sm:$0xff]
  %v2705 = vld [vmem:[%s8 + $0x6b4] sm:$0xff]
  %v2706 = vld [vmem:[%s8 + $0x6bc] sm:$0xff]
  %v2707 = vld [vmem:[%s8 + $0x6c4] sm:$0xf]
  %v2708 = vld [vmem:[%s8 + $0x6c8] sm:$0xff]
  %v2709 = vld [vmem:[%s8 + $0x6d0] sm:$0xff]
  %v2710 = vld [vmem:[%s8 + $0x6d8] sm:$0xff]
  %v2711 = vld [vmem:[%s8 + $0x6e0] sm:$0xf]
  %v2712 = vld [vmem:[%s8 + $0x6e4] sm:$0xff]
  %v2713 = vld [vmem:[%s8 + $0x6ec] sm:$0xff]
  %v2714 = vld [vmem:[%s8 + $0x6f4] sm:$0xff]
  %v2715 = vld [vmem:[%s8 + $0x6fc] sm:$0xf]
  %v2716 = vld [vmem:[%s9] sm:$0x7f]
  %v2718 = vperm.slane %v2716, 0
  %v2719 = vperm.slane %v2716, 1
  %v2720 = vperm.slane %v2716, 2
  %v2721 = vperm.slane %v2716, 3
  %v2722 = vperm.slane %v2716, 4
  %v2723 = vperm.slane %v2716, 5
  %v2724 = vperm.slane %v2716, 6
  %v2988 = vunpack.c.l.b16 %v2460
  %v2989 = vunpack.c.h.b16 %v2460
  %v2990 = vunpack.c.l.b16 %v2461
  %v2991 = vunpack.c.h.b16 %v2461
  %v2992 = vunpack.c.l.b16 %v2462
  %v2993 = vunpack.c.h.b16 %v2462
  %v2994 = vunpack.c.l.b16 %v2463
  %v2995 = vunpack.c.l.b16 %v2464
  %v2996 = vunpack.c.h.b16 %v2464
  %v2997 = vunpack.c.l.b16 %v2465
  %v2998 = vunpack.c.h.b16 %v2465
  %v2999 = vunpack.c.l.b16 %v2466
  %v3000 = vunpack.c.h.b16 %v2466
  %v3001 = vunpack.c.l.b16 %v2467
  %v3002 = vunpack.c.l.b16 %v2468
  %v3003 = vunpack.c.h.b16 %v2468
  %v3004 = vunpack.c.l.b16 %v2469
  %v3005 = vunpack.c.h.b16 %v2469
  %v3006 = vunpack.c.l.b16 %v2470
  %v3007 = vunpack.c.h.b16 %v2470
  %v3008 = vunpack.c.l.b16 %v2471
  %v3009 = vunpack.c.l.b16 %v2472
  %v3010 = vunpack.c.h.b16 %v2472
  %v3011 = vunpack.c.l.b16 %v2473
  %v3012 = vunpack.c.h.b16 %v2473
  %v3013 = vunpack.c.l.b16 %v2474
  %v3014 = vunpack.c.h.b16 %v2474
  %v3015 = vunpack.c.l.b16 %v2475
  %v3016 = vunpack.c.l.b16 %v2476
  %v3017 = vunpack.c.h.b16 %v2476
  %v3018 = vunpack.c.l.b16 %v2477
  %v3019 = vunpack.c.h.b16 %v2477
  %v3020 = vunpack.c.l.b16 %v2478
  %v3021 = vunpack.c.h.b16 %v2478
  %v3022 = vunpack.c.l.b16 %v2479
  %v3023 = vunpack.c.l.b16 %v2480
  %v3024 = vunpack.c.h.b16 %v2480
  %v3025 = vunpack.c.l.b16 %v2481
  %v3026 = vunpack.c.h.b16 %v2481
  %v3027 = vunpack.c.l.b16 %v2482
  %v3028 = vunpack.c.h.b16 %v2482
  %v3029 = vunpack.c.l.b16 %v2483
  %v3030 = vunpack.c.l.b16 %v2484
  %v3031 = vunpack.c.h.b16 %v2484
  %v3032 = vunpack.c.l.b16 %v2485
  %v3033 = vunpack.c.h.b16 %v2485
  %v3034 = vunpack.c.l.b16 %v2486
  %v3035 = vunpack.c.h.b16 %v2486
  %v3036 = vunpack.c.l.b16 %v2487
  %v3037 = vunpack.c.l.b16 %v2488
  %v3038 = vunpack.c.h.b16 %v2488
  %v3039 = vunpack.c.l.b16 %v2489
  %v3040 = vunpack.c.h.b16 %v2489
  %v3041 = vunpack.c.l.b16 %v2490
  %v3042 = vunpack.c.h.b16 %v2490
  %v3043 = vunpack.c.l.b16 %v2491
  %v3044 = vunpack.c.l.b16 %v2492
  %v3045 = vunpack.c.h.b16 %v2492
  %v3046 = vunpack.c.l.b16 %v2493
  %v3047 = vunpack.c.h.b16 %v2493
  %v3048 = vunpack.c.l.b16 %v2494
  %v3049 = vunpack.c.h.b16 %v2494
  %v3050 = vunpack.c.l.b16 %v2495
  %v3051 = vunpack.c.l.b16 %v2496
  %v3052 = vunpack.c.h.b16 %v2496
  %v3053 = vunpack.c.l.b16 %v2497
  %v3054 = vunpack.c.h.b16 %v2497
  %v3055 = vunpack.c.l.b16 %v2498
  %v3056 = vunpack.c.h.b16 %v2498
  %v3057 = vunpack.c.l.b16 %v2499
  %v3058 = vunpack.c.l.b16 %v2500
  %v3059 = vunpack.c.h.b16 %v2500
  %v3060 = vunpack.c.l.b16 %v2501
  %v3061 = vunpack.c.h.b16 %v2501
  %v3062 = vunpack.c.l.b16 %v2502
  %v3063 = vunpack.c.h.b16 %v2502
  %v3064 = vunpack.c.l.b16 %v2503
  %v3065 = vunpack.c.l.b16 %v2504
  %v3066 = vunpack.c.h.b16 %v2504
  %v3067 = vunpack.c.l.b16 %v2505
  %v3068 = vunpack.c.h.b16 %v2505
  %v3069 = vunpack.c.l.b16 %v2506
  %v3070 = vunpack.c.h.b16 %v2506
  %v3071 = vunpack.c.l.b16 %v2507
  %v3072 = vunpack.c.l.b16 %v2508
  %v3073 = vunpack.c.h.b16 %v2508
  %v3074 = vunpack.c.l.b16 %v2509
  %v3075 = vunpack.c.h.b16 %v2509
  %v3076 = vunpack.c.l.b16 %v2510
  %v3077 = vunpack.c.h.b16 %v2510
  %v3078 = vunpack.c.l.b16 %v2511
  %v3079 = vunpack.c.l.b16 %v2512
  %v3080 = vunpack.c.h.b16 %v2512
  %v3081 = vunpack.c.l.b16 %v2513
  %v3082 = vunpack.c.h.b16 %v2513
  %v3083 = vunpack.c.l.b16 %v2514
  %v3084 = vunpack.c.h.b16 %v2514
  %v3085 = vunpack.c.l.b16 %v2515
  %v3086 = vunpack.c.l.b16 %v2516
  %v3087 = vunpack.c.h.b16 %v2516
  %v3088 = vunpack.c.l.b16 %v2517
  %v3089 = vunpack.c.h.b16 %v2517
  %v3090 = vunpack.c.l.b16 %v2518
  %v3091 = vunpack.c.h.b16 %v2518
  %v3092 = vunpack.c.l.b16 %v2519
  %v3093 = vunpack.c.l.b16 %v2520
  %v3094 = vunpack.c.h.b16 %v2520
  %v3095 = vunpack.c.l.b16 %v2521
  %v3096 = vunpack.c.h.b16 %v2521
  %v3097 = vunpack.c.l.b16 %v2522
  %v3098 = vunpack.c.h.b16 %v2522
  %v3099 = vunpack.c.l.b16 %v2523
  %v3100 = vunpack.c.l.b16 %v2524
  %v3101 = vunpack.c.h.b16 %v2524
  %v3102 = vunpack.c.l.b16 %v2525
  %v3103 = vunpack.c.h.b16 %v2525
  %v3104 = vunpack.c.l.b16 %v2526
  %v3105 = vunpack.c.h.b16 %v2526
  %v3106 = vunpack.c.l.b16 %v2527
  %v3107 = vunpack.c.l.b16 %v2528
  %v3108 = vunpack.c.h.b16 %v2528
  %v3109 = vunpack.c.l.b16 %v2529
  %v3110 = vunpack.c.h.b16 %v2529
  %v3111 = vunpack.c.l.b16 %v2530
  %v3112 = vunpack.c.h.b16 %v2530
  %v3113 = vunpack.c.l.b16 %v2531
  %v3114 = vunpack.c.l.b16 %v2532
  %v3115 = vunpack.c.h.b16 %v2532
  %v3116 = vunpack.c.l.b16 %v2533
  %v3117 = vunpack.c.h.b16 %v2533
  %v3118 = vunpack.c.l.b16 %v2534
  %v3119 = vunpack.c.h.b16 %v2534
  %v3120 = vunpack.c.l.b16 %v2535
  %v3121 = vunpack.c.l.b16 %v2536
  %v3122 = vunpack.c.h.b16 %v2536
  %v3123 = vunpack.c.l.b16 %v2537
  %v3124 = vunpack.c.h.b16 %v2537
  %v3125 = vunpack.c.l.b16 %v2538
  %v3126 = vunpack.c.h.b16 %v2538
  %v3127 = vunpack.c.l.b16 %v2539
  %v3128 = vunpack.c.l.b16 %v2540
  %v3129 = vunpack.c.h.b16 %v2540
  %v3130 = vunpack.c.l.b16 %v2541
  %v3131 = vunpack.c.h.b16 %v2541
  %v3132 = vunpack.c.l.b16 %v2542
  %v3133 = vunpack.c.h.b16 %v2542
  %v3134 = vunpack.c.l.b16 %v2543
  %v3135 = vunpack.c.l.b16 %v2544
  %v3136 = vunpack.c.h.b16 %v2544
  %v3137 = vunpack.c.l.b16 %v2545
  %v3138 = vunpack.c.h.b16 %v2545
  %v3139 = vunpack.c.l.b16 %v2546
  %v3140 = vunpack.c.h.b16 %v2546
  %v3141 = vunpack.c.l.b16 %v2547
  %v3142 = vunpack.c.l.b16 %v2548
  %v3143 = vunpack.c.h.b16 %v2548
  %v3144 = vunpack.c.l.b16 %v2549
  %v3145 = vunpack.c.h.b16 %v2549
  %v3146 = vunpack.c.l.b16 %v2550
  %v3147 = vunpack.c.h.b16 %v2550
  %v3148 = vunpack.c.l.b16 %v2551
  %v3149 = vunpack.c.l.b16 %v2552
  %v3150 = vunpack.c.h.b16 %v2552
  %v3151 = vunpack.c.l.b16 %v2553
  %v3152 = vunpack.c.h.b16 %v2553
  %v3153 = vunpack.c.l.b16 %v2554
  %v3154 = vunpack.c.h.b16 %v2554
  %v3155 = vunpack.c.l.b16 %v2555
  %v3156 = vunpack.c.l.b16 %v2556
  %v3157 = vunpack.c.h.b16 %v2556
  %v3158 = vunpack.c.l.b16 %v2557
  %v3159 = vunpack.c.h.b16 %v2557
  %v3160 = vunpack.c.l.b16 %v2558
  %v3161 = vunpack.c.h.b16 %v2558
  %v3162 = vunpack.c.l.b16 %v2559
  %v3163 = vunpack.c.l.b16 %v2560
  %v3164 = vunpack.c.h.b16 %v2560
  %v3165 = vunpack.c.l.b16 %v2561
  %v3166 = vunpack.c.h.b16 %v2561
  %v3167 = vunpack.c.l.b16 %v2562
  %v3168 = vunpack.c.h.b16 %v2562
  %v3169 = vunpack.c.l.b16 %v2563
  %v3170 = vunpack.c.l.b16 %v2564
  %v3171 = vunpack.c.h.b16 %v2564
  %v3172 = vunpack.c.l.b16 %v2565
  %v3173 = vunpack.c.h.b16 %v2565
  %v3174 = vunpack.c.l.b16 %v2566
  %v3175 = vunpack.c.h.b16 %v2566
  %v3176 = vunpack.c.l.b16 %v2567
  %v3177 = vunpack.c.l.b16 %v2568
  %v3178 = vunpack.c.h.b16 %v2568
  %v3179 = vunpack.c.l.b16 %v2569
  %v3180 = vunpack.c.h.b16 %v2569
  %v3181 = vunpack.c.l.b16 %v2570
  %v3182 = vunpack.c.h.b16 %v2570
  %v3183 = vunpack.c.l.b16 %v2571
  %v3184 = vunpack.c.l.b16 %v2572
  %v3185 = vunpack.c.h.b16 %v2572
  %v3186 = vunpack.c.l.b16 %v2573
  %v3187 = vunpack.c.h.b16 %v2573
  %v3188 = vunpack.c.l.b16 %v2574
  %v3189 = vunpack.c.h.b16 %v2574
  %v3190 = vunpack.c.l.b16 %v2575
  %v3191 = vunpack.c.l.b16 %v2576
  %v3192 = vunpack.c.h.b16 %v2576
  %v3193 = vunpack.c.l.b16 %v2577
  %v3194 = vunpack.c.h.b16 %v2577
  %v3195 = vunpack.c.l.b16 %v2578
  %v3196 = vunpack.c.h.b16 %v2578
  %v3197 = vunpack.c.l.b16 %v2579
  %v3198 = vunpack.c.l.b16 %v2580
  %v3199 = vunpack.c.h.b16 %v2580
  %v3200 = vunpack.c.l.b16 %v2581
  %v3201 = vunpack.c.h.b16 %v2581
  %v3202 = vunpack.c.l.b16 %v2582
  %v3203 = vunpack.c.h.b16 %v2582
  %v3204 = vunpack.c.l.b16 %v2583
  %v3205 = vunpack.c.l.b16 %v2584
  %v3206 = vunpack.c.h.b16 %v2584
  %v3207 = vunpack.c.l.b16 %v2585
  %v3208 = vunpack.c.h.b16 %v2585
  %v3209 = vunpack.c.l.b16 %v2586
  %v3210 = vunpack.c.h.b16 %v2586
  %v3211 = vunpack.c.l.b16 %v2587
  %v3212 = vunpack.c.l.b16 %v2588
  %v3213 = vunpack.c.h.b16 %v2588
  %v3214 = vunpack.c.l.b16 %v2589
  %v3215 = vunpack.c.h.b16 %v2589
  %v3216 = vunpack.c.l.b16 %v2590
  %v3217 = vunpack.c.h.b16 %v2590
  %v3218 = vunpack.c.l.b16 %v2591
  %v3219 = vunpack.c.l.b16 %v2592
  %v3220 = vunpack.c.h.b16 %v2592
  %v3221 = vunpack.c.l.b16 %v2593
  %v3222 = vunpack.c.h.b16 %v2593
  %v3223 = vunpack.c.l.b16 %v2594
  %v3224 = vunpack.c.h.b16 %v2594
  %v3225 = vunpack.c.l.b16 %v2595
  %v3226 = vunpack.c.l.b16 %v2596
  %v3227 = vunpack.c.h.b16 %v2596
  %v3228 = vunpack.c.l.b16 %v2597
  %v3229 = vunpack.c.h.b16 %v2597
  %v3230 = vunpack.c.l.b16 %v2598
  %v3231 = vunpack.c.h.b16 %v2598
  %v3232 = vunpack.c.l.b16 %v2599
  %v3233 = vunpack.c.l.b16 %v2600
  %v3234 = vunpack.c.h.b16 %v2600
  %v3235 = vunpack.c.l.b16 %v2601
  %v3236 = vunpack.c.h.b16 %v2601
  %v3237 = vunpack.c.l.b16 %v2602
  %v3238 = vunpack.c.h.b16 %v2602
  %v3239 = vunpack.c.l.b16 %v2603
  %v3240 = vunpack.c.l.b16 %v2604
  %v3241 = vunpack.c.h.b16 %v2604
  %v3242 = vunpack.c.l.b16 %v2605
  %v3243 = vunpack.c.h.b16 %v2605
  %v3244 = vunpack.c.l.b16 %v2606
  %v3245 = vunpack.c.h.b16 %v2606
  %v3246 = vunpack.c.l.b16 %v2607
  %v3247 = vunpack.c.l.b16 %v2608
  %v3248 = vunpack.c.h.b16 %v2608
  %v3249 = vunpack.c.l.b16 %v2609
  %v3250 = vunpack.c.h.b16 %v2609
  %v3251 = vunpack.c.l.b16 %v2610
  %v3252 = vunpack.c.h.b16 %v2610
  %v3253 = vunpack.c.l.b16 %v2611
  %v3254 = vunpack.c.l.b16 %v2612
  %v3255 = vunpack.c.h.b16 %v2612
  %v3256 = vunpack.c.l.b16 %v2613
  %v3257 = vunpack.c.h.b16 %v2613
  %v3258 = vunpack.c.l.b16 %v2614
  %v3259 = vunpack.c.h.b16 %v2614
  %v3260 = vunpack.c.l.b16 %v2615
  %v3261 = vunpack.c.l.b16 %v2616
  %v3262 = vunpack.c.h.b16 %v2616
  %v3263 = vunpack.c.l.b16 %v2617
  %v3264 = vunpack.c.h.b16 %v2617
  %v3265 = vunpack.c.l.b16 %v2618
  %v3266 = vunpack.c.h.b16 %v2618
  %v3267 = vunpack.c.l.b16 %v2619
  %v3268 = vunpack.c.l.b16 %v2620
  %v3269 = vunpack.c.h.b16 %v2620
  %v3270 = vunpack.c.l.b16 %v2621
  %v3271 = vunpack.c.h.b16 %v2621
  %v3272 = vunpack.c.l.b16 %v2622
  %v3273 = vunpack.c.h.b16 %v2622
  %v3274 = vunpack.c.l.b16 %v2623
  %v3275 = vunpack.c.l.b16 %v2624
  %v3276 = vunpack.c.h.b16 %v2624
  %v3277 = vunpack.c.l.b16 %v2625
  %v3278 = vunpack.c.h.b16 %v2625
  %v3279 = vunpack.c.l.b16 %v2626
  %v3280 = vunpack.c.h.b16 %v2626
  %v3281 = vunpack.c.l.b16 %v2627
  %v3282 = vunpack.c.l.b16 %v2628
  %v3283 = vunpack.c.h.b16 %v2628
  %v3284 = vunpack.c.l.b16 %v2629
  %v3285 = vunpack.c.h.b16 %v2629
  %v3286 = vunpack.c.l.b16 %v2630
  %v3287 = vunpack.c.h.b16 %v2630
  %v3288 = vunpack.c.l.b16 %v2631
  %v3289 = vunpack.c.l.b16 %v2632
  %v3290 = vunpack.c.h.b16 %v2632
  %v3291 = vunpack.c.l.b16 %v2633
  %v3292 = vunpack.c.h.b16 %v2633
  %v3293 = vunpack.c.l.b16 %v2634
  %v3294 = vunpack.c.h.b16 %v2634
  %v3295 = vunpack.c.l.b16 %v2635
  %v3296 = vunpack.c.l.b16 %v2636
  %v3297 = vunpack.c.h.b16 %v2636
  %v3298 = vunpack.c.l.b16 %v2637
  %v3299 = vunpack.c.h.b16 %v2637
  %v3300 = vunpack.c.l.b16 %v2638
  %v3301 = vunpack.c.h.b16 %v2638
  %v3302 = vunpack.c.l.b16 %v2639
  %v3303 = vunpack.c.l.b16 %v2640
  %v3304 = vunpack.c.h.b16 %v2640
  %v3305 = vunpack.c.l.b16 %v2641
  %v3306 = vunpack.c.h.b16 %v2641
  %v3307 = vunpack.c.l.b16 %v2642
  %v3308 = vunpack.c.h.b16 %v2642
  %v3309 = vunpack.c.l.b16 %v2643
  %v3310 = vunpack.c.l.b16 %v2644
  %v3311 = vunpack.c.h.b16 %v2644
  %v3312 = vunpack.c.l.b16 %v2645
  %v3313 = vunpack.c.h.b16 %v2645
  %v3314 = vunpack.c.l.b16 %v2646
  %v3315 = vunpack.c.h.b16 %v2646
  %v3316 = vunpack.c.l.b16 %v2647
  %v3317 = vunpack.c.l.b16 %v2648
  %v3318 = vunpack.c.h.b16 %v2648
  %v3319 = vunpack.c.l.b16 %v2649
  %v3320 = vunpack.c.h.b16 %v2649
  %v3321 = vunpack.c.l.b16 %v2650
  %v3322 = vunpack.c.h.b16 %v2650
  %v3323 = vunpack.c.l.b16 %v2651
  %v3324 = vunpack.c.l.b16 %v2652
  %v3325 = vunpack.c.h.b16 %v2652
  %v3326 = vunpack.c.l.b16 %v2653
  %v3327 = vunpack.c.h.b16 %v2653
  %v3328 = vunpack.c.l.b16 %v2654
  %v3329 = vunpack.c.h.b16 %v2654
  %v3330 = vunpack.c.l.b16 %v2655
  %v3331 = vunpack.c.l.b16 %v2656
  %v3332 = vunpack.c.h.b16 %v2656
  %v3333 = vunpack.c.l.b16 %v2657
  %v3334 = vunpack.c.h.b16 %v2657
  %v3335 = vunpack.c.l.b16 %v2658
  %v3336 = vunpack.c.h.b16 %v2658
  %v3337 = vunpack.c.l.b16 %v2659
  %v3338 = vunpack.c.l.b16 %v2660
  %v3339 = vunpack.c.h.b16 %v2660
  %v3340 = vunpack.c.l.b16 %v2661
  %v3341 = vunpack.c.h.b16 %v2661
  %v3342 = vunpack.c.l.b16 %v2662
  %v3343 = vunpack.c.h.b16 %v2662
  %v3344 = vunpack.c.l.b16 %v2663
  %v3345 = vunpack.c.l.b16 %v2664
  %v3346 = vunpack.c.h.b16 %v2664
  %v3347 = vunpack.c.l.b16 %v2665
  %v3348 = vunpack.c.h.b16 %v2665
  %v3349 = vunpack.c.l.b16 %v2666
  %v3350 = vunpack.c.h.b16 %v2666
  %v3351 = vunpack.c.l.b16 %v2667
  %v3352 = vunpack.c.l.b16 %v2668
  %v3353 = vunpack.c.h.b16 %v2668
  %v3354 = vunpack.c.l.b16 %v2669
  %v3355 = vunpack.c.h.b16 %v2669
  %v3356 = vunpack.c.l.b16 %v2670
  %v3357 = vunpack.c.h.b16 %v2670
  %v3358 = vunpack.c.l.b16 %v2671
  %v3359 = vunpack.c.l.b16 %v2672
  %v3360 = vunpack.c.h.b16 %v2672
  %v3361 = vunpack.c.l.b16 %v2673
  %v3362 = vunpack.c.h.b16 %v2673
  %v3363 = vunpack.c.l.b16 %v2674
  %v3364 = vunpack.c.h.b16 %v2674
  %v3365 = vunpack.c.l.b16 %v2675
  %v3366 = vunpack.c.l.b16 %v2676
  %v3367 = vunpack.c.h.b16 %v2676
  %v3368 = vunpack.c.l.b16 %v2677
  %v3369 = vunpack.c.h.b16 %v2677
  %v3370 = vunpack.c.l.b16 %v2678
  %v3371 = vunpack.c.h.b16 %v2678
  %v3372 = vunpack.c.l.b16 %v2679
  %v3373 = vunpack.c.l.b16 %v2680
  %v3374 = vunpack.c.h.b16 %v2680
  %v3375 = vunpack.c.l.b16 %v2681
  %v3376 = vunpack.c.h.b16 %v2681
  %v3377 = vunpack.c.l.b16 %v2682
  %v3378 = vunpack.c.h.b16 %v2682
  %v3379 = vunpack.c.l.b16 %v2683
  %v3380 = vunpack.c.l.b16 %v2684
  %v3381 = vunpack.c.h.b16 %v2684
  %v3382 = vunpack.c.l.b16 %v2685
  %v3383 = vunpack.c.h.b16 %v2685
  %v3384 = vunpack.c.l.b16 %v2686
  %v3385 = vunpack.c.h.b16 %v2686
  %v3386 = vunpack.c.l.b16 %v2687
  %v3387 = vunpack.c.l.b16 %v2688
  %v3388 = vunpack.c.h.b16 %v2688
  %v3389 = vunpack.c.l.b16 %v2689
  %v3390 = vunpack.c.h.b16 %v2689
  %v3391 = vunpack.c.l.b16 %v2690
  %v3392 = vunpack.c.h.b16 %v2690
  %v3393 = vunpack.c.l.b16 %v2691
  %v3394 = vunpack.c.l.b16 %v2692
  %v3395 = vunpack.c.h.b16 %v2692
  %v3396 = vunpack.c.l.b16 %v2693
  %v3397 = vunpack.c.h.b16 %v2693
  %v3398 = vunpack.c.l.b16 %v2694
  %v3399 = vunpack.c.h.b16 %v2694
  %v3400 = vunpack.c.l.b16 %v2695
  %v3401 = vunpack.c.l.b16 %v2696
  %v3402 = vunpack.c.h.b16 %v2696
  %v3403 = vunpack.c.l.b16 %v2697
  %v3404 = vunpack.c.h.b16 %v2697
  %v3405 = vunpack.c.l.b16 %v2698
  %v3406 = vunpack.c.h.b16 %v2698
  %v3407 = vunpack.c.l.b16 %v2699
  %v3408 = vunpack.c.l.b16 %v2700
  %v3409 = vunpack.c.h.b16 %v2700
  %v3410 = vunpack.c.l.b16 %v2701
  %v3411 = vunpack.c.h.b16 %v2701
  %v3412 = vunpack.c.l.b16 %v2702
  %v3413 = vunpack.c.h.b16 %v2702
  %v3414 = vunpack.c.l.b16 %v2703
  %v3415 = vunpack.c.l.b16 %v2704
  %v3416 = vunpack.c.h.b16 %v2704
  %v3417 = vunpack.c.l.b16 %v2705
  %v3418 = vunpack.c.h.b16 %v2705
  %v3419 = vunpack.c.l.b16 %v2706
  %v3420 = vunpack.c.h.b16 %v2706
  %v3421 = vunpack.c.l.b16 %v2707
  %v3422 = vunpack.c.l.b16 %v2708
  %v3423 = vunpack.c.h.b16 %v2708
  %v3424 = vunpack.c.l.b16 %v2709
  %v3425 = vunpack.c.h.b16 %v2709
  %v3426 = vunpack.c.l.b16 %v2710
  %v3427 = vunpack.c.h.b16 %v2710
  %v3428 = vunpack.c.l.b16 %v2711
  %v3429 = vunpack.c.l.b16 %v2712
  %v3430 = vunpack.c.h.b16 %v2712
  %v3431 = vunpack.c.l.b16 %v2713
  %v3432 = vunpack.c.h.b16 %v2713
  %v3433 = vunpack.c.l.b16 %v2714
  %v3434 = vunpack.c.h.b16 %v2714
  %v3435 = vunpack.c.l.b16 %v2715
  %v3436 = vpack.c.b16 %v2995, %v2988
  %v3437 = vpack.c.b16 %v2996, %v2989
  %v3438 = vpack.c.b16 %v2997, %v2990
  %v3439 = vpack.c.b16 %v2998, %v2991
  %v3440 = vpack.c.b16 %v2999, %v2992
  %v3441 = vpack.c.b16 %v3000, %v2993
  %v3442 = vpack.c.b16 %v3001, %v2994
  %v3443 = vpack.c.b16 %v3009, %v3002
  %v3444 = vpack.c.b16 %v3010, %v3003
  %v3445 = vpack.c.b16 %v3011, %v3004
  %v3446 = vpack.c.b16 %v3012, %v3005
  %v3447 = vpack.c.b16 %v3013, %v3006
  %v3448 = vpack.c.b16 %v3014, %v3007
  %v3449 = vpack.c.b16 %v3015, %v3008
  %v3450 = vpack.c.b16 %v3023, %v3016
  %v3451 = vpack.c.b16 %v3024, %v3017
  %v3452 = vpack.c.b16 %v3025, %v3018
  %v3453 = vpack.c.b16 %v3026, %v3019
  %v3454 = vpack.c.b16 %v3027, %v3020
  %v3455 = vpack.c.b16 %v3028, %v3021
  %v3456 = vpack.c.b16 %v3029, %v3022
  %v3457 = vpack.c.b16 %v3037, %v3030
  %v3458 = vpack.c.b16 %v3038, %v3031
  %v3459 = vpack.c.b16 %v3039, %v3032
  %v3460 = vpack.c.b16 %v3040, %v3033
  %v3461 = vpack.c.b16 %v3041, %v3034
  %v3462 = vpack.c.b16 %v3042, %v3035
  %v3463 = vpack.c.b16 %v3043, %v3036
  %v3464 = vpack.c.b16 %v3051, %v3044
  %v3465 = vpack.c.b16 %v3052, %v3045
  %v3466 = vpack.c.b16 %v3053, %v3046
  %v3467 = vpack.c.b16 %v3054, %v3047
  %v3468 = vpack.c.b16 %v3055, %v3048
  %v3469 = vpack.c.b16 %v3056, %v3049
  %v3470 = vpack.c.b16 %v3057, %v3050
  %v3471 = vpack.c.b16 %v3065, %v3058
  %v3472 = vpack.c.b16 %v3066, %v3059
  %v3473 = vpack.c.b16 %v3067, %v3060
  %v3474 = vpack.c.b16 %v3068, %v3061
  %v3475 = vpack.c.b16 %v3069, %v3062
  %v3476 = vpack.c.b16 %v3070, %v3063
  %v3477 = vpack.c.b16 %v3071, %v3064
  %v3478 = vpack.c.b16 %v3079, %v3072
  %v3479 = vpack.c.b16 %v3080, %v3073
  %v3480 = vpack.c.b16 %v3081, %v3074
  %v3481 = vpack.c.b16 %v3082, %v3075
  %v3482 = vpack.c.b16 %v3083, %v3076
  %v3483 = vpack.c.b16 %v3084, %v3077
  %v3484 = vpack.c.b16 %v3085, %v3078
  %v3485 = vpack.c.b16 %v3093, %v3086
  %v3486 = vpack.c.b16 %v3094, %v3087
  %v3487 = vpack.c.b16 %v3095, %v3088
  %v3488 = vpack.c.b16 %v3096, %v3089
  %v3489 = vpack.c.b16 %v3097, %v3090
  %v3490 = vpack.c.b16 %v3098, %v3091
  %v3491 = vpack.c.b16 %v3099, %v3092
  %v3492 = vpack.c.b16 %v3107, %v3100
  %v3493 = vpack.c.b16 %v3108, %v3101
  %v3494 = vpack.c.b16 %v3109, %v3102
  %v3495 = vpack.c.b16 %v3110, %v3103
  %v3496 = vpack.c.b16 %v3111, %v3104
  %v3497 = vpack.c.b16 %v3112, %v3105
  %v3498 = vpack.c.b16 %v3113, %v3106
  %v3499 = vpack.c.b16 %v3121, %v3114
  %v3500 = vpack.c.b16 %v3122, %v3115
  %v3501 = vpack.c.b16 %v3123, %v3116
  %v3502 = vpack.c.b16 %v3124, %v3117
  %v3503 = vpack.c.b16 %v3125, %v3118
  %v3504 = vpack.c.b16 %v3126, %v3119
  %v3505 = vpack.c.b16 %v3127, %v3120
  %v3506 = vpack.c.b16 %v3135, %v3128
  %v3507 = vpack.c.b16 %v3136, %v3129
  %v3508 = vpack.c.b16 %v3137, %v3130
  %v3509 = vpack.c.b16 %v3138, %v3131
  %v3510 = vpack.c.b16 %v3139, %v3132
  %v3511 = vpack.c.b16 %v3140, %v3133
  %v3512 = vpack.c.b16 %v3141, %v3134
  %v3513 = vpack.c.b16 %v3149, %v3142
  %v3514 = vpack.c.b16 %v3150, %v3143
  %v3515 = vpack.c.b16 %v3151, %v3144
  %v3516 = vpack.c.b16 %v3152, %v3145
  %v3517 = vpack.c.b16 %v3153, %v3146
  %v3518 = vpack.c.b16 %v3154, %v3147
  %v3519 = vpack.c.b16 %v3155, %v3148
  %v3520 = vpack.c.b16 %v3163, %v3156
  %v3521 = vpack.c.b16 %v3164, %v3157
  %v3522 = vpack.c.b16 %v3165, %v3158
  %v3523 = vpack.c.b16 %v3166, %v3159
  %v3524 = vpack.c.b16 %v3167, %v3160
  %v3525 = vpack.c.b16 %v3168, %v3161
  %v3526 = vpack.c.b16 %v3169, %v3162
  %v3527 = vpack.c.b16 %v3177, %v3170
  %v3528 = vpack.c.b16 %v3178, %v3171
  %v3529 = vpack.c.b16 %v3179, %v3172
  %v3530 = vpack.c.b16 %v3180, %v3173
  %v3531 = vpack.c.b16 %v3181, %v3174
  %v3532 = vpack.c.b16 %v3182, %v3175
  %v3533 = vpack.c.b16 %v3183, %v3176
  %v3534 = vpack.c.b16 %v3191, %v3184
  %v3535 = vpack.c.b16 %v3192, %v3185
  %v3536 = vpack.c.b16 %v3193, %v3186
  %v3537 = vpack.c.b16 %v3194, %v3187
  %v3538 = vpack.c.b16 %v3195, %v3188
  %v3539 = vpack.c.b16 %v3196, %v3189
  %v3540 = vpack.c.b16 %v3197, %v3190
  %v3541 = vpack.c.b16 %v3205, %v3198
  %v3542 = vpack.c.b16 %v3206, %v3199
  %v3543 = vpack.c.b16 %v3207, %v3200
  %v3544 = vpack.c.b16 %v3208, %v3201
  %v3545 = vpack.c.b16 %v3209, %v3202
  %v3546 = vpack.c.b16 %v3210, %v3203
  %v3547 = vpack.c.b16 %v3211, %v3204
  %v3548 = vpack.c.b16 %v3219, %v3212
  %v3549 = vpack.c.b16 %v3220, %v3213
  %v3550 = vpack.c.b16 %v3221, %v3214
  %v3551 = vpack.c.b16 %v3222, %v3215
  %v3552 = vpack.c.b16 %v3223, %v3216
  %v3553 = vpack.c.b16 %v3224, %v3217
  %v3554 = vpack.c.b16 %v3225, %v3218
  %v3555 = vpack.c.b16 %v3233, %v3226
  %v3556 = vpack.c.b16 %v3234, %v3227
  %v3557 = vpack.c.b16 %v3235, %v3228
  %v3558 = vpack.c.b16 %v3236, %v3229
  %v3559 = vpack.c.b16 %v3237, %v3230
  %v3560 = vpack.c.b16 %v3238, %v3231
  %v3561 = vpack.c.b16 %v3239, %v3232
  %v3562 = vpack.c.b16 %v3247, %v3240
  %v3563 = vpack.c.b16 %v3248, %v3241
  %v3564 = vpack.c.b16 %v3249, %v3242
  %v3565 = vpack.c.b16 %v3250, %v3243
  %v3566 = vpack.c.b16 %v3251, %v3244
  %v3567 = vpack.c.b16 %v3252, %v3245
  %v3568 = vpack.c.b16 %v3253, %v3246
  %v3569 = vpack.c.b16 %v3261, %v3254
  %v3570 = vpack.c.b16 %v3262, %v3255
  %v3571 = vpack.c.b16 %v3263, %v3256
  %v3572 = vpack.c.b16 %v3264, %v3257
  %v3573 = vpack.c.b16 %v3265, %v3258
  %v3574 = vpack.c.b16 %v3266, %v3259
  %v3575 = vpack.c.b16 %v3267, %v3260
  %v3576 = vpack.c.b16 %v3275, %v3268
  %v3577 = vpack.c.b16 %v3276, %v3269
  %v3578 = vpack.c.b16 %v3277, %v3270
  %v3579 = vpack.c.b16 %v3278, %v3271
  %v3580 = vpack.c.b16 %v3279, %v3272
  %v3581 = vpack.c.b16 %v3280, %v3273
  %v3582 = vpack.c.b16 %v3281, %v3274
  %v3583 = vpack.c.b16 %v3289, %v3282
  %v3584 = vpack.c.b16 %v3290, %v3283
  %v3585 = vpack.c.b16 %v3291, %v3284
  %v3586 = vpack.c.b16 %v3292, %v3285
  %v3587 = vpack.c.b16 %v3293, %v3286
  %v3588 = vpack.c.b16 %v3294, %v3287
  %v3589 = vpack.c.b16 %v3295, %v3288
  %v3590 = vpack.c.b16 %v3303, %v3296
  %v3591 = vpack.c.b16 %v3304, %v3297
  %v3592 = vpack.c.b16 %v3305, %v3298
  %v3593 = vpack.c.b16 %v3306, %v3299
  %v3594 = vpack.c.b16 %v3307, %v3300
  %v3595 = vpack.c.b16 %v3308, %v3301
  %v3596 = vpack.c.b16 %v3309, %v3302
  %v3597 = vpack.c.b16 %v3317, %v3310
  %v3598 = vpack.c.b16 %v3318, %v3311
  %v3599 = vpack.c.b16 %v3319, %v3312
  %v3600 = vpack.c.b16 %v3320, %v3313
  %v3601 = vpack.c.b16 %v3321, %v3314
  %v3602 = vpack.c.b16 %v3322, %v3315
  %v3603 = vpack.c.b16 %v3323, %v3316
  %v3604 = vpack.c.b16 %v3331, %v3324
  %v3605 = vpack.c.b16 %v3332, %v3325
  %v3606 = vpack.c.b16 %v3333, %v3326
  %v3607 = vpack.c.b16 %v3334, %v3327
  %v3608 = vpack.c.b16 %v3335, %v3328
  %v3609 = vpack.c.b16 %v3336, %v3329
  %v3610 = vpack.c.b16 %v3337, %v3330
  %v3611 = vpack.c.b16 %v3345, %v3338
  %v3612 = vpack.c.b16 %v3346, %v3339
  %v3613 = vpack.c.b16 %v3347, %v3340
  %v3614 = vpack.c.b16 %v3348, %v3341
  %v3615 = vpack.c.b16 %v3349, %v3342
  %v3616 = vpack.c.b16 %v3350, %v3343
  %v3617 = vpack.c.b16 %v3351, %v3344
  %v3618 = vpack.c.b16 %v3359, %v3352
  %v3619 = vpack.c.b16 %v3360, %v3353
  %v3620 = vpack.c.b16 %v3361, %v3354
  %v3621 = vpack.c.b16 %v3362, %v3355
  %v3622 = vpack.c.b16 %v3363, %v3356
  %v3623 = vpack.c.b16 %v3364, %v3357
  %v3624 = vpack.c.b16 %v3365, %v3358
  %v3625 = vpack.c.b16 %v3373, %v3366
  %v3626 = vpack.c.b16 %v3374, %v3367
  %v3627 = vpack.c.b16 %v3375, %v3368
  %v3628 = vpack.c.b16 %v3376, %v3369
  %v3629 = vpack.c.b16 %v3377, %v3370
  %v3630 = vpack.c.b16 %v3378, %v3371
  %v3631 = vpack.c.b16 %v3379, %v3372
  %v3632 = vpack.c.b16 %v3387, %v3380
  %v3633 = vpack.c.b16 %v3388, %v3381
  %v3634 = vpack.c.b16 %v3389, %v3382
  %v3635 = vpack.c.b16 %v3390, %v3383
  %v3636 = vpack.c.b16 %v3391, %v3384
  %v3637 = vpack.c.b16 %v3392, %v3385
  %v3638 = vpack.c.b16 %v3393, %v3386
  %v3639 = vpack.c.b16 %v3401, %v3394
  %v3640 = vpack.c.b16 %v3402, %v3395
  %v3641 = vpack.c.b16 %v3403, %v3396
  %v3642 = vpack.c.b16 %v3404, %v3397
  %v3643 = vpack.c.b16 %v3405, %v3398
  %v3644 = vpack.c.b16 %v3406, %v3399
  %v3645 = vpack.c.b16 %v3407, %v3400
  %v3646 = vpack.c.b16 %v3415, %v3408
  %v3647 = vpack.c.b16 %v3416, %v3409
  %v3648 = vpack.c.b16 %v3417, %v3410
  %v3649 = vpack.c.b16 %v3418, %v3411
  %v3650 = vpack.c.b16 %v3419, %v3412
  %v3651 = vpack.c.b16 %v3420, %v3413
  %v3652 = vpack.c.b16 %v3421, %v3414
  %v3653 = vpack.c.b16 %v3429, %v3422
  %v3654 = vpack.c.b16 %v3430, %v3423
  %v3655 = vpack.c.b16 %v3431, %v3424
  %v3656 = vpack.c.b16 %v3432, %v3425
  %v3657 = vpack.c.b16 %v3433, %v3426
  %v3658 = vpack.c.b16 %v3434, %v3427
  %v3659 = vpack.c.b16 %v3435, %v3428
  %3884 = vmatpush.bf16.msra.mxu0 %v3485
  %3885 = vmatpush.bf16.msra.mxu0 %v3478
  %3886 = vmatpush.bf16.msra.mxu0 %v3471
  %3887 = vmatpush.bf16.msra.mxu0 %v3464
  %3888 = vmatpush.bf16.msra.mxu0 %v3457
  %3889 = vmatpush.bf16.msra.mxu0 %v3450
  %3890 = vmatpush.bf16.msra.mxu0 %v3443
  %3891 = vmatpush.bf16.msra.mxu0 %v3436
  %3892 = vmatmul.bf16.gmra.mxu0 %v2456
  %v3893 = vpop.f32.mrf.mxu0
  %v3894 = vadd.f32 %v2718, %v3893
  %v3895 = vpop.f32.mrf.mxu0
  %v3896 = vadd.f32 %v2718, %v3895
  %3897 = vdwg.mxu0
  %3898 = vmatpush.bf16.msra.mxu0 %v3541
  %3899 = vmatpush.bf16.msra.mxu0 %v3534
  %3900 = vmatpush.bf16.msra.mxu0 %v3527
  %3901 = vmatpush.bf16.msra.mxu0 %v3520
  %3902 = vmatpush.bf16.msra.mxu0 %v3513
  %3903 = vmatpush.bf16.msra.mxu0 %v3506
  %3904 = vmatpush.bf16.msra.mxu0 %v3499
  %3905 = vmatpush.bf16.msra.mxu0 %v3492
  %3906 = vmatmul.bf16.gmra.mxu0 %v2457
  %v3907 = vpop.f32.mrf.mxu0
  %v3908 = vadd.f32 %v3894, %v3907
  %v3909 = vpop.f32.mrf.mxu0
  %v3910 = vadd.f32 %v3896, %v3909
  %3911 = vdwg.mxu0
  %3912 = vmatpush.bf16.msra.mxu0 %v3597
  %3913 = vmatpush.bf16.msra.mxu0 %v3590
  %3914 = vmatpush.bf16.msra.mxu0 %v3583
  %3915 = vmatpush.bf16.msra.mxu0 %v3576
  %3916 = vmatpush.bf16.msra.mxu0 %v3569
  %3917 = vmatpush.bf16.msra.mxu0 %v3562
  %3918 = vmatpush.bf16.msra.mxu0 %v3555
  %3919 = vmatpush.bf16.msra.mxu0 %v3548
  %3920 = vmatmul.bf16.gmra.mxu0 %v2458
  %v3921 = vpop.f32.mrf.mxu0
  %v3922 = vadd.f32 %v3908, %v3921
  %v3923 = vpop.f32.mrf.mxu0
  %v3924 = vadd.f32 %v3910, %v3923
  %3925 = vdwg.mxu0
  %3926 = vmatpush.bf16.msra.mxu0 %v3653
  %3927 = vmatpush.bf16.msra.mxu0 %v3646
  %3928 = vmatpush.bf16.msra.mxu0 %v3639
  %3929 = vmatpush.bf16.msra.mxu0 %v3632
  %3930 = vmatpush.bf16.msra.mxu0 %v3625
  %3931 = vmatpush.bf16.msra.mxu0 %v3618
  %3932 = vmatpush.bf16.msra.mxu0 %v3611
  %3933 = vmatpush.bf16.msra.mxu0 %v3604
  %3934 = vmatmul.bf16.gmra.mxu0 %v2459
  %v3935 = vpop.f32.mrf.mxu0
  %v3936 = vadd.f32 %v3922, %v3935
  %v3937 = vpop.f32.mrf.mxu0
  %v3938 = vadd.f32 %v3924, %v3937
  %3939 = vdwg.mxu0
  %3940 = vmatpush.bf16.msra.mxu0 %v3486
  %3941 = vmatpush.bf16.msra.mxu0 %v3479
  %3942 = vmatpush.bf16.msra.mxu0 %v3472
  %3943 = vmatpush.bf16.msra.mxu0 %v3465
  %3944 = vmatpush.bf16.msra.mxu0 %v3458
  %3945 = vmatpush.bf16.msra.mxu0 %v3451
  %3946 = vmatpush.bf16.msra.mxu0 %v3444
  %3947 = vmatpush.bf16.msra.mxu0 %v3437
  %3948 = vmatmul.bf16.gmra.mxu0 %v2456
  %v3949 = vpop.f32.mrf.mxu0
  %v3950 = vadd.f32 %v2719, %v3949
  %v3951 = vpop.f32.mrf.mxu0
  %v3952 = vadd.f32 %v2719, %v3951
  %3953 = vdwg.mxu0
  %3954 = vmatpush.bf16.msra.mxu0 %v3542
  %3955 = vmatpush.bf16.msra.mxu0 %v3535
  %3956 = vmatpush.bf16.msra.mxu0 %v3528
  %3957 = vmatpush.bf16.msra.mxu0 %v3521
  %3958 = vmatpush.bf16.msra.mxu0 %v3514
  %3959 = vmatpush.bf16.msra.mxu0 %v3507
  %3960 = vmatpush.bf16.msra.mxu0 %v3500
  %3961 = vmatpush.bf16.msra.mxu0 %v3493
  %3962 = vmatmul.bf16.gmra.mxu0 %v2457
  %v3963 = vpop.f32.mrf.mxu0
  %v3964 = vadd.f32 %v3950, %v3963
  %v3965 = vpop.f32.mrf.mxu0
  %v3966 = vadd.f32 %v3952, %v3965
  %3967 = vdwg.mxu0
  %3968 = vmatpush.bf16.msra.mxu0 %v3598
  %3969 = vmatpush.bf16.msra.mxu0 %v3591
  %3970 = vmatpush.bf16.msra.mxu0 %v3584
  %3971 = vmatpush.bf16.msra.mxu0 %v3577
  %3972 = vmatpush.bf16.msra.mxu0 %v3570
  %3973 = vmatpush.bf16.msra.mxu0 %v3563
  %3974 = vmatpush.bf16.msra.mxu0 %v3556
  %3975 = vmatpush.bf16.msra.mxu0 %v3549
  %3976 = vmatmul.bf16.gmra.mxu0 %v2458
  %v3977 = vpop.f32.mrf.mxu0
  %v3978 = vadd.f32 %v3964, %v3977
  %v3979 = vpop.f32.mrf.mxu0
  %v3980 = vadd.f32 %v3966, %v3979
  %3981 = vdwg.mxu0
  %3982 = vmatpush.bf16.msra.mxu0 %v3654
  %3983 = vmatpush.bf16.msra.mxu0 %v3647
  %3984 = vmatpush.bf16.msra.mxu0 %v3640
  %3985 = vmatpush.bf16.msra.mxu0 %v3633
  %3986 = vmatpush.bf16.msra.mxu0 %v3626
  %3987 = vmatpush.bf16.msra.mxu0 %v3619
  %3988 = vmatpush.bf16.msra.mxu0 %v3612
  %3989 = vmatpush.bf16.msra.mxu0 %v3605
  %3990 = vmatmul.bf16.gmra.mxu0 %v2459
  %v3991 = vpop.f32.mrf.mxu0
  %v3992 = vadd.f32 %v3978, %v3991
  %v3993 = vpop.f32.mrf.mxu0
  %v3994 = vadd.f32 %v3980, %v3993
  %3995 = vdwg.mxu0
  %3996 = vmatpush.bf16.msra.mxu0 %v3487
  %3997 = vmatpush.bf16.msra.mxu0 %v3480
  %3998 = vmatpush.bf16.msra.mxu0 %v3473
  %3999 = vmatpush.bf16.msra.mxu0 %v3466
  %4000 = vmatpush.bf16.msra.mxu0 %v3459
  %4001 = vmatpush.bf16.msra.mxu0 %v3452
  %4002 = vmatpush.bf16.msra.mxu0 %v3445
  %4003 = vmatpush.bf16.msra.mxu0 %v3438
  %4004 = vmatmul.bf16.gmra.mxu0 %v2456
  %v4005 = vpop.f32.mrf.mxu0
  %v4006 = vadd.f32 %v2720, %v4005
  %v4007 = vpop.f32.mrf.mxu0
  %v4008 = vadd.f32 %v2720, %v4007
  %4009 = vdwg.mxu0
  %4010 = vmatpush.bf16.msra.mxu0 %v3543
  %4011 = vmatpush.bf16.msra.mxu0 %v3536
  %4012 = vmatpush.bf16.msra.mxu0 %v3529
  %4013 = vmatpush.bf16.msra.mxu0 %v3522
  %4014 = vmatpush.bf16.msra.mxu0 %v3515
  %4015 = vmatpush.bf16.msra.mxu0 %v3508
  %4016 = vmatpush.bf16.msra.mxu0 %v3501
  %4017 = vmatpush.bf16.msra.mxu0 %v3494
  %4018 = vmatmul.bf16.gmra.mxu0 %v2457
  %v4019 = vpop.f32.mrf.mxu0
  %v4020 = vadd.f32 %v4006, %v4019
  %v4021 = vpop.f32.mrf.mxu0
  %v4022 = vadd.f32 %v4008, %v4021
  %4023 = vdwg.mxu0
  %4024 = vmatpush.bf16.msra.mxu0 %v3599
  %4025 = vmatpush.bf16.msra.mxu0 %v3592
  %4026 = vmatpush.bf16.msra.mxu0 %v3585
  %4027 = vmatpush.bf16.msra.mxu0 %v3578
  %4028 = vmatpush.bf16.msra.mxu0 %v3571
  %4029 = vmatpush.bf16.msra.mxu0 %v3564
  %4030 = vmatpush.bf16.msra.mxu0 %v3557
  %4031 = vmatpush.bf16.msra.mxu0 %v3550
  %4032 = vmatmul.bf16.gmra.mxu0 %v2458
  %v4033 = vpop.f32.mrf.mxu0
  %v4034 = vadd.f32 %v4020, %v4033
  %v4035 = vpop.f32.mrf.mxu0
  %v4036 = vadd.f32 %v4022, %v4035
  %4037 = vdwg.mxu0
  %4038 = vmatpush.bf16.msra.mxu0 %v3655
  %4039 = vmatpush.bf16.msra.mxu0 %v3648
  %4040 = vmatpush.bf16.msra.mxu0 %v3641
  %4041 = vmatpush.bf16.msra.mxu0 %v3634
  %4042 = vmatpush.bf16.msra.mxu0 %v3627
  %4043 = vmatpush.bf16.msra.mxu0 %v3620
  %4044 = vmatpush.bf16.msra.mxu0 %v3613
  %4045 = vmatpush.bf16.msra.mxu0 %v3606
  %4046 = vmatmul.bf16.gmra.mxu0 %v2459
  %v4047 = vpop.f32.mrf.mxu0
  %v4048 = vadd.f32 %v4034, %v4047
  %v4049 = vpop.f32.mrf.mxu0
  %v4050 = vadd.f32 %v4036, %v4049
  %4051 = vdwg.mxu0
  %4052 = vmatpush.bf16.msra.mxu0 %v3488
  %4053 = vmatpush.bf16.msra.mxu0 %v3481
  %4054 = vmatpush.bf16.msra.mxu0 %v3474
  %4055 = vmatpush.bf16.msra.mxu0 %v3467
  %4056 = vmatpush.bf16.msra.mxu0 %v3460
  %4057 = vmatpush.bf16.msra.mxu0 %v3453
  %4058 = vmatpush.bf16.msra.mxu0 %v3446
  %4059 = vmatpush.bf16.msra.mxu0 %v3439
  %4060 = vmatmul.bf16.gmra.mxu0 %v2456
  %v4061 = vpop.f32.mrf.mxu0
  %v4062 = vadd.f32 %v2721, %v4061
  %v4063 = vpop.f32.mrf.mxu0
  %v4064 = vadd.f32 %v2721, %v4063
  %4065 = vdwg.mxu0
  %4066 = vmatpush.bf16.msra.mxu0 %v3544
  %4067 = vmatpush.bf16.msra.mxu0 %v3537
  %4068 = vmatpush.bf16.msra.mxu0 %v3530
  %4069 = vmatpush.bf16.msra.mxu0 %v3523
  %4070 = vmatpush.bf16.msra.mxu0 %v3516
  %4071 = vmatpush.bf16.msra.mxu0 %v3509
  %4072 = vmatpush.bf16.msra.mxu0 %v3502
  %4073 = vmatpush.bf16.msra.mxu0 %v3495
  %4074 = vmatmul.bf16.gmra.mxu0 %v2457
  %v4075 = vpop.f32.mrf.mxu0
  %v4076 = vadd.f32 %v4062, %v4075
  %v4077 = vpop.f32.mrf.mxu0
  %v4078 = vadd.f32 %v4064, %v4077
  %4079 = vdwg.mxu0
  %4080 = vmatpush.bf16.msra.mxu0 %v3600
  %4081 = vmatpush.bf16.msra.mxu0 %v3593
  %4082 = vmatpush.bf16.msra.mxu0 %v3586
  %4083 = vmatpush.bf16.msra.mxu0 %v3579
  %4084 = vmatpush.bf16.msra.mxu0 %v3572
  %4085 = vmatpush.bf16.msra.mxu0 %v3565
  %4086 = vmatpush.bf16.msra.mxu0 %v3558
  %4087 = vmatpush.bf16.msra.mxu0 %v3551
  %4088 = vmatmul.bf16.gmra.mxu0 %v2458
  %v4089 = vpop.f32.mrf.mxu0
  %v4090 = vadd.f32 %v4076, %v4089
  %v4091 = vpop.f32.mrf.mxu0
  %v4092 = vadd.f32 %v4078, %v4091
  %4093 = vdwg.mxu0
  %4094 = vmatpush.bf16.msra.mxu0 %v3656
  %4095 = vmatpush.bf16.msra.mxu0 %v3649
  %4096 = vmatpush.bf16.msra.mxu0 %v3642
  %4097 = vmatpush.bf16.msra.mxu0 %v3635
  %4098 = vmatpush.bf16.msra.mxu0 %v3628
  %4099 = vmatpush.bf16.msra.mxu0 %v3621
  %4100 = vmatpush.bf16.msra.mxu0 %v3614
  %4101 = vmatpush.bf16.msra.mxu0 %v3607
  %4102 = vmatmul.bf16.gmra.mxu0 %v2459
  %v4103 = vpop.f32.mrf.mxu0
  %v4104 = vadd.f32 %v4090, %v4103
  %v4105 = vpop.f32.mrf.mxu0
  %v4106 = vadd.f32 %v4092, %v4105
  %4107 = vdwg.mxu0
  %4108 = vmatpush.bf16.msra.mxu0 %v3489
  %4109 = vmatpush.bf16.msra.mxu0 %v3482
  %4110 = vmatpush.bf16.msra.mxu0 %v3475
  %4111 = vmatpush.bf16.msra.mxu0 %v3468
  %4112 = vmatpush.bf16.msra.mxu0 %v3461
  %4113 = vmatpush.bf16.msra.mxu0 %v3454
  %4114 = vmatpush.bf16.msra.mxu0 %v3447
  %4115 = vmatpush.bf16.msra.mxu0 %v3440
  %4116 = vmatmul.bf16.gmra.mxu0 %v2456
  %v4117 = vpop.f32.mrf.mxu0
  %v4118 = vadd.f32 %v2722, %v4117
  %v4119 = vpop.f32.mrf.mxu0
  %v4120 = vadd.f32 %v2722, %v4119
  %4121 = vdwg.mxu0
  %4122 = vmatpush.bf16.msra.mxu0 %v3545
  %4123 = vmatpush.bf16.msra.mxu0 %v3538
  %4124 = vmatpush.bf16.msra.mxu0 %v3531
  %4125 = vmatpush.bf16.msra.mxu0 %v3524
  %4126 = vmatpush.bf16.msra.mxu0 %v3517
  %4127 = vmatpush.bf16.msra.mxu0 %v3510
  %4128 = vmatpush.bf16.msra.mxu0 %v3503
  %4129 = vmatpush.bf16.msra.mxu0 %v3496
  %4130 = vmatmul.bf16.gmra.mxu0 %v2457
  %v4131 = vpop.f32.mrf.mxu0
  %v4132 = vadd.f32 %v4118, %v4131
  %v4133 = vpop.f32.mrf.mxu0
  %v4134 = vadd.f32 %v4120, %v4133
  %4135 = vdwg.mxu0
  %4136 = vmatpush.bf16.msra.mxu0 %v3601
  %4137 = vmatpush.bf16.msra.mxu0 %v3594
  %4138 = vmatpush.bf16.msra.mxu0 %v3587
  %4139 = vmatpush.bf16.msra.mxu0 %v3580
  %4140 = vmatpush.bf16.msra.mxu0 %v3573
  %4141 = vmatpush.bf16.msra.mxu0 %v3566
  %4142 = vmatpush.bf16.msra.mxu0 %v3559
  %4143 = vmatpush.bf16.msra.mxu0 %v3552
  %4144 = vmatmul.bf16.gmra.mxu0 %v2458
  %v4145 = vpop.f32.mrf.mxu0
  %v4146 = vadd.f32 %v4132, %v4145
  %v4147 = vpop.f32.mrf.mxu0
  %v4148 = vadd.f32 %v4134, %v4147
  %4149 = vdwg.mxu0
  %4150 = vmatpush.bf16.msra.mxu0 %v3657
  %4151 = vmatpush.bf16.msra.mxu0 %v3650
  %4152 = vmatpush.bf16.msra.mxu0 %v3643
  %4153 = vmatpush.bf16.msra.mxu0 %v3636
  %4154 = vmatpush.bf16.msra.mxu0 %v3629
  %4155 = vmatpush.bf16.msra.mxu0 %v3622
  %4156 = vmatpush.bf16.msra.mxu0 %v3615
  %4157 = vmatpush.bf16.msra.mxu0 %v3608
  %4158 = vmatmul.bf16.gmra.mxu0 %v2459
  %v4159 = vpop.f32.mrf.mxu0
  %v4160 = vadd.f32 %v4146, %v4159
  %v4161 = vpop.f32.mrf.mxu0
  %v4162 = vadd.f32 %v4148, %v4161
  %4163 = vdwg.mxu0
  %4164 = vmatpush.bf16.msra.mxu0 %v3490
  %4165 = vmatpush.bf16.msra.mxu0 %v3483
  %4166 = vmatpush.bf16.msra.mxu0 %v3476
  %4167 = vmatpush.bf16.msra.mxu0 %v3469
  %4168 = vmatpush.bf16.msra.mxu0 %v3462
  %4169 = vmatpush.bf16.msra.mxu0 %v3455
  %4170 = vmatpush.bf16.msra.mxu0 %v3448
  %4171 = vmatpush.bf16.msra.mxu0 %v3441
  %4172 = vmatmul.bf16.gmra.mxu0 %v2456
  %v4173 = vpop.f32.mrf.mxu0
  %v4174 = vadd.f32 %v2723, %v4173
  %v4175 = vpop.f32.mrf.mxu0
  %v4176 = vadd.f32 %v2723, %v4175
  %4177 = vdwg.mxu0
  %4178 = vmatpush.bf16.msra.mxu0 %v3546
  %4179 = vmatpush.bf16.msra.mxu0 %v3539
  %4180 = vmatpush.bf16.msra.mxu0 %v3532
  %4181 = vmatpush.bf16.msra.mxu0 %v3525
  %4182 = vmatpush.bf16.msra.mxu0 %v3518
  %4183 = vmatpush.bf16.msra.mxu0 %v3511
  %4184 = vmatpush.bf16.msra.mxu0 %v3504
  %4185 = vmatpush.bf16.msra.mxu0 %v3497
  %4186 = vmatmul.bf16.gmra.mxu0 %v2457
  %v4187 = vpop.f32.mrf.mxu0
  %v4188 = vadd.f32 %v4174, %v4187
  %v4189 = vpop.f32.mrf.mxu0
  %v4190 = vadd.f32 %v4176, %v4189
  %4191 = vdwg.mxu0
  %4192 = vmatpush.bf16.msra.mxu0 %v3602
  %4193 = vmatpush.bf16.msra.mxu0 %v3595
  %4194 = vmatpush.bf16.msra.mxu0 %v3588
  %4195 = vmatpush.bf16.msra.mxu0 %v3581
  %4196 = vmatpush.bf16.msra.mxu0 %v3574
  %4197 = vmatpush.bf16.msra.mxu0 %v3567
  %4198 = vmatpush.bf16.msra.mxu0 %v3560
  %4199 = vmatpush.bf16.msra.mxu0 %v3553
  %4200 = vmatmul.bf16.gmra.mxu0 %v2458
  %v4201 = vpop.f32.mrf.mxu0
  %v4202 = vadd.f32 %v4188, %v4201
  %v4203 = vpop.f32.mrf.mxu0
  %v4204 = vadd.f32 %v4190, %v4203
  %4205 = vdwg.mxu0
  %4206 = vmatpush.bf16.msra.mxu0 %v3658
  %4207 = vmatpush.bf16.msra.mxu0 %v3651
  %4208 = vmatpush.bf16.msra.mxu0 %v3644
  %4209 = vmatpush.bf16.msra.mxu0 %v3637
  %4210 = vmatpush.bf16.msra.mxu0 %v3630
  %4211 = vmatpush.bf16.msra.mxu0 %v3623
  %4212 = vmatpush.bf16.msra.mxu0 %v3616
  %4213 = vmatpush.bf16.msra.mxu0 %v3609
  %4214 = vmatmul.bf16.gmra.mxu0 %v2459
  %v4215 = vpop.f32.mrf.mxu0
  %v4216 = vadd.f32 %v4202, %v4215
  %v4217 = vpop.f32.mrf.mxu0
  %v4218 = vadd.f32 %v4204, %v4217
  %4219 = vdwg.mxu0
  %4220 = vmatpush.bf16.msra.mxu0 %v3491
  %4221 = vmatpush.bf16.msra.mxu0 %v3484
  %4222 = vmatpush.bf16.msra.mxu0 %v3477
  %4223 = vmatpush.bf16.msra.mxu0 %v3470
  %4224 = vmatpush.bf16.msra.mxu0 %v3463
  %4225 = vmatpush.bf16.msra.mxu0 %v3456
  %4226 = vmatpush.bf16.msra.mxu0 %v3449
  %4227 = vmatpush.bf16.msra.mxu0 %v3442
  %4228 = vmatmul.bf16.gmra.mxu0 %v2456
  %v4229 = vpop.f32.mrf.mxu0
  %v4230 = vadd.f32 %v2724, %v4229
  %v4231 = vpop.f32.mrf.mxu0
  %v4232 = vadd.f32 %v2724, %v4231
  %4233 = vdwg.mxu0
  %4234 = vmatpush.bf16.msra.mxu0 %v3547
  %4235 = vmatpush.bf16.msra.mxu0 %v3540
  %4236 = vmatpush.bf16.msra.mxu0 %v3533
  %4237 = vmatpush.bf16.msra.mxu0 %v3526
  %4238 = vmatpush.bf16.msra.mxu0 %v3519
  %4239 = vmatpush.bf16.msra.mxu0 %v3512
  %4240 = vmatpush.bf16.msra.mxu0 %v3505
  %4241 = vmatpush.bf16.msra.mxu0 %v3498
  %4242 = vmatmul.bf16.gmra.mxu0 %v2457
  %v4243 = vpop.f32.mrf.mxu0
  %v4244 = vadd.f32 %v4230, %v4243
  %v4245 = vpop.f32.mrf.mxu0
  %v4246 = vadd.f32 %v4232, %v4245
  %4247 = vdwg.mxu0
  %4248 = vmatpush.bf16.msra.mxu0 %v3603
  %4249 = vmatpush.bf16.msra.mxu0 %v3596
  %4250 = vmatpush.bf16.msra.mxu0 %v3589
  %4251 = vmatpush.bf16.msra.mxu0 %v3582
  %4252 = vmatpush.bf16.msra.mxu0 %v3575
  %4253 = vmatpush.bf16.msra.mxu0 %v3568
  %4254 = vmatpush.bf16.msra.mxu0 %v3561
  %4255 = vmatpush.bf16.msra.mxu0 %v3554
  %4256 = vmatmul.bf16.gmra.mxu0 %v2458
  %v4257 = vpop.f32.mrf.mxu0
  %v4258 = vadd.f32 %v4244, %v4257
  %v4259 = vpop.f32.mrf.mxu0
  %v4260 = vadd.f32 %v4246, %v4259
  %4261 = vdwg.mxu0
  %4262 = vmatpush.bf16.msra.mxu0 %v3659
  %4263 = vmatpush.bf16.msra.mxu0 %v3652
  %4264 = vmatpush.bf16.msra.mxu0 %v3645
  %4265 = vmatpush.bf16.msra.mxu0 %v3638
  %4266 = vmatpush.bf16.msra.mxu0 %v3631
  %4267 = vmatpush.bf16.msra.mxu0 %v3624
  %4268 = vmatpush.bf16.msra.mxu0 %v3617
  %4269 = vmatpush.bf16.msra.mxu0 %v3610
  %4270 = vmatmul.bf16.gmra.mxu0 %v2459
  %v4271 = vpop.f32.mrf.mxu0
  %v4272 = vadd.f32 %v4258, %v4271
  %v4273 = vpop.f32.mrf.mxu0
  %v4274 = vadd.f32 %v4260, %v4273
  %4275 = vdwg.mxu0
  %v4276 = vxor.u32 %v3936, 2147483648
  %v4277 = vxor.u32 %v3992, 2147483648
  %v4278 = vxor.u32 %v4048, 2147483648
  %v4279 = vxor.u32 %v4104, 2147483648
  %v4280 = vxor.u32 %v4160, 2147483648
  %v4281 = vxor.u32 %v4216, 2147483648
  %v4282 = vxor.u32 %v4272, 2147483648
  %v4283 = vxor.u32 %v3938, 2147483648
  %v4284 = vxor.u32 %v3994, 2147483648
  %v4285 = vxor.u32 %v4050, 2147483648
  %v4286 = vxor.u32 %v4106, 2147483648
  %v4287 = vxor.u32 %v4162, 2147483648
  %v4288 = vxor.u32 %v4218, 2147483648
  %v4289 = vxor.u32 %v4274, 2147483648
  %v4290 = vmul.f32 %v4276, 1.442695
  %v4291 = vpow.pop %v4290
  %v4292 = vmul.f32 %v4277, 1.442695
  %v4293 = vpow.pop %v4292
  %v4294 = vmul.f32 %v4278, 1.442695
  %v4295 = vpow.pop %v4294
  %v4296 = vmul.f32 %v4279, 1.442695
  %v4297 = vpow.pop %v4296
  %v4298 = vmul.f32 %v4280, 1.442695
  %v4299 = vpow.pop %v4298
  %v4300 = vmul.f32 %v4281, 1.442695
  %v4301 = vpow.pop %v4300
  %v4302 = vmul.f32 %v4282, 1.442695
  %v4303 = vpow.pop %v4302
  %v4304 = vmul.f32 %v4283, 1.442695
  %v4305 = vpow.pop %v4304
  %v4306 = vmul.f32 %v4284, 1.442695
  %v4307 = vpow.pop %v4306
  %v4308 = vmul.f32 %v4285, 1.442695
  %v4309 = vpow.pop %v4308
  %v4310 = vmul.f32 %v4286, 1.442695
  %v4311 = vpow.pop %v4310
  %v4312 = vmul.f32 %v4287, 1.442695
  %v4313 = vpow.pop %v4312
  %v4314 = vmul.f32 %v4288, 1.442695
  %v4315 = vpow.pop %v4314
  %v4316 = vmul.f32 %v4289, 1.442695
  %v4317 = vpow.pop %v4316
  %v4318 = vadd.f32 %v4291, 1.0
  %v4319 = vadd.f32 %v4293, 1.0
  %v4320 = vadd.f32 %v4295, 1.0
  %v4321 = vadd.f32 %v4297, 1.0
  %v4322 = vadd.f32 %v4299, 1.0
  %v4323 = vadd.f32 %v4301, 1.0
  %v4324 = vadd.f32 %v4303, 1.0
  %v4325 = vadd.f32 %v4305, 1.0
  %v4326 = vadd.f32 %v4307, 1.0
  %v4327 = vadd.f32 %v4309, 1.0
  %v4328 = vadd.f32 %v4311, 1.0
  %v4329 = vadd.f32 %v4313, 1.0
  %v4330 = vadd.f32 %v4315, 1.0
  %v4331 = vadd.f32 %v4317, 1.0
  %v4332 = vrcp.pop %v4318
  %v4333 = vmul.f32 %v4318, %v4332
  %v4334 = vsub.f32 1.0, %v4333
  %v4335 = vmul.f32 %v4332, %v4334
  %v4336 = vadd.f32 %v4332, %v4335
  %vm4337 = vweird.f32 %v4318
  %vm4338 = vweird.f32 %v4332
  %vm4339 = vmor %vm4337, %vm4338
  %v4340 = vsel %vm4339, %v4332, %v4336
  %v4341 = vand.u32 2147483647, %v4318
  %vm4342 = vcmp.eq.f32.partialorder %v4341, 8.507059e+37
  %v4343 = vand.u32 %v4318, 2147483648
  %v4344 = vor.u32 1.1754944e-38, %v4343
  %v4345 = vsel %vm4342, %v4344, %v4340
  %v4346 = vmul.f32 1.0, %v4345
  %v4347 = vrcp.pop %v4319
  %v4348 = vmul.f32 %v4319, %v4347
  %v4349 = vsub.f32 1.0, %v4348
  %v4350 = vmul.f32 %v4347, %v4349
  %v4351 = vadd.f32 %v4347, %v4350
  %vm4352 = vweird.f32 %v4319
  %vm4353 = vweird.f32 %v4347
  %vm4354 = vmor %vm4352, %vm4353
  %v4355 = vsel %vm4354, %v4347, %v4351
  %v4356 = vand.u32 2147483647, %v4319
  %vm4357 = vcmp.eq.f32.partialorder %v4356, 8.507059e+37
  %v4358 = vand.u32 %v4319, 2147483648
  %v4359 = vor.u32 1.1754944e-38, %v4358
  %v4360 = vsel %vm4357, %v4359, %v4355
  %v4361 = vmul.f32 1.0, %v4360
  %v4362 = vrcp.pop %v4320
  %v4363 = vmul.f32 %v4320, %v4362
  %v4364 = vsub.f32 1.0, %v4363
  %v4365 = vmul.f32 %v4362, %v4364
  %v4366 = vadd.f32 %v4362, %v4365
  %vm4367 = vweird.f32 %v4320
  %vm4368 = vweird.f32 %v4362
  %vm4369 = vmor %vm4367, %vm4368
  %v4370 = vsel %vm4369, %v4362, %v4366
  %v4371 = vand.u32 2147483647, %v4320
  %vm4372 = vcmp.eq.f32.partialorder %v4371, 8.507059e+37
  %v4373 = vand.u32 %v4320, 2147483648
  %v4374 = vor.u32 1.1754944e-38, %v4373
  %v4375 = vsel %vm4372, %v4374, %v4370
  %v4376 = vmul.f32 1.0, %v4375
  %v4377 = vrcp.pop %v4321
  %v4378 = vmul.f32 %v4321, %v4377
  %v4379 = vsub.f32 1.0, %v4378
  %v4380 = vmul.f32 %v4377, %v4379
  %v4381 = vadd.f32 %v4377, %v4380
  %vm4382 = vweird.f32 %v4321
  %vm4383 = vweird.f32 %v4377
  %vm4384 = vmor %vm4382, %vm4383
  %v4385 = vsel %vm4384, %v4377, %v4381
  %v4386 = vand.u32 2147483647, %v4321
  %vm4387 = vcmp.eq.f32.partialorder %v4386, 8.507059e+37
  %v4388 = vand.u32 %v4321, 2147483648
  %v4389 = vor.u32 1.1754944e-38, %v4388
  %v4390 = vsel %vm4387, %v4389, %v4385
  %v4391 = vmul.f32 1.0, %v4390
  %v4392 = vrcp.pop %v4322
  %v4393 = vmul.f32 %v4322, %v4392
  %v4394 = vsub.f32 1.0, %v4393
  %v4395 = vmul.f32 %v4392, %v4394
  %v4396 = vadd.f32 %v4392, %v4395
  %vm4397 = vweird.f32 %v4322
  %vm4398 = vweird.f32 %v4392
  %vm4399 = vmor %vm4397, %vm4398
  %v4400 = vsel %vm4399, %v4392, %v4396
  %v4401 = vand.u32 2147483647, %v4322
  %vm4402 = vcmp.eq.f32.partialorder %v4401, 8.507059e+37
  %v4403 = vand.u32 %v4322, 2147483648
  %v4404 = vor.u32 1.1754944e-38, %v4403
  %v4405 = vsel %vm4402, %v4404, %v4400
  %v4406 = vmul.f32 1.0, %v4405
  %v4407 = vrcp.pop %v4323
  %v4408 = vmul.f32 %v4323, %v4407
  %v4409 = vsub.f32 1.0, %v4408
  %v4410 = vmul.f32 %v4407, %v4409
  %v4411 = vadd.f32 %v4407, %v4410
  %vm4412 = vweird.f32 %v4323
  %vm4413 = vweird.f32 %v4407
  %vm4414 = vmor %vm4412, %vm4413
  %v4415 = vsel %vm4414, %v4407, %v4411
  %v4416 = vand.u32 2147483647, %v4323
  %vm4417 = vcmp.eq.f32.partialorder %v4416, 8.507059e+37
  %v4418 = vand.u32 %v4323, 2147483648
  %v4419 = vor.u32 1.1754944e-38, %v4418
  %v4420 = vsel %vm4417, %v4419, %v4415
  %v4421 = vmul.f32 1.0, %v4420
  %v4422 = vrcp.pop %v4324
  %v4423 = vmul.f32 %v4324, %v4422
  %v4424 = vsub.f32 1.0, %v4423
  %v4425 = vmul.f32 %v4422, %v4424
  %v4426 = vadd.f32 %v4422, %v4425
  %vm4427 = vweird.f32 %v4324
  %vm4428 = vweird.f32 %v4422
  %vm4429 = vmor %vm4427, %vm4428
  %v4430 = vsel %vm4429, %v4422, %v4426
  %v4431 = vand.u32 2147483647, %v4324
  %vm4432 = vcmp.eq.f32.partialorder %v4431, 8.507059e+37
  %v4433 = vand.u32 %v4324, 2147483648
  %v4434 = vor.u32 1.1754944e-38, %v4433
  %v4435 = vsel %vm4432, %v4434, %v4430
  %v4436 = vmul.f32 1.0, %v4435
  %v4437 = vrcp.pop %v4325
  %v4438 = vmul.f32 %v4325, %v4437
  %v4439 = vsub.f32 1.0, %v4438
  %v4440 = vmul.f32 %v4437, %v4439
  %v4441 = vadd.f32 %v4437, %v4440
  %vm4442 = vweird.f32 %v4325
  %vm4443 = vweird.f32 %v4437
  %vm4444 = vmor %vm4442, %vm4443
  %v4445 = vsel %vm4444, %v4437, %v4441
  %v4446 = vand.u32 2147483647, %v4325
  %vm4447 = vcmp.eq.f32.partialorder %v4446, 8.507059e+37
  %v4448 = vand.u32 %v4325, 2147483648
  %v4449 = vor.u32 1.1754944e-38, %v4448
  %v4450 = vsel %vm4447, %v4449, %v4445
  %v4451 = vmul.f32 1.0, %v4450
  %v4452 = vrcp.pop %v4326
  %v4453 = vmul.f32 %v4326, %v4452
  %v4454 = vsub.f32 1.0, %v4453
  %v4455 = vmul.f32 %v4452, %v4454
  %v4456 = vadd.f32 %v4452, %v4455
  %vm4457 = vweird.f32 %v4326
  %vm4458 = vweird.f32 %v4452
  %vm4459 = vmor %vm4457, %vm4458
  %v4460 = vsel %vm4459, %v4452, %v4456
  %v4461 = vand.u32 2147483647, %v4326
  %vm4462 = vcmp.eq.f32.partialorder %v4461, 8.507059e+37
  %v4463 = vand.u32 %v4326, 2147483648
  %v4464 = vor.u32 1.1754944e-38, %v4463
  %v4465 = vsel %vm4462, %v4464, %v4460
  %v4466 = vmul.f32 1.0, %v4465
  %v4467 = vrcp.pop %v4327
  %v4468 = vmul.f32 %v4327, %v4467
  %v4469 = vsub.f32 1.0, %v4468
  %v4470 = vmul.f32 %v4467, %v4469
  %v4471 = vadd.f32 %v4467, %v4470
  %vm4472 = vweird.f32 %v4327
  %vm4473 = vweird.f32 %v4467
  %vm4474 = vmor %vm4472, %vm4473
  %v4475 = vsel %vm4474, %v4467, %v4471
  %v4476 = vand.u32 2147483647, %v4327
  %vm4477 = vcmp.eq.f32.partialorder %v4476, 8.507059e+37
  %v4478 = vand.u32 %v4327, 2147483648
  %v4479 = vor.u32 1.1754944e-38, %v4478
  %v4480 = vsel %vm4477, %v4479, %v4475
  %v4481 = vmul.f32 1.0, %v4480
  %v4482 = vrcp.pop %v4328
  %v4483 = vmul.f32 %v4328, %v4482
  %v4484 = vsub.f32 1.0, %v4483
  %v4485 = vmul.f32 %v4482, %v4484
  %v4486 = vadd.f32 %v4482, %v4485
  %vm4487 = vweird.f32 %v4328
  %vm4488 = vweird.f32 %v4482
  %vm4489 = vmor %vm4487, %vm4488
  %v4490 = vsel %vm4489, %v4482, %v4486
  %v4491 = vand.u32 2147483647, %v4328
  %vm4492 = vcmp.eq.f32.partialorder %v4491, 8.507059e+37
  %v4493 = vand.u32 %v4328, 2147483648
  %v4494 = vor.u32 1.1754944e-38, %v4493
  %v4495 = vsel %vm4492, %v4494, %v4490
  %v4496 = vmul.f32 1.0, %v4495
  %v4497 = vrcp.pop %v4329
  %v4498 = vmul.f32 %v4329, %v4497
  %v4499 = vsub.f32 1.0, %v4498
  %v4500 = vmul.f32 %v4497, %v4499
  %v4501 = vadd.f32 %v4497, %v4500
  %vm4502 = vweird.f32 %v4329
  %vm4503 = vweird.f32 %v4497
  %vm4504 = vmor %vm4502, %vm4503
  %v4505 = vsel %vm4504, %v4497, %v4501
  %v4506 = vand.u32 2147483647, %v4329
  %vm4507 = vcmp.eq.f32.partialorder %v4506, 8.507059e+37
  %v4508 = vand.u32 %v4329, 2147483648
  %v4509 = vor.u32 1.1754944e-38, %v4508
  %v4510 = vsel %vm4507, %v4509, %v4505
  %v4511 = vmul.f32 1.0, %v4510
  %v4512 = vrcp.pop %v4330
  %v4513 = vmul.f32 %v4330, %v4512
  %v4514 = vsub.f32 1.0, %v4513
  %v4515 = vmul.f32 %v4512, %v4514
  %v4516 = vadd.f32 %v4512, %v4515
  %vm4517 = vweird.f32 %v4330
  %vm4518 = vweird.f32 %v4512
  %vm4519 = vmor %vm4517, %vm4518
  %v4520 = vsel %vm4519, %v4512, %v4516
  %v4521 = vand.u32 2147483647, %v4330
  %vm4522 = vcmp.eq.f32.partialorder %v4521, 8.507059e+37
  %v4523 = vand.u32 %v4330, 2147483648
  %v4524 = vor.u32 1.1754944e-38, %v4523
  %v4525 = vsel %vm4522, %v4524, %v4520
  %v4526 = vmul.f32 1.0, %v4525
  %v4527 = vrcp.pop %v4331
  %v4528 = vmul.f32 %v4331, %v4527
  %v4529 = vsub.f32 1.0, %v4528
  %v4530 = vmul.f32 %v4527, %v4529
  %v4531 = vadd.f32 %v4527, %v4530
  %vm4532 = vweird.f32 %v4331
  %vm4533 = vweird.f32 %v4527
  %vm4534 = vmor %vm4532, %vm4533
  %v4535 = vsel %vm4534, %v4527, %v4531
  %v4536 = vand.u32 2147483647, %v4331
  %vm4537 = vcmp.eq.f32.partialorder %v4536, 8.507059e+37
  %v4538 = vand.u32 %v4331, 2147483648
  %v4539 = vor.u32 1.1754944e-38, %v4538
  %v4540 = vsel %vm4537, %v4539, %v4535
  %v4541 = vmul.f32 1.0, %v4540
  %4542 = vst [vmem:[%s10] sm:$0xff] %v4346
  %4543 = vst [vmem:[%s10 + $0x8] sm:$0xff] %v4361
  %4544 = vst [vmem:[%s10 + $0x10] sm:$0xff] %v4376
  %4545 = vst [vmem:[%s10 + $0x18] sm:$0xff] %v4391
  %4546 = vst [vmem:[%s10 + $0x20] sm:$0xff] %v4406
  %4547 = vst [vmem:[%s10 + $0x28] sm:$0xff] %v4421
  %4548 = vst.msk [vmem:[%s10 + $0x30] sm:$0xff] %vm1267, %v4436
  %4549 = vst [vmem:[%s10 + $0x38] sm:$0xff] %v4451
  %4550 = vst [vmem:[%s10 + $0x40] sm:$0xff] %v4466
  %4551 = vst [vmem:[%s10 + $0x48] sm:$0xff] %v4481
  %4552 = vst [vmem:[%s10 + $0x50] sm:$0xff] %v4496
  %4553 = vst [vmem:[%s10 + $0x58] sm:$0xff] %v4511
  %4554 = vst [vmem:[%s10 + $0x60] sm:$0xff] %v4526
  %4555 = vst.msk [vmem:[%s10 + $0x68] sm:$0xff] %vm1267, %v4541
  %4556 = vst [vmem:[%s11] sm:$0xff] %v2187
  %4557 = vst [vmem:[%s11 + $0x18] sm:$0xff] %v2188
  %4558 = vst [vmem:[%s11 + $0x8] sm:$0xff] %v2117
  %4559 = vst [vmem:[%s11 + $0x10] sm:$0xff] %v2173
  %4560 = vst [vmem:[%s11 + $0x20] sm:$0xff] %v2119
  %4561 = vst [vmem:[%s11 + $0x28] sm:$0xff] %v2175
  // Predicated region
  $region42: #{vae_forward.1} parent=0 // pred_check
    _
  $region43: #{vae_forward.1} parent=0 // pred_check_branch
    %4563 = sbr.rel (0) target = $region45
  $region44: #{vae_forward.1} parent=0 // pred_region
    _
  $region45: #{vae_forward.1} parent=0 // pred_fallthru
    _
  // Predicated region
  $region46: #{vae_forward.1} parent=0 // pred_check
    _
  $region47: #{vae_forward.1} parent=0 // pred_check_branch
    %4565 = sbr.rel (0) target = $region49
  $region48: #{vae_forward.1} parent=0 // pred_region
    _
  $region49: #{vae_forward.1} parent=0 // pred_fallthru
    _
  // Predicated region
  $region50: #{vae_forward.1} parent=0 // pred_check
    _
  $region51: #{vae_forward.1} parent=0 // pred_check_branch
    %4567 = sbr.rel (0) target = $region53
  $region52: #{vae_forward.1} parent=0 // pred_region
    _
  $region53: #{vae_forward.1} parent=0 // pred_fallthru
    _
  // Predicated region
  $region54: #{vae_forward.1} parent=0 // pred_check
    _
  $region55: #{vae_forward.1} parent=0 // pred_check_branch
    %4569 = sbr.rel (0) target = $region57
  $region56: #{vae_forward.1} parent=0 // pred_region
    _
  $region57: #{vae_forward.1} parent=0 // pred_fallthru
    _

</llo_original>
